<compile_context>
chip_gen: v6e
topology: v6e:2x2x1
jax: 0.10.0
libtpu: 0.0.40
codegen_flags: <defaults>
</compile_context>

<pallas_src>
import jax
import jax.numpy as jnp
from jax.experimental import pallas as pl
from jax.experimental.pallas import tpu as pltpu

HPAD = 128  # every layer's hidden dim padded to one full vreg lane width


# ------------------------------ fused kernel ----------------------------------
def _fused_lstm_kernel(x_ref,
                       w_ih1_ref, w_hh1_ref, b1_ref,
                       w2_hbm_ref, b2_ref,
                       w3_hbm_ref, b3_ref,
                       fc_w_ref, fc_b_ref,
                       out_ref,
                       xw_scr, w2_scr, w3_scr, sem):
    T, Bp, D = x_ref.shape
    H4 = w_hh1_ref.shape[-1]          # 4 * HPAD
    H = H4 // 4                       # HPAD

    # Start streaming the big layer-2/3 packed weights HBM -> VMEM while the
    # layer-1 work below runs; wait only right before each first use.
    cp2 = pltpu.make_async_copy(w2_hbm_ref, w2_scr, sem.at[0])
    cp3 = pltpu.make_async_copy(w3_hbm_ref, w3_scr, sem.at[1])
    cp2.start()
    cp3.start()

    # Hoisted layer-1 input projection: one (T*Bp, D) @ (D, 4H) MXU matmul,
    # written to VMEM scratch (not kept as an SSA value across the loop).
    x_flat = x_ref[...].reshape(T * Bp, D).astype(jnp.bfloat16)
    xw_scr[...] = (jnp.dot(x_flat, w_ih1_ref[...],
                           preferred_element_type=jnp.float32)
                   + b1_ref[...]).reshape(T, Bp, H4)

    zeros = jnp.zeros((Bp, H), jnp.float32)
    h1, c1 = zeros, zeros
    h2, c2 = zeros, zeros
    h3, c3 = zeros, zeros

    def cell(gates, c):
        i_g = jax.nn.sigmoid(gates[:, 0 * H:1 * H])
        f_g = jax.nn.sigmoid(gates[:, 1 * H:2 * H])
        g_g = jnp.tanh(gates[:, 2 * H:3 * H])
        o_g = jax.nn.sigmoid(gates[:, 3 * H:4 * H])
        c_new = f_g * c + i_g * g_g
        return o_g * jnp.tanh(c_new), c_new

    # Wavefront over T+2 steps: at step s, layer-1 processes timestep s,
    # layer-2 timestep s-1 and layer-3 timestep s-2.  All three layer-steps
    # only consume carries produced at step s-1, so they are independent and
    # their MXU/EUP latency overlaps.  (Static loop: phase conditions are
    # Python-level; weights are re-read from refs each iteration so no large
    # value lives across the unrolled body.)
    for s in range(T + 2):
        if s == 1:
            cp2.wait()                 # layer-2 weights needed this step
        if s == 2:
            cp3.wait()                 # layer-3 weights needed this step

        if s < T:
            g1 = xw_scr[s] + jnp.dot(h1.astype(jnp.bfloat16), w_hh1_ref[...],
                                     preferred_element_type=jnp.float32)
            h1n, c1n = cell(g1, c1)
        if 1 <= s <= T:
            in2 = jnp.concatenate([h1, h2], axis=-1).astype(jnp.bfloat16)
            g2 = b2_ref[...] + jnp.dot(in2, w2_scr[...],
                                       preferred_element_type=jnp.float32)
            h2n, c2n = cell(g2, c2)
        if 2 <= s <= T + 1:
            in3 = jnp.concatenate([h2, h3], axis=-1).astype(jnp.bfloat16)
            g3 = b3_ref[...] + jnp.dot(in3, w3_scr[...],
                                       preferred_element_type=jnp.float32)
            h3n, c3n = cell(g3, c3)

        # Commit carries only after all layer-steps of this wavefront step.
        if s < T:
            h1, c1 = h1n, c1n
        if 1 <= s <= T:
            h2, c2 = h2n, c2n
        if 2 <= s <= T + 1:
            h3, c3 = h3n, c3n

    # FC head fused onto the last timestep; only this leaves VMEM.
    out_ref[...] = (jnp.dot(h3, fc_w_ref[...],
                            preferred_element_type=jnp.float32)
                    + fc_b_ref[...]).astype(out_ref.dtype)


# ----------------------------- parameter handling ------------------------------
def _init_lstm_weights(key, input_size, hidden_size):
    """Matches nn.LSTM init: U(-k, k), k = 1/sqrt(hidden_size). Returns
    (w_ih, w_hh, b) pre-transposed for (B, D) @ (D, 4H) with folded bias."""
    k = 1.0 / float(hidden_size) ** 0.5
    k1, k2, k3, k4 = jax.random.split(key, 4)
    w_ih = jax.random.uniform(k1, (4 * hidden_size, input_size), jnp.float32, -k, k)
    w_hh = jax.random.uniform(k2, (4 * hidden_size, hidden_size), jnp.float32, -k, k)
    b_ih = jax.random.uniform(k3, (4 * hidden_size,), jnp.float32, -k, k)
    b_hh = jax.random.uniform(k4, (4 * hidden_size,), jnp.float32, -k, k)
    return w_ih.T, w_hh.T, (b_ih + b_hh).reshape(1, -1)


def init_model_params(key, input_size, hidden_size=128, num_classes=1):
    k1, k2, k3, k4 = jax.random.split(key, 4)
    params = {
        "lstm": [
            _init_lstm_weights(k1, input_size, hidden_size),   # H = 128
            _init_lstm_weights(k2, hidden_size, 32),           # H = 32
            _init_lstm_weights(k3, 32, 16),                    # H = 16
        ],
    }
    kf = 1.0 / 16.0 ** 0.5
    kw, kb = jax.random.split(k4)
    fc_w = jax.random.uniform(kw, (num_classes, 16), jnp.float32, -kf, kf)
    fc_b = jax.random.uniform(kb, (num_classes,), jnp.float32, -kf, kf)
    params["fc_w"] = fc_w.T                    # (16, num_classes)
    params["fc_b"] = fc_b.reshape(1, -1)       # (1, num_classes)
    return params


def _pad_gate_cols(w, h_pad):
    """(D, 4*h_true) -> (D, 4*h_pad): zero-pad each gate block along lanes.
    h_true is derived from the (static) array shape — safe under/outside jit."""
    d, four_h = w.shape
    h_true = four_h // 4
    w4 = w.reshape(d, 4, h_true)
    w4 = jnp.pad(w4, ((0, 0), (0, 0), (0, h_pad - h_true)))
    return w4.reshape(d, 4 * h_pad)


def _pad_rows(w, rows_pad):
    return jnp.pad(w, ((0, rows_pad - w.shape[0]), (0, 0)))


def prepare_kernel_params(params):
    """Pad all hidden dims to HPAD, pack layer-2/3 [W_ih; W_hh], cast matmul
    weights to bf16.  Called once, OUTSIDE jit.  Zero padding keeps padded
    hidden channels identically zero, so results match the unpadded model."""
    (w_ih1, w_hh1, b1), (w_ih2, w_hh2, b2), (w_ih3, w_hh3, b3) = params["lstm"]

    # Layer 1 (H = 128 == HPAD already; pads are no-ops except for clarity).
    w_ih1_p = _pad_gate_cols(w_ih1, HPAD)                       # (D, 4*HPAD)
    w_hh1_p = _pad_rows(_pad_gate_cols(w_hh1, HPAD), HPAD)      # (HPAD, 4*HPAD)
    b1_p = _pad_gate_cols(b1, HPAD)                             # (1, 4*HPAD)

    # Layer 2 (input 128, hidden 32 -> 128): pack [W_ih; W_hh].
    w_ih2_p = _pad_rows(_pad_gate_cols(w_ih2, HPAD), HPAD)
    w_hh2_p = _pad_rows(_pad_gate_cols(w_hh2, HPAD), HPAD)
    w_cat2 = jnp.concatenate([w_ih2_p, w_hh2_p], axis=0)        # (2*HPAD, 4*HPAD)
    b2_p = _pad_gate_cols(b2, HPAD)

    # Layer 3 (input 32 -> 128, hidden 16 -> 128): pack [W_ih; W_hh].
    w_ih3_p = _pad_rows(_pad_gate_cols(w_ih3, HPAD), HPAD)
    w_hh3_p = _pad_rows(_pad_gate_cols(w_hh3, HPAD), HPAD)
    w_cat3 = jnp.concatenate([w_ih3_p, w_hh3_p], axis=0)        # (2*HPAD, 4*HPAD)
    b3_p = _pad_gate_cols(b3, HPAD)

    fc_w_p = _pad_rows(params["fc_w"], HPAD)                    # (HPAD, num_classes)
    fc_b = params["fc_b"]                                       # (1, num_classes)

    bf16 = jnp.bfloat16
    return (w_ih1_p.astype(bf16), w_hh1_p.astype(bf16), b1_p,
            w_cat2.astype(bf16), b2_p,
            w_cat3.astype(bf16), b3_p,
            fc_w_p, fc_b)


# --------------------------------- forward -------------------------------------
@jax.jit
def lstm_model_forward(x, kparams):
    """x: (B, T, input_size) batch-first, like the PyTorch module.
    kparams: output of prepare_kernel_params(). Returns (B, num_classes)."""
    (w_ih1, w_hh1, b1, w_cat2, b2, w_cat3, b3, fc_w, fc_b) = kparams
    B, T, D = x.shape
    Bp = max(8, ((B + 7) // 8) * 8)                          # pad batch to sublanes
    x_tm = jnp.transpose(x, (1, 0, 2)).astype(jnp.float32)   # time-major (T, B, D)
    x_tm = jnp.pad(x_tm, ((0, 0), (0, Bp - B), (0, 0)))
    num_classes = fc_w.shape[-1]
    H4 = w_hh1.shape[-1]

    in_specs = [
        pl.BlockSpec(x_tm.shape, lambda i: (0, 0, 0)),
        pl.BlockSpec(w_ih1.shape, lambda i: (0, 0)),
        pl.BlockSpec(w_hh1.shape, lambda i: (0, 0)),
        pl.BlockSpec(b1.shape, lambda i: (0, 0)),
        pl.BlockSpec(memory_space=pl.ANY),      # layer-2 packed weight stays in HBM
        pl.BlockSpec(b2.shape, lambda i: (0, 0)),
        pl.BlockSpec(memory_space=pl.ANY),      # layer-3 packed weight stays in HBM
        pl.BlockSpec(b3.shape, lambda i: (0, 0)),
        pl.BlockSpec(fc_w.shape, lambda i: (0, 0)),
        pl.BlockSpec(fc_b.shape, lambda i: (0, 0)),
    ]

    out = pl.pallas_call(
        _fused_lstm_kernel,
        out_shape=jax.ShapeDtypeStruct((Bp, num_classes), jnp.float32),
        grid_spec=pltpu.PrefetchScalarGridSpec(
            num_scalar_prefetch=0,
            grid=(1,),                        # single launch: whole model fused
            in_specs=in_specs,
            out_specs=pl.BlockSpec((Bp, num_classes), lambda i: (0, 0)),
            scratch_shapes=[
                pltpu.VMEM((T, Bp, H4), jnp.float32),        # hoisted layer-1 x-proj
                pltpu.VMEM((2 * HPAD, H4), jnp.bfloat16),    # layer-2 packed weight
                pltpu.VMEM((2 * HPAD, H4), jnp.bfloat16),    # layer-3 packed weight
                pltpu.SemaphoreType.DMA((2,)),               # weight-copy semaphores
            ],
        ),
        compiler_params=pltpu.CompilerParams(
            dimension_semantics=("arbitrary",),
        ),
    )(x_tm, w_ih1, w_hh1, b1, w_cat2, b2, w_cat3, b3, fc_w, fc_b)
    return out[:B]


# ------------------------- pure-JAX reference (check) --------------------------
def _lstm_layer_ref(x_tm, w_ih, w_hh, b):
    _, B, _ = x_tm.shape
    H = w_hh.shape[0]

    def step(carry, x_t):
        h, c = carry
        gates = x_t @ w_ih + h @ w_hh + b
        i = jax.nn.sigmoid(gates[:, 0 * H:1 * H])
        f = jax.nn.sigmoid(gates[:, 1 * H:2 * H])
        g = jnp.tanh(gates[:, 2 * H:3 * H])
        o = jax.nn.sigmoid(gates[:, 3 * H:4 * H])
        c = f * c + i * g
        h = o * jnp.tanh(c)
        return (h, c), h

    init = (jnp.zeros((B, H), jnp.float32), jnp.zeros((B, H), jnp.float32))
    _, hs = jax.lax.scan(step, init, x_tm)
    return hs


def model_ref(x, params):
    h = jnp.transpose(x, (1, 0, 2)).astype(jnp.float32)
    for w_ih, w_hh, b in params["lstm"]:
        h = _lstm_layer_ref(h, w_ih, w_hh, b)
    return h[-1] @ params["fc_w"] + params["fc_b"]


# ----------------------------------- main ---------------------------------------
if __name__ == "__main__":
    B, T, INPUT_SIZE = 2, 8, 16
    key = jax.random.PRNGKey(0)
    kx, kp = jax.random.split(key)
    x = jax.random.normal(kx, (B, T, INPUT_SIZE), jnp.float32)
    params = init_model_params(kp, INPUT_SIZE, hidden_size=128, num_classes=1)

    kparams = prepare_kernel_params(params)            # eager, done once
    out = jax.block_until_ready(lstm_model_forward(x, kparams))
    ref = jax.block_until_ready(model_ref(x, params))  # f32 reference

    assert out.shape == (B, 1), out.shape
    assert bool(jnp.all(jnp.isfinite(out)))
    # bf16 weights in the kernel vs f32 reference -> small expected drift.
    assert bool(jnp.allclose(out, ref, atol=2e-2, rtol=2e-2)), (out, ref)

    print("KERNEL_OK")
</pallas_src>

<mosaic_0001>
module attributes {stable_mosaic.version = 11 : i64} {
  func.func @_fused_lstm_kernel(%arg0: i32, %arg1: memref<8x8x16xf32, #tpu.memory_space<vmem>>, %arg2: memref<16x512xbf16, #tpu.memory_space<vmem>>, %arg3: memref<128x512xbf16, #tpu.memory_space<vmem>>, %arg4: memref<1x512xf32, #tpu.memory_space<vmem>>, %arg5: memref<256x512xbf16, #tpu.memory_space<any>>, %arg6: memref<1x512xf32, #tpu.memory_space<vmem>>, %arg7: memref<256x512xbf16, #tpu.memory_space<any>>, %arg8: memref<1x512xf32, #tpu.memory_space<vmem>>, %arg9: memref<128x1xf32, #tpu.memory_space<vmem>>, %arg10: memref<1x1xf32, #tpu.memory_space<vmem>>, %arg11: memref<8x1xf32, #tpu.memory_space<vmem>>, %arg12: memref<8x8x512xf32, #tpu.memory_space<vmem>>, %arg13: memref<256x512xbf16, #tpu.memory_space<vmem>>, %arg14: memref<256x512xbf16, #tpu.memory_space<vmem>>, %arg15: memref<2x!tpu.dma_semaphore, #tpu.memory_space<semaphore_mem>>) attributes {dimension_semantics = [#tpu.dimension_semantics<arbitrary>], iteration_bounds = array<i64: 1>, scalar_prefetch = 0 : i64, scratch_operands = 4 : i64, tpu.core_type = #tpu.core_type<tc>, window_params = [{pipeline_mode = #tpu.pipeline_mode<synchronous>, transform_indices = @transform_0, window_bounds = array<i64: 8, 8, 16>}, {pipeline_mode = #tpu.pipeline_mode<synchronous>, transform_indices = @transform_1, window_bounds = array<i64: 16, 512>}, {pipeline_mode = #tpu.pipeline_mode<synchronous>, transform_indices = @transform_2, window_bounds = array<i64: 128, 512>}, {pipeline_mode = #tpu.pipeline_mode<synchronous>, transform_indices = @transform_3, window_bounds = array<i64: 1, 512>}, {}, {pipeline_mode = #tpu.pipeline_mode<synchronous>, transform_indices = @transform_5, window_bounds = array<i64: 1, 512>}, {}, {pipeline_mode = #tpu.pipeline_mode<synchronous>, transform_indices = @transform_7, window_bounds = array<i64: 1, 512>}, {pipeline_mode = #tpu.pipeline_mode<synchronous>, transform_indices = @transform_8, window_bounds = array<i64: 128, 1>}, {pipeline_mode = #tpu.pipeline_mode<synchronous>, transform_indices = @transform_9, window_bounds = array<i64: 1, 1>}, {pipeline_mode = #tpu.pipeline_mode<synchronous>, transform_indices = @transform_10, window_bounds = array<i64: 8, 1>}]} {
    %c0_i32 = arith.constant 0 : i32
    %0 = tpu.memref_slice %arg15[%c0_i32] : memref<2x!tpu.dma_semaphore, #tpu.memory_space<semaphore_mem>> -> memref<1x!tpu.dma_semaphore, #tpu.memory_space<semaphore_mem>>
    %1 = tpu.memref_squeeze %0 : memref<1x!tpu.dma_semaphore, #tpu.memory_space<semaphore_mem>> -> memref<!tpu.dma_semaphore, #tpu.memory_space<semaphore_mem>>
    tpu.enqueue_dma source(%arg5 : memref<256x512xbf16, #tpu.memory_space<any>>) target(%arg13 : memref<256x512xbf16, #tpu.memory_space<vmem>>) target_semaphore(%1 : memref<!tpu.dma_semaphore, #tpu.memory_space<semaphore_mem>>)
    %c1_i32 = arith.constant 1 : i32
    %2 = tpu.memref_slice %arg15[%c1_i32] : memref<2x!tpu.dma_semaphore, #tpu.memory_space<semaphore_mem>> -> memref<1x!tpu.dma_semaphore, #tpu.memory_space<semaphore_mem>>
    %3 = tpu.memref_squeeze %2 : memref<1x!tpu.dma_semaphore, #tpu.memory_space<semaphore_mem>> -> memref<!tpu.dma_semaphore, #tpu.memory_space<semaphore_mem>>
    tpu.enqueue_dma source(%arg7 : memref<256x512xbf16, #tpu.memory_space<any>>) target(%arg14 : memref<256x512xbf16, #tpu.memory_space<vmem>>) target_semaphore(%3 : memref<!tpu.dma_semaphore, #tpu.memory_space<semaphore_mem>>)
    %c0 = arith.constant 0 : index
    %c0_0 = arith.constant 0 : index
    %c0_1 = arith.constant 0 : index
    %4 = vector.load %arg1[%c0, %c0_0, %c0_1] : memref<8x8x16xf32, #tpu.memory_space<vmem>>, vector<8x8x16xf32>
    %5 = vector.shape_cast %4 : vector<8x8x16xf32> to vector<64x16xf32>
    %6 = arith.truncf %5 : vector<64x16xf32> to vector<64x16xbf16>
    %c0_2 = arith.constant 0 : index
    %c0_3 = arith.constant 0 : index
    %7 = vector.load %arg2[%c0_2, %c0_3] : memref<16x512xbf16, #tpu.memory_space<vmem>>, vector<16x512xbf16>
    %cst = arith.constant dense<0.000000e+00> : vector<64x512xf32>
    %8 = tpu.matmul %6, %7, %cst {dimension_numbers = #tpu.dot_dimension_numbers<[1], [0], [0], [1], [0, 0, 1, 1], [], []>} : vector<64x16xbf16>, vector<16x512xbf16>, vector<64x512xf32> -> vector<64x512xf32>
    %c0_4 = arith.constant 0 : index
    %c0_5 = arith.constant 0 : index
    %9 = vector.load %arg4[%c0_4, %c0_5] : memref<1x512xf32, #tpu.memory_space<vmem>>, vector<1x512xf32>
    %10 = vector.broadcast %9 : vector<1x512xf32> to vector<64x512xf32>
    %11 = arith.addf %8, %10 : vector<64x512xf32>
    %12 = vector.shape_cast %11 : vector<64x512xf32> to vector<8x8x512xf32>
    %c0_6 = arith.constant 0 : index
    %c0_7 = arith.constant 0 : index
    %c0_8 = arith.constant 0 : index
    %13 = vector.load %arg12[%c0_6, %c0_7, %c0_8] : memref<8x8x512xf32, #tpu.memory_space<vmem>>, vector<8x8x512xf32>
    tpu.vector_store %arg12[%c0_6, %c0_7, %c0_8], %12 {strides = array<i32>} : memref<8x8x512xf32, #tpu.memory_space<vmem>>, vector<8x8x512xf32>,
    %cst_9 = arith.constant 0.000000e+00 : f32
    %14 = vector.broadcast %cst_9 : f32 to vector<8x128xf32>
    %c0_10 = arith.constant 0 : index
    %c0_11 = arith.constant 0 : index
    %c0_12 = arith.constant 0 : index
    %15 = vector.load %arg12[%c0_10, %c0_11, %c0_12] : memref<8x8x512xf32, #tpu.memory_space<vmem>>, vector<1x8x512xf32>
    %16 = vector.shape_cast %15 : vector<1x8x512xf32> to vector<8x512xf32>
    %17 = arith.truncf %14 : vector<8x128xf32> to vector<8x128xbf16>
    %c0_13 = arith.constant 0 : index
    %c0_14 = arith.constant 0 : index
    %18 = vector.load %arg3[%c0_13, %c0_14] : memref<128x512xbf16, #tpu.memory_space<vmem>>, vector<128x512xbf16>
    %cst_15 = arith.constant dense<0.000000e+00> : vector<8x512xf32>
    %19 = tpu.matmul %17, %18, %cst_15 {dimension_numbers = #tpu.dot_dimension_numbers<[1], [0], [0], [1], [0, 0, 1, 1], [], []>} : vector<8x128xbf16>, vector<128x512xbf16>, vector<8x512xf32> -> vector<8x512xf32>
    %20 = arith.addf %16, %19 : vector<8x512xf32>
    %21 = vector.extract_strided_slice %20 {offsets = [0, 0], sizes = [8, 128], strides = [1, 1]} : vector<8x512xf32> to vector<8x128xf32>
    %22 = arith.negf %21 : vector<8x128xf32>
    %23 = math.exp %22 : vector<8x128xf32>
    %cst_16 = arith.constant 1.000000e+00 : f32
    %24 = vector.broadcast %cst_16 : f32 to vector<8x128xf32>
    %25 = arith.addf %24, %23 : vector<8x128xf32>
    %26 = arith.divf %24, %25 : vector<8x128xf32>
    %27 = vector.extract_strided_slice %20 {offsets = [0, 128], sizes = [8, 128], strides = [1, 1]} : vector<8x512xf32> to vector<8x128xf32>
    %28 = arith.negf %27 : vector<8x128xf32>
    %29 = math.exp %28 : vector<8x128xf32>
    %cst_17 = arith.constant 1.000000e+00 : f32
    %30 = vector.broadcast %cst_17 : f32 to vector<8x128xf32>
    %31 = arith.addf %30, %29 : vector<8x128xf32>
    %32 = arith.divf %30, %31 : vector<8x128xf32>
    %33 = vector.extract_strided_slice %20 {offsets = [0, 256], sizes = [8, 128], strides = [1, 1]} : vector<8x512xf32> to vector<8x128xf32>
    %34 = math.tanh %33 : vector<8x128xf32>
    %35 = vector.extract_strided_slice %20 {offsets = [0, 384], sizes = [8, 128], strides = [1, 1]} : vector<8x512xf32> to vector<8x128xf32>
    %36 = arith.negf %35 : vector<8x128xf32>
    %37 = math.exp %36 : vector<8x128xf32>
    %cst_18 = arith.constant 1.000000e+00 : f32
    %38 = vector.broadcast %cst_18 : f32 to vector<8x128xf32>
    %39 = arith.addf %38, %37 : vector<8x128xf32>
    %40 = arith.divf %38, %39 : vector<8x128xf32>
    %41 = arith.mulf %32, %14 : vector<8x128xf32>
    %42 = arith.mulf %26, %34 : vector<8x128xf32>
    %43 = arith.addf %41, %42 : vector<8x128xf32>
    %44 = math.tanh %43 : vector<8x128xf32>
    %45 = arith.mulf %40, %44 : vector<8x128xf32>
    %c0_i32_19 = arith.constant 0 : i32
    %46 = tpu.memref_slice %arg15[%c0_i32_19] : memref<2x!tpu.dma_semaphore, #tpu.memory_space<semaphore_mem>> -> memref<1x!tpu.dma_semaphore, #tpu.memory_space<semaphore_mem>>
    %47 = tpu.memref_squeeze %46 : memref<1x!tpu.dma_semaphore, #tpu.memory_space<semaphore_mem>> -> memref<!tpu.dma_semaphore, #tpu.memory_space<semaphore_mem>>
    tpu.wait_dma2 semaphore(%47 : memref<!tpu.dma_semaphore, #tpu.memory_space<semaphore_mem>>) src(%arg5 : memref<256x512xbf16, #tpu.memory_space<any>>) dst(%arg13 : memref<256x512xbf16, #tpu.memory_space<vmem>>)
    %c1 = arith.constant 1 : index
    %c0_20 = arith.constant 0 : index
    %c0_21 = arith.constant 0 : index
    %48 = vector.load %arg12[%c1, %c0_20, %c0_21] : memref<8x8x512xf32, #tpu.memory_space<vmem>>, vector<1x8x512xf32>
    %49 = vector.shape_cast %48 : vector<1x8x512xf32> to vector<8x512xf32>
    %50 = arith.truncf %45 : vector<8x128xf32> to vector<8x128xbf16>
    %c0_22 = arith.constant 0 : index
    %c0_23 = arith.constant 0 : index
    %51 = vector.load %arg3[%c0_22, %c0_23] : memref<128x512xbf16, #tpu.memory_space<vmem>>, vector<128x512xbf16>
    %cst_24 = arith.constant dense<0.000000e+00> : vector<8x512xf32>
    %52 = tpu.matmul %50, %51, %cst_24 {dimension_numbers = #tpu.dot_dimension_numbers<[1], [0], [0], [1], [0, 0, 1, 1], [], []>} : vector<8x128xbf16>, vector<128x512xbf16>, vector<8x512xf32> -> vector<8x512xf32>
    %53 = arith.addf %49, %52 : vector<8x512xf32>
    %54 = vector.extract_strided_slice %53 {offsets = [0, 0], sizes = [8, 128], strides = [1, 1]} : vector<8x512xf32> to vector<8x128xf32>
    %55 = arith.negf %54 : vector<8x128xf32>
    %56 = math.exp %55 : vector<8x128xf32>
    %cst_25 = arith.constant 1.000000e+00 : f32
    %57 = vector.broadcast %cst_25 : f32 to vector<8x128xf32>
    %58 = arith.addf %57, %56 : vector<8x128xf32>
    %59 = arith.divf %57, %58 : vector<8x128xf32>
    %60 = vector.extract_strided_slice %53 {offsets = [0, 128], sizes = [8, 128], strides = [1, 1]} : vector<8x512xf32> to vector<8x128xf32>
    %61 = arith.negf %60 : vector<8x128xf32>
    %62 = math.exp %61 : vector<8x128xf32>
    %cst_26 = arith.constant 1.000000e+00 : f32
    %63 = vector.broadcast %cst_26 : f32 to vector<8x128xf32>
    %64 = arith.addf %63, %62 : vector<8x128xf32>
    %65 = arith.divf %63, %64 : vector<8x128xf32>
    %66 = vector.extract_strided_slice %53 {offsets = [0, 256], sizes = [8, 128], strides = [1, 1]} : vector<8x512xf32> to vector<8x128xf32>
    %67 = math.tanh %66 : vector<8x128xf32>
    %68 = vector.extract_strided_slice %53 {offsets = [0, 384], sizes = [8, 128], strides = [1, 1]} : vector<8x512xf32> to vector<8x128xf32>
    %69 = arith.negf %68 : vector<8x128xf32>
    %70 = math.exp %69 : vector<8x128xf32>
    %cst_27 = arith.constant 1.000000e+00 : f32
    %71 = vector.broadcast %cst_27 : f32 to vector<8x128xf32>
    %72 = arith.addf %71, %70 : vector<8x128xf32>
    %73 = arith.divf %71, %72 : vector<8x128xf32>
    %74 = arith.mulf %65, %43 : vector<8x128xf32>
    %75 = arith.mulf %59, %67 : vector<8x128xf32>
    %76 = arith.addf %74, %75 : vector<8x128xf32>
    %77 = math.tanh %76 : vector<8x128xf32>
    %78 = arith.mulf %73, %77 : vector<8x128xf32>
    %79 = tpu.concatenate %45, %14 in 1 : vector<8x128xf32>, vector<8x128xf32> -> vector<8x256xf32>
    %80 = arith.truncf %79 : vector<8x256xf32> to vector<8x256xbf16>
    %c0_28 = arith.constant 0 : index
    %c0_29 = arith.constant 0 : index
    %81 = vector.load %arg6[%c0_28, %c0_29] : memref<1x512xf32, #tpu.memory_space<vmem>>, vector<1x512xf32>
    %c0_30 = arith.constant 0 : index
    %c0_31 = arith.constant 0 : index
    %82 = vector.load %arg13[%c0_30, %c0_31] : memref<256x512xbf16, #tpu.memory_space<vmem>>, vector<256x512xbf16>
    %cst_32 = arith.constant dense<0.000000e+00> : vector<8x512xf32>
    %83 = tpu.matmul %80, %82, %cst_32 {dimension_numbers = #tpu.dot_dimension_numbers<[1], [0], [0], [1], [0, 0, 1, 1], [], []>} : vector<8x256xbf16>, vector<256x512xbf16>, vector<8x512xf32> -> vector<8x512xf32>
    %84 = vector.broadcast %81 : vector<1x512xf32> to vector<8x512xf32>
    %85 = arith.addf %84, %83 : vector<8x512xf32>
    %86 = vector.extract_strided_slice %85 {offsets = [0, 0], sizes = [8, 128], strides = [1, 1]} : vector<8x512xf32> to vector<8x128xf32>
    %87 = arith.negf %86 : vector<8x128xf32>
    %88 = math.exp %87 : vector<8x128xf32>
    %cst_33 = arith.constant 1.000000e+00 : f32
    %89 = vector.broadcast %cst_33 : f32 to vector<8x128xf32>
    %90 = arith.addf %89, %88 : vector<8x128xf32>
    %91 = arith.divf %89, %90 : vector<8x128xf32>
    %92 = vector.extract_strided_slice %85 {offsets = [0, 128], sizes = [8, 128], strides = [1, 1]} : vector<8x512xf32> to vector<8x128xf32>
    %93 = arith.negf %92 : vector<8x128xf32>
    %94 = math.exp %93 : vector<8x128xf32>
    %cst_34 = arith.constant 1.000000e+00 : f32
    %95 = vector.broadcast %cst_34 : f32 to vector<8x128xf32>
    %96 = arith.addf %95, %94 : vector<8x128xf32>
    %97 = arith.divf %95, %96 : vector<8x128xf32>
    %98 = vector.extract_strided_slice %85 {offsets = [0, 256], sizes = [8, 128], strides = [1, 1]} : vector<8x512xf32> to vector<8x128xf32>
    %99 = math.tanh %98 : vector<8x128xf32>
    %100 = vector.extract_strided_slice %85 {offsets = [0, 384], sizes = [8, 128], strides = [1, 1]} : vector<8x512xf32> to vector<8x128xf32>
    %101 = arith.negf %100 : vector<8x128xf32>
    %102 = math.exp %101 : vector<8x128xf32>
    %cst_35 = arith.constant 1.000000e+00 : f32
    %103 = vector.broadcast %cst_35 : f32 to vector<8x128xf32>
    %104 = arith.addf %103, %102 : vector<8x128xf32>
    %105 = arith.divf %103, %104 : vector<8x128xf32>
    %106 = arith.mulf %97, %14 : vector<8x128xf32>
    %107 = arith.mulf %91, %99 : vector<8x128xf32>
    %108 = arith.addf %106, %107 : vector<8x128xf32>
    %109 = math.tanh %108 : vector<8x128xf32>
    %110 = arith.mulf %105, %109 : vector<8x128xf32>
    %c1_i32_36 = arith.constant 1 : i32
    %111 = tpu.memref_slice %arg15[%c1_i32_36] : memref<2x!tpu.dma_semaphore, #tpu.memory_space<semaphore_mem>> -> memref<1x!tpu.dma_semaphore, #tpu.memory_space<semaphore_mem>>
    %112 = tpu.memref_squeeze %111 : memref<1x!tpu.dma_semaphore, #tpu.memory_space<semaphore_mem>> -> memref<!tpu.dma_semaphore, #tpu.memory_space<semaphore_mem>>
    tpu.wait_dma2 semaphore(%112 : memref<!tpu.dma_semaphore, #tpu.memory_space<semaphore_mem>>) src(%arg7 : memref<256x512xbf16, #tpu.memory_space<any>>) dst(%arg14 : memref<256x512xbf16, #tpu.memory_space<vmem>>)
    %c2 = arith.constant 2 : index
    %c0_37 = arith.constant 0 : index
    %c0_38 = arith.constant 0 : index
    %113 = vector.load %arg12[%c2, %c0_37, %c0_38] : memref<8x8x512xf32, #tpu.memory_space<vmem>>, vector<1x8x512xf32>
    %114 = vector.shape_cast %113 : vector<1x8x512xf32> to vector<8x512xf32>
    %115 = arith.truncf %78 : vector<8x128xf32> to vector<8x128xbf16>
    %c0_39 = arith.constant 0 : index
    %c0_40 = arith.constant 0 : index
    %116 = vector.load %arg3[%c0_39, %c0_40] : memref<128x512xbf16, #tpu.memory_space<vmem>>, vector<128x512xbf16>
    %cst_41 = arith.constant dense<0.000000e+00> : vector<8x512xf32>
    %117 = tpu.matmul %115, %116, %cst_41 {dimension_numbers = #tpu.dot_dimension_numbers<[1], [0], [0], [1], [0, 0, 1, 1], [], []>} : vector<8x128xbf16>, vector<128x512xbf16>, vector<8x512xf32> -> vector<8x512xf32>
    %118 = arith.addf %114, %117 : vector<8x512xf32>
    %119 = vector.extract_strided_slice %118 {offsets = [0, 0], sizes = [8, 128], strides = [1, 1]} : vector<8x512xf32> to vector<8x128xf32>
    %120 = arith.negf %119 : vector<8x128xf32>
    %121 = math.exp %120 : vector<8x128xf32>
    %cst_42 = arith.constant 1.000000e+00 : f32
    %122 = vector.broadcast %cst_42 : f32 to vector<8x128xf32>
    %123 = arith.addf %122, %121 : vector<8x128xf32>
    %124 = arith.divf %122, %123 : vector<8x128xf32>
    %125 = vector.extract_strided_slice %118 {offsets = [0, 128], sizes = [8, 128], strides = [1, 1]} : vector<8x512xf32> to vector<8x128xf32>
    %126 = arith.negf %125 : vector<8x128xf32>
    %127 = math.exp %126 : vector<8x128xf32>
    %cst_43 = arith.constant 1.000000e+00 : f32
    %128 = vector.broadcast %cst_43 : f32 to vector<8x128xf32>
    %129 = arith.addf %128, %127 : vector<8x128xf32>
    %130 = arith.divf %128, %129 : vector<8x128xf32>
    %131 = vector.extract_strided_slice %118 {offsets = [0, 256], sizes = [8, 128], strides = [1, 1]} : vector<8x512xf32> to vector<8x128xf32>
    %132 = math.tanh %131 : vector<8x128xf32>
    %133 = vector.extract_strided_slice %118 {offsets = [0, 384], sizes = [8, 128], strides = [1, 1]} : vector<8x512xf32> to vector<8x128xf32>
    %134 = arith.negf %133 : vector<8x128xf32>
    %135 = math.exp %134 : vector<8x128xf32>
    %cst_44 = arith.constant 1.000000e+00 : f32
    %136 = vector.broadcast %cst_44 : f32 to vector<8x128xf32>
    %137 = arith.addf %136, %135 : vector<8x128xf32>
    %138 = arith.divf %136, %137 : vector<8x128xf32>
    %139 = arith.mulf %130, %76 : vector<8x128xf32>
    %140 = arith.mulf %124, %132 : vector<8x128xf32>
    %141 = arith.addf %139, %140 : vector<8x128xf32>
    %142 = math.tanh %141 : vector<8x128xf32>
    %143 = arith.mulf %138, %142 : vector<8x128xf32>
    %144 = tpu.concatenate %78, %110 in 1 : vector<8x128xf32>, vector<8x128xf32> -> vector<8x256xf32>
    %145 = arith.truncf %144 : vector<8x256xf32> to vector<8x256xbf16>
    %c0_45 = arith.constant 0 : index
    %c0_46 = arith.constant 0 : index
    %146 = vector.load %arg6[%c0_45, %c0_46] : memref<1x512xf32, #tpu.memory_space<vmem>>, vector<1x512xf32>
    %c0_47 = arith.constant 0 : index
    %c0_48 = arith.constant 0 : index
    %147 = vector.load %arg13[%c0_47, %c0_48] : memref<256x512xbf16, #tpu.memory_space<vmem>>, vector<256x512xbf16>
    %cst_49 = arith.constant dense<0.000000e+00> : vector<8x512xf32>
    %148 = tpu.matmul %145, %147, %cst_49 {dimension_numbers = #tpu.dot_dimension_numbers<[1], [0], [0], [1], [0, 0, 1, 1], [], []>} : vector<8x256xbf16>, vector<256x512xbf16>, vector<8x512xf32> -> vector<8x512xf32>
    %149 = vector.broadcast %146 : vector<1x512xf32> to vector<8x512xf32>
    %150 = arith.addf %149, %148 : vector<8x512xf32>
    %151 = vector.extract_strided_slice %150 {offsets = [0, 0], sizes = [8, 128], strides = [1, 1]} : vector<8x512xf32> to vector<8x128xf32>
    %152 = arith.negf %151 : vector<8x128xf32>
    %153 = math.exp %152 : vector<8x128xf32>
    %cst_50 = arith.constant 1.000000e+00 : f32
    %154 = vector.broadcast %cst_50 : f32 to vector<8x128xf32>
    %155 = arith.addf %154, %153 : vector<8x128xf32>
    %156 = arith.divf %154, %155 : vector<8x128xf32>
    %157 = vector.extract_strided_slice %150 {offsets = [0, 128], sizes = [8, 128], strides = [1, 1]} : vector<8x512xf32> to vector<8x128xf32>
    %158 = arith.negf %157 : vector<8x128xf32>
    %159 = math.exp %158 : vector<8x128xf32>
    %cst_51 = arith.constant 1.000000e+00 : f32
    %160 = vector.broadcast %cst_51 : f32 to vector<8x128xf32>
    %161 = arith.addf %160, %159 : vector<8x128xf32>
    %162 = arith.divf %160, %161 : vector<8x128xf32>
    %163 = vector.extract_strided_slice %150 {offsets = [0, 256], sizes = [8, 128], strides = [1, 1]} : vector<8x512xf32> to vector<8x128xf32>
    %164 = math.tanh %163 : vector<8x128xf32>
    %165 = vector.extract_strided_slice %150 {offsets = [0, 384], sizes = [8, 128], strides = [1, 1]} : vector<8x512xf32> to vector<8x128xf32>
    %166 = arith.negf %165 : vector<8x128xf32>
    %167 = math.exp %166 : vector<8x128xf32>
    %cst_52 = arith.constant 1.000000e+00 : f32
    %168 = vector.broadcast %cst_52 : f32 to vector<8x128xf32>
    %169 = arith.addf %168, %167 : vector<8x128xf32>
    %170 = arith.divf %168, %169 : vector<8x128xf32>
    %171 = arith.mulf %162, %108 : vector<8x128xf32>
    %172 = arith.mulf %156, %164 : vector<8x128xf32>
    %173 = arith.addf %171, %172 : vector<8x128xf32>
    %174 = math.tanh %173 : vector<8x128xf32>
    %175 = arith.mulf %170, %174 : vector<8x128xf32>
    %176 = tpu.concatenate %110, %14 in 1 : vector<8x128xf32>, vector<8x128xf32> -> vector<8x256xf32>
    %177 = arith.truncf %176 : vector<8x256xf32> to vector<8x256xbf16>
    %c0_53 = arith.constant 0 : index
    %c0_54 = arith.constant 0 : index
    %178 = vector.load %arg8[%c0_53, %c0_54] : memref<1x512xf32, #tpu.memory_space<vmem>>, vector<1x512xf32>
    %c0_55 = arith.constant 0 : index
    %c0_56 = arith.constant 0 : index
    %179 = vector.load %arg14[%c0_55, %c0_56] : memref<256x512xbf16, #tpu.memory_space<vmem>>, vector<256x512xbf16>
    %cst_57 = arith.constant dense<0.000000e+00> : vector<8x512xf32>
    %180 = tpu.matmul %177, %179, %cst_57 {dimension_numbers = #tpu.dot_dimension_numbers<[1], [0], [0], [1], [0, 0, 1, 1], [], []>} : vector<8x256xbf16>, vector<256x512xbf16>, vector<8x512xf32> -> vector<8x512xf32>
    %181 = vector.broadcast %178 : vector<1x512xf32> to vector<8x512xf32>
    %182 = arith.addf %181, %180 : vector<8x512xf32>
    %183 = vector.extract_strided_slice %182 {offsets = [0, 0], sizes = [8, 128], strides = [1, 1]} : vector<8x512xf32> to vector<8x128xf32>
    %184 = arith.negf %183 : vector<8x128xf32>
    %185 = math.exp %184 : vector<8x128xf32>
    %cst_58 = arith.constant 1.000000e+00 : f32
    %186 = vector.broadcast %cst_58 : f32 to vector<8x128xf32>
    %187 = arith.addf %186, %185 : vector<8x128xf32>
    %188 = arith.divf %186, %187 : vector<8x128xf32>
    %189 = vector.extract_strided_slice %182 {offsets = [0, 128], sizes = [8, 128], strides = [1, 1]} : vector<8x512xf32> to vector<8x128xf32>
    %190 = arith.negf %189 : vector<8x128xf32>
    %191 = math.exp %190 : vector<8x128xf32>
    %cst_59 = arith.constant 1.000000e+00 : f32
    %192 = vector.broadcast %cst_59 : f32 to vector<8x128xf32>
    %193 = arith.addf %192, %191 : vector<8x128xf32>
    %194 = arith.divf %192, %193 : vector<8x128xf32>
    %195 = vector.extract_strided_slice %182 {offsets = [0, 256], sizes = [8, 128], strides = [1, 1]} : vector<8x512xf32> to vector<8x128xf32>
    %196 = math.tanh %195 : vector<8x128xf32>
    %197 = vector.extract_strided_slice %182 {offsets = [0, 384], sizes = [8, 128], strides = [1, 1]} : vector<8x512xf32> to vector<8x128xf32>
    %198 = arith.negf %197 : vector<8x128xf32>
    %199 = math.exp %198 : vector<8x128xf32>
    %cst_60 = arith.constant 1.000000e+00 : f32
    %200 = vector.broadcast %cst_60 : f32 to vector<8x128xf32>
    %201 = arith.addf %200, %199 : vector<8x128xf32>
    %202 = arith.divf %200, %201 : vector<8x128xf32>
    %203 = arith.mulf %194, %14 : vector<8x128xf32>
    %204 = arith.mulf %188, %196 : vector<8x128xf32>
    %205 = arith.addf %203, %204 : vector<8x128xf32>
    %206 = math.tanh %205 : vector<8x128xf32>
    %207 = arith.mulf %202, %206 : vector<8x128xf32>
    %c3 = arith.constant 3 : index
    %c0_61 = arith.constant 0 : index
    %c0_62 = arith.constant 0 : index
    %208 = vector.load %arg12[%c3, %c0_61, %c0_62] : memref<8x8x512xf32, #tpu.memory_space<vmem>>, vector<1x8x512xf32>
    %209 = vector.shape_cast %208 : vector<1x8x512xf32> to vector<8x512xf32>
    %210 = arith.truncf %143 : vector<8x128xf32> to vector<8x128xbf16>
    %c0_63 = arith.constant 0 : index
    %c0_64 = arith.constant 0 : index
    %211 = vector.load %arg3[%c0_63, %c0_64] : memref<128x512xbf16, #tpu.memory_space<vmem>>, vector<128x512xbf16>
    %cst_65 = arith.constant dense<0.000000e+00> : vector<8x512xf32>
    %212 = tpu.matmul %210, %211, %cst_65 {dimension_numbers = #tpu.dot_dimension_numbers<[1], [0], [0], [1], [0, 0, 1, 1], [], []>} : vector<8x128xbf16>, vector<128x512xbf16>, vector<8x512xf32> -> vector<8x512xf32>
    %213 = arith.addf %209, %212 : vector<8x512xf32>
    %214 = vector.extract_strided_slice %213 {offsets = [0, 0], sizes = [8, 128], strides = [1, 1]} : vector<8x512xf32> to vector<8x128xf32>
    %215 = arith.negf %214 : vector<8x128xf32>
    %216 = math.exp %215 : vector<8x128xf32>
    %cst_66 = arith.constant 1.000000e+00 : f32
    %217 = vector.broadcast %cst_66 : f32 to vector<8x128xf32>
    %218 = arith.addf %217, %216 : vector<8x128xf32>
    %219 = arith.divf %217, %218 : vector<8x128xf32>
    %220 = vector.extract_strided_slice %213 {offsets = [0, 128], sizes = [8, 128], strides = [1, 1]} : vector<8x512xf32> to vector<8x128xf32>
    %221 = arith.negf %220 : vector<8x128xf32>
    %222 = math.exp %221 : vector<8x128xf32>
    %cst_67 = arith.constant 1.000000e+00 : f32
    %223 = vector.broadcast %cst_67 : f32 to vector<8x128xf32>
    %224 = arith.addf %223, %222 : vector<8x128xf32>
    %225 = arith.divf %223, %224 : vector<8x128xf32>
    %226 = vector.extract_strided_slice %213 {offsets = [0, 256], sizes = [8, 128], strides = [1, 1]} : vector<8x512xf32> to vector<8x128xf32>
    %227 = math.tanh %226 : vector<8x128xf32>
    %228 = vector.extract_strided_slice %213 {offsets = [0, 384], sizes = [8, 128], strides = [1, 1]} : vector<8x512xf32> to vector<8x128xf32>
    %229 = arith.negf %228 : vector<8x128xf32>
    %230 = math.exp %229 : vector<8x128xf32>
    %cst_68 = arith.constant 1.000000e+00 : f32
    %231 = vector.broadcast %cst_68 : f32 to vector<8x128xf32>
    %232 = arith.addf %231, %230 : vector<8x128xf32>
    %233 = arith.divf %231, %232 : vector<8x128xf32>
    %234 = arith.mulf %225, %141 : vector<8x128xf32>
    %235 = arith.mulf %219, %227 : vector<8x128xf32>
    %236 = arith.addf %234, %235 : vector<8x128xf32>
    %237 = math.tanh %236 : vector<8x128xf32>
    %238 = arith.mulf %233, %237 : vector<8x128xf32>
    %239 = tpu.concatenate %143, %175 in 1 : vector<8x128xf32>, vector<8x128xf32> -> vector<8x256xf32>
    %240 = arith.truncf %239 : vector<8x256xf32> to vector<8x256xbf16>
    %c0_69 = arith.constant 0 : index
    %c0_70 = arith.constant 0 : index
    %241 = vector.load %arg6[%c0_69, %c0_70] : memref<1x512xf32, #tpu.memory_space<vmem>>, vector<1x512xf32>
    %c0_71 = arith.constant 0 : index
    %c0_72 = arith.constant 0 : index
    %242 = vector.load %arg13[%c0_71, %c0_72] : memref<256x512xbf16, #tpu.memory_space<vmem>>, vector<256x512xbf16>
    %cst_73 = arith.constant dense<0.000000e+00> : vector<8x512xf32>
    %243 = tpu.matmul %240, %242, %cst_73 {dimension_numbers = #tpu.dot_dimension_numbers<[1], [0], [0], [1], [0, 0, 1, 1], [], []>} : vector<8x256xbf16>, vector<256x512xbf16>, vector<8x512xf32> -> vector<8x512xf32>
    %244 = vector.broadcast %241 : vector<1x512xf32> to vector<8x512xf32>
    %245 = arith.addf %244, %243 : vector<8x512xf32>
    %246 = vector.extract_strided_slice %245 {offsets = [0, 0], sizes = [8, 128], strides = [1, 1]} : vector<8x512xf32> to vector<8x128xf32>
    %247 = arith.negf %246 : vector<8x128xf32>
    %248 = math.exp %247 : vector<8x128xf32>
    %cst_74 = arith.constant 1.000000e+00 : f32
    %249 = vector.broadcast %cst_74 : f32 to vector<8x128xf32>
    %250 = arith.addf %249, %248 : vector<8x128xf32>
    %251 = arith.divf %249, %250 : vector<8x128xf32>
    %252 = vector.extract_strided_slice %245 {offsets = [0, 128], sizes = [8, 128], strides = [1, 1]} : vector<8x512xf32> to vector<8x128xf32>
    %253 = arith.negf %252 : vector<8x128xf32>
    %254 = math.exp %253 : vector<8x128xf32>
    %cst_75 = arith.constant 1.000000e+00 : f32
    %255 = vector.broadcast %cst_75 : f32 to vector<8x128xf32>
    %256 = arith.addf %255, %254 : vector<8x128xf32>
    %257 = arith.divf %255, %256 : vector<8x128xf32>
    %258 = vector.extract_strided_slice %245 {offsets = [0, 256], sizes = [8, 128], strides = [1, 1]} : vector<8x512xf32> to vector<8x128xf32>
    %259 = math.tanh %258 : vector<8x128xf32>
    %260 = vector.extract_strided_slice %245 {offsets = [0, 384], sizes = [8, 128], strides = [1, 1]} : vector<8x512xf32> to vector<8x128xf32>
    %261 = arith.negf %260 : vector<8x128xf32>
    %262 = math.exp %261 : vector<8x128xf32>
    %cst_76 = arith.constant 1.000000e+00 : f32
    %263 = vector.broadcast %cst_76 : f32 to vector<8x128xf32>
    %264 = arith.addf %263, %262 : vector<8x128xf32>
    %265 = arith.divf %263, %264 : vector<8x128xf32>
    %266 = arith.mulf %257, %173 : vector<8x128xf32>
    %267 = arith.mulf %251, %259 : vector<8x128xf32>
    %268 = arith.addf %266, %267 : vector<8x128xf32>
    %269 = math.tanh %268 : vector<8x128xf32>
    %270 = arith.mulf %265, %269 : vector<8x128xf32>
    %271 = tpu.concatenate %175, %207 in 1 : vector<8x128xf32>, vector<8x128xf32> -> vector<8x256xf32>
    %272 = arith.truncf %271 : vector<8x256xf32> to vector<8x256xbf16>
    %c0_77 = arith.constant 0 : index
    %c0_78 = arith.constant 0 : index
    %273 = vector.load %arg8[%c0_77, %c0_78] : memref<1x512xf32, #tpu.memory_space<vmem>>, vector<1x512xf32>
    %c0_79 = arith.constant 0 : index
    %c0_80 = arith.constant 0 : index
    %274 = vector.load %arg14[%c0_79, %c0_80] : memref<256x512xbf16, #tpu.memory_space<vmem>>, vector<256x512xbf16>
    %cst_81 = arith.constant dense<0.000000e+00> : vector<8x512xf32>
    %275 = tpu.matmul %272, %274, %cst_81 {dimension_numbers = #tpu.dot_dimension_numbers<[1], [0], [0], [1], [0, 0, 1, 1], [], []>} : vector<8x256xbf16>, vector<256x512xbf16>, vector<8x512xf32> -> vector<8x512xf32>
    %276 = vector.broadcast %273 : vector<1x512xf32> to vector<8x512xf32>
    %277 = arith.addf %276, %275 : vector<8x512xf32>
    %278 = vector.extract_strided_slice %277 {offsets = [0, 0], sizes = [8, 128], strides = [1, 1]} : vector<8x512xf32> to vector<8x128xf32>
    %279 = arith.negf %278 : vector<8x128xf32>
    %280 = math.exp %279 : vector<8x128xf32>
    %cst_82 = arith.constant 1.000000e+00 : f32
    %281 = vector.broadcast %cst_82 : f32 to vector<8x128xf32>
    %282 = arith.addf %281, %280 : vector<8x128xf32>
    %283 = arith.divf %281, %282 : vector<8x128xf32>
    %284 = vector.extract_strided_slice %277 {offsets = [0, 128], sizes = [8, 128], strides = [1, 1]} : vector<8x512xf32> to vector<8x128xf32>
    %285 = arith.negf %284 : vector<8x128xf32>
    %286 = math.exp %285 : vector<8x128xf32>
    %cst_83 = arith.constant 1.000000e+00 : f32
    %287 = vector.broadcast %cst_83 : f32 to vector<8x128xf32>
    %288 = arith.addf %287, %286 : vector<8x128xf32>
    %289 = arith.divf %287, %288 : vector<8x128xf32>
    %290 = vector.extract_strided_slice %277 {offsets = [0, 256], sizes = [8, 128], strides = [1, 1]} : vector<8x512xf32> to vector<8x128xf32>
    %291 = math.tanh %290 : vector<8x128xf32>
    %292 = vector.extract_strided_slice %277 {offsets = [0, 384], sizes = [8, 128], strides = [1, 1]} : vector<8x512xf32> to vector<8x128xf32>
    %293 = arith.negf %292 : vector<8x128xf32>
    %294 = math.exp %293 : vector<8x128xf32>
    %cst_84 = arith.constant 1.000000e+00 : f32
    %295 = vector.broadcast %cst_84 : f32 to vector<8x128xf32>
    %296 = arith.addf %295, %294 : vector<8x128xf32>
    %297 = arith.divf %295, %296 : vector<8x128xf32>
    %298 = arith.mulf %289, %205 : vector<8x128xf32>
    %299 = arith.mulf %283, %291 : vector<8x128xf32>
    %300 = arith.addf %298, %299 : vector<8x128xf32>
    %301 = math.tanh %300 : vector<8x128xf32>
    %302 = arith.mulf %297, %301 : vector<8x128xf32>
    %c4 = arith.constant 4 : index
    %c0_85 = arith.constant 0 : index
    %c0_86 = arith.constant 0 : index
    %303 = vector.load %arg12[%c4, %c0_85, %c0_86] : memref<8x8x512xf32, #tpu.memory_space<vmem>>, vector<1x8x512xf32>
    %304 = vector.shape_cast %303 : vector<1x8x512xf32> to vector<8x512xf32>
    %305 = arith.truncf %238 : vector<8x128xf32> to vector<8x128xbf16>
    %c0_87 = arith.constant 0 : index
    %c0_88 = arith.constant 0 : index
    %306 = vector.load %arg3[%c0_87, %c0_88] : memref<128x512xbf16, #tpu.memory_space<vmem>>, vector<128x512xbf16>
    %cst_89 = arith.constant dense<0.000000e+00> : vector<8x512xf32>
    %307 = tpu.matmul %305, %306, %cst_89 {dimension_numbers = #tpu.dot_dimension_numbers<[1], [0], [0], [1], [0, 0, 1, 1], [], []>} : vector<8x128xbf16>, vector<128x512xbf16>, vector<8x512xf32> -> vector<8x512xf32>
    %308 = arith.addf %304, %307 : vector<8x512xf32>
    %309 = vector.extract_strided_slice %308 {offsets = [0, 0], sizes = [8, 128], strides = [1, 1]} : vector<8x512xf32> to vector<8x128xf32>
    %310 = arith.negf %309 : vector<8x128xf32>
    %311 = math.exp %310 : vector<8x128xf32>
    %cst_90 = arith.constant 1.000000e+00 : f32
    %312 = vector.broadcast %cst_90 : f32 to vector<8x128xf32>
    %313 = arith.addf %312, %311 : vector<8x128xf32>
    %314 = arith.divf %312, %313 : vector<8x128xf32>
    %315 = vector.extract_strided_slice %308 {offsets = [0, 128], sizes = [8, 128], strides = [1, 1]} : vector<8x512xf32> to vector<8x128xf32>
    %316 = arith.negf %315 : vector<8x128xf32>
    %317 = math.exp %316 : vector<8x128xf32>
    %cst_91 = arith.constant 1.000000e+00 : f32
    %318 = vector.broadcast %cst_91 : f32 to vector<8x128xf32>
    %319 = arith.addf %318, %317 : vector<8x128xf32>
    %320 = arith.divf %318, %319 : vector<8x128xf32>
    %321 = vector.extract_strided_slice %308 {offsets = [0, 256], sizes = [8, 128], strides = [1, 1]} : vector<8x512xf32> to vector<8x128xf32>
    %322 = math.tanh %321 : vector<8x128xf32>
    %323 = vector.extract_strided_slice %308 {offsets = [0, 384], sizes = [8, 128], strides = [1, 1]} : vector<8x512xf32> to vector<8x128xf32>
    %324 = arith.negf %323 : vector<8x128xf32>
    %325 = math.exp %324 : vector<8x128xf32>
    %cst_92 = arith.constant 1.000000e+00 : f32
    %326 = vector.broadcast %cst_92 : f32 to vector<8x128xf32>
    %327 = arith.addf %326, %325 : vector<8x128xf32>
    %328 = arith.divf %326, %327 : vector<8x128xf32>
    %329 = arith.mulf %320, %236 : vector<8x128xf32>
    %330 = arith.mulf %314, %322 : vector<8x128xf32>
    %331 = arith.addf %329, %330 : vector<8x128xf32>
    %332 = math.tanh %331 : vector<8x128xf32>
    %333 = arith.mulf %328, %332 : vector<8x128xf32>
    %334 = tpu.concatenate %238, %270 in 1 : vector<8x128xf32>, vector<8x128xf32> -> vector<8x256xf32>
    %335 = arith.truncf %334 : vector<8x256xf32> to vector<8x256xbf16>
    %c0_93 = arith.constant 0 : index
    %c0_94 = arith.constant 0 : index
    %336 = vector.load %arg6[%c0_93, %c0_94] : memref<1x512xf32, #tpu.memory_space<vmem>>, vector<1x512xf32>
    %c0_95 = arith.constant 0 : index
    %c0_96 = arith.constant 0 : index
    %337 = vector.load %arg13[%c0_95, %c0_96] : memref<256x512xbf16, #tpu.memory_space<vmem>>, vector<256x512xbf16>
    %cst_97 = arith.constant dense<0.000000e+00> : vector<8x512xf32>
    %338 = tpu.matmul %335, %337, %cst_97 {dimension_numbers = #tpu.dot_dimension_numbers<[1], [0], [0], [1], [0, 0, 1, 1], [], []>} : vector<8x256xbf16>, vector<256x512xbf16>, vector<8x512xf32> -> vector<8x512xf32>
    %339 = vector.broadcast %336 : vector<1x512xf32> to vector<8x512xf32>
    %340 = arith.addf %339, %338 : vector<8x512xf32>
    %341 = vector.extract_strided_slice %340 {offsets = [0, 0], sizes = [8, 128], strides = [1, 1]} : vector<8x512xf32> to vector<8x128xf32>
    %342 = arith.negf %341 : vector<8x128xf32>
    %343 = math.exp %342 : vector<8x128xf32>
    %cst_98 = arith.constant 1.000000e+00 : f32
    %344 = vector.broadcast %cst_98 : f32 to vector<8x128xf32>
    %345 = arith.addf %344, %343 : vector<8x128xf32>
    %346 = arith.divf %344, %345 : vector<8x128xf32>
    %347 = vector.extract_strided_slice %340 {offsets = [0, 128], sizes = [8, 128], strides = [1, 1]} : vector<8x512xf32> to vector<8x128xf32>
    %348 = arith.negf %347 : vector<8x128xf32>
    %349 = math.exp %348 : vector<8x128xf32>
    %cst_99 = arith.constant 1.000000e+00 : f32
    %350 = vector.broadcast %cst_99 : f32 to vector<8x128xf32>
    %351 = arith.addf %350, %349 : vector<8x128xf32>
    %352 = arith.divf %350, %351 : vector<8x128xf32>
    %353 = vector.extract_strided_slice %340 {offsets = [0, 256], sizes = [8, 128], strides = [1, 1]} : vector<8x512xf32> to vector<8x128xf32>
    %354 = math.tanh %353 : vector<8x128xf32>
    %355 = vector.extract_strided_slice %340 {offsets = [0, 384], sizes = [8, 128], strides = [1, 1]} : vector<8x512xf32> to vector<8x128xf32>
    %356 = arith.negf %355 : vector<8x128xf32>
    %357 = math.exp %356 : vector<8x128xf32>
    %cst_100 = arith.constant 1.000000e+00 : f32
    %358 = vector.broadcast %cst_100 : f32 to vector<8x128xf32>
    %359 = arith.addf %358, %357 : vector<8x128xf32>
    %360 = arith.divf %358, %359 : vector<8x128xf32>
    %361 = arith.mulf %352, %268 : vector<8x128xf32>
    %362 = arith.mulf %346, %354 : vector<8x128xf32>
    %363 = arith.addf %361, %362 : vector<8x128xf32>
    %364 = math.tanh %363 : vector<8x128xf32>
    %365 = arith.mulf %360, %364 : vector<8x128xf32>
    %366 = tpu.concatenate %270, %302 in 1 : vector<8x128xf32>, vector<8x128xf32> -> vector<8x256xf32>
    %367 = arith.truncf %366 : vector<8x256xf32> to vector<8x256xbf16>
    %c0_101 = arith.constant 0 : index
    %c0_102 = arith.constant 0 : index
    %368 = vector.load %arg8[%c0_101, %c0_102] : memref<1x512xf32, #tpu.memory_space<vmem>>, vector<1x512xf32>
    %c0_103 = arith.constant 0 : index
    %c0_104 = arith.constant 0 : index
    %369 = vector.load %arg14[%c0_103, %c0_104] : memref<256x512xbf16, #tpu.memory_space<vmem>>, vector<256x512xbf16>
    %cst_105 = arith.constant dense<0.000000e+00> : vector<8x512xf32>
    %370 = tpu.matmul %367, %369, %cst_105 {dimension_numbers = #tpu.dot_dimension_numbers<[1], [0], [0], [1], [0, 0, 1, 1], [], []>} : vector<8x256xbf16>, vector<256x512xbf16>, vector<8x512xf32> -> vector<8x512xf32>
    %371 = vector.broadcast %368 : vector<1x512xf32> to vector<8x512xf32>
    %372 = arith.addf %371, %370 : vector<8x512xf32>
    %373 = vector.extract_strided_slice %372 {offsets = [0, 0], sizes = [8, 128], strides = [1, 1]} : vector<8x512xf32> to vector<8x128xf32>
    %374 = arith.negf %373 : vector<8x128xf32>
    %375 = math.exp %374 : vector<8x128xf32>
    %cst_106 = arith.constant 1.000000e+00 : f32
    %376 = vector.broadcast %cst_106 : f32 to vector<8x128xf32>
    %377 = arith.addf %376, %375 : vector<8x128xf32>
    %378 = arith.divf %376, %377 : vector<8x128xf32>
    %379 = vector.extract_strided_slice %372 {offsets = [0, 128], sizes = [8, 128], strides = [1, 1]} : vector<8x512xf32> to vector<8x128xf32>
    %380 = arith.negf %379 : vector<8x128xf32>
    %381 = math.exp %380 : vector<8x128xf32>
    %cst_107 = arith.constant 1.000000e+00 : f32
    %382 = vector.broadcast %cst_107 : f32 to vector<8x128xf32>
    %383 = arith.addf %382, %381 : vector<8x128xf32>
    %384 = arith.divf %382, %383 : vector<8x128xf32>
    %385 = vector.extract_strided_slice %372 {offsets = [0, 256], sizes = [8, 128], strides = [1, 1]} : vector<8x512xf32> to vector<8x128xf32>
    %386 = math.tanh %385 : vector<8x128xf32>
    %387 = vector.extract_strided_slice %372 {offsets = [0, 384], sizes = [8, 128], strides = [1, 1]} : vector<8x512xf32> to vector<8x128xf32>
    %388 = arith.negf %387 : vector<8x128xf32>
    %389 = math.exp %388 : vector<8x128xf32>
    %cst_108 = arith.constant 1.000000e+00 : f32
    %390 = vector.broadcast %cst_108 : f32 to vector<8x128xf32>
    %391 = arith.addf %390, %389 : vector<8x128xf32>
    %392 = arith.divf %390, %391 : vector<8x128xf32>
    %393 = arith.mulf %384, %300 : vector<8x128xf32>
    %394 = arith.mulf %378, %386 : vector<8x128xf32>
    %395 = arith.addf %393, %394 : vector<8x128xf32>
    %396 = math.tanh %395 : vector<8x128xf32>
    %397 = arith.mulf %392, %396 : vector<8x128xf32>
    %c5 = arith.constant 5 : index
    %c0_109 = arith.constant 0 : index
    %c0_110 = arith.constant 0 : index
    %398 = vector.load %arg12[%c5, %c0_109, %c0_110] : memref<8x8x512xf32, #tpu.memory_space<vmem>>, vector<1x8x512xf32>
    %399 = vector.shape_cast %398 : vector<1x8x512xf32> to vector<8x512xf32>
    %400 = arith.truncf %333 : vector<8x128xf32> to vector<8x128xbf16>
    %c0_111 = arith.constant 0 : index
    %c0_112 = arith.constant 0 : index
    %401 = vector.load %arg3[%c0_111, %c0_112] : memref<128x512xbf16, #tpu.memory_space<vmem>>, vector<128x512xbf16>
    %cst_113 = arith.constant dense<0.000000e+00> : vector<8x512xf32>
    %402 = tpu.matmul %400, %401, %cst_113 {dimension_numbers = #tpu.dot_dimension_numbers<[1], [0], [0], [1], [0, 0, 1, 1], [], []>} : vector<8x128xbf16>, vector<128x512xbf16>, vector<8x512xf32> -> vector<8x512xf32>
    %403 = arith.addf %399, %402 : vector<8x512xf32>
    %404 = vector.extract_strided_slice %403 {offsets = [0, 0], sizes = [8, 128], strides = [1, 1]} : vector<8x512xf32> to vector<8x128xf32>
    %405 = arith.negf %404 : vector<8x128xf32>
    %406 = math.exp %405 : vector<8x128xf32>
    %cst_114 = arith.constant 1.000000e+00 : f32
    %407 = vector.broadcast %cst_114 : f32 to vector<8x128xf32>
    %408 = arith.addf %407, %406 : vector<8x128xf32>
    %409 = arith.divf %407, %408 : vector<8x128xf32>
    %410 = vector.extract_strided_slice %403 {offsets = [0, 128], sizes = [8, 128], strides = [1, 1]} : vector<8x512xf32> to vector<8x128xf32>
    %411 = arith.negf %410 : vector<8x128xf32>
    %412 = math.exp %411 : vector<8x128xf32>
    %cst_115 = arith.constant 1.000000e+00 : f32
    %413 = vector.broadcast %cst_115 : f32 to vector<8x128xf32>
    %414 = arith.addf %413, %412 : vector<8x128xf32>
    %415 = arith.divf %413, %414 : vector<8x128xf32>
    %416 = vector.extract_strided_slice %403 {offsets = [0, 256], sizes = [8, 128], strides = [1, 1]} : vector<8x512xf32> to vector<8x128xf32>
    %417 = math.tanh %416 : vector<8x128xf32>
    %418 = vector.extract_strided_slice %403 {offsets = [0, 384], sizes = [8, 128], strides = [1, 1]} : vector<8x512xf32> to vector<8x128xf32>
    %419 = arith.negf %418 : vector<8x128xf32>
    %420 = math.exp %419 : vector<8x128xf32>
    %cst_116 = arith.constant 1.000000e+00 : f32
    %421 = vector.broadcast %cst_116 : f32 to vector<8x128xf32>
    %422 = arith.addf %421, %420 : vector<8x128xf32>
    %423 = arith.divf %421, %422 : vector<8x128xf32>
    %424 = arith.mulf %415, %331 : vector<8x128xf32>
    %425 = arith.mulf %409, %417 : vector<8x128xf32>
    %426 = arith.addf %424, %425 : vector<8x128xf32>
    %427 = math.tanh %426 : vector<8x128xf32>
    %428 = arith.mulf %423, %427 : vector<8x128xf32>
    %429 = tpu.concatenate %333, %365 in 1 : vector<8x128xf32>, vector<8x128xf32> -> vector<8x256xf32>
    %430 = arith.truncf %429 : vector<8x256xf32> to vector<8x256xbf16>
    %c0_117 = arith.constant 0 : index
    %c0_118 = arith.constant 0 : index
    %431 = vector.load %arg6[%c0_117, %c0_118] : memref<1x512xf32, #tpu.memory_space<vmem>>, vector<1x512xf32>
    %c0_119 = arith.constant 0 : index
    %c0_120 = arith.constant 0 : index
    %432 = vector.load %arg13[%c0_119, %c0_120] : memref<256x512xbf16, #tpu.memory_space<vmem>>, vector<256x512xbf16>
    %cst_121 = arith.constant dense<0.000000e+00> : vector<8x512xf32>
    %433 = tpu.matmul %430, %432, %cst_121 {dimension_numbers = #tpu.dot_dimension_numbers<[1], [0], [0], [1], [0, 0, 1, 1], [], []>} : vector<8x256xbf16>, vector<256x512xbf16>, vector<8x512xf32> -> vector<8x512xf32>
    %434 = vector.broadcast %431 : vector<1x512xf32> to vector<8x512xf32>
    %435 = arith.addf %434, %433 : vector<8x512xf32>
    %436 = vector.extract_strided_slice %435 {offsets = [0, 0], sizes = [8, 128], strides = [1, 1]} : vector<8x512xf32> to vector<8x128xf32>
    %437 = arith.negf %436 : vector<8x128xf32>
    %438 = math.exp %437 : vector<8x128xf32>
    %cst_122 = arith.constant 1.000000e+00 : f32
    %439 = vector.broadcast %cst_122 : f32 to vector<8x128xf32>
    %440 = arith.addf %439, %438 : vector<8x128xf32>
    %441 = arith.divf %439, %440 : vector<8x128xf32>
    %442 = vector.extract_strided_slice %435 {offsets = [0, 128], sizes = [8, 128], strides = [1, 1]} : vector<8x512xf32> to vector<8x128xf32>
    %443 = arith.negf %442 : vector<8x128xf32>
    %444 = math.exp %443 : vector<8x128xf32>
    %cst_123 = arith.constant 1.000000e+00 : f32
    %445 = vector.broadcast %cst_123 : f32 to vector<8x128xf32>
    %446 = arith.addf %445, %444 : vector<8x128xf32>
    %447 = arith.divf %445, %446 : vector<8x128xf32>
    %448 = vector.extract_strided_slice %435 {offsets = [0, 256], sizes = [8, 128], strides = [1, 1]} : vector<8x512xf32> to vector<8x128xf32>
    %449 = math.tanh %448 : vector<8x128xf32>
    %450 = vector.extract_strided_slice %435 {offsets = [0, 384], sizes = [8, 128], strides = [1, 1]} : vector<8x512xf32> to vector<8x128xf32>
    %451 = arith.negf %450 : vector<8x128xf32>
    %452 = math.exp %451 : vector<8x128xf32>
    %cst_124 = arith.constant 1.000000e+00 : f32
    %453 = vector.broadcast %cst_124 : f32 to vector<8x128xf32>
    %454 = arith.addf %453, %452 : vector<8x128xf32>
    %455 = arith.divf %453, %454 : vector<8x128xf32>
    %456 = arith.mulf %447, %363 : vector<8x128xf32>
    %457 = arith.mulf %441, %449 : vector<8x128xf32>
    %458 = arith.addf %456, %457 : vector<8x128xf32>
    %459 = math.tanh %458 : vector<8x128xf32>
    %460 = arith.mulf %455, %459 : vector<8x128xf32>
    %461 = tpu.concatenate %365, %397 in 1 : vector<8x128xf32>, vector<8x128xf32> -> vector<8x256xf32>
    %462 = arith.truncf %461 : vector<8x256xf32> to vector<8x256xbf16>
    %c0_125 = arith.constant 0 : index
    %c0_126 = arith.constant 0 : index
    %463 = vector.load %arg8[%c0_125, %c0_126] : memref<1x512xf32, #tpu.memory_space<vmem>>, vector<1x512xf32>
    %c0_127 = arith.constant 0 : index
    %c0_128 = arith.constant 0 : index
    %464 = vector.load %arg14[%c0_127, %c0_128] : memref<256x512xbf16, #tpu.memory_space<vmem>>, vector<256x512xbf16>
    %cst_129 = arith.constant dense<0.000000e+00> : vector<8x512xf32>
    %465 = tpu.matmul %462, %464, %cst_129 {dimension_numbers = #tpu.dot_dimension_numbers<[1], [0], [0], [1], [0, 0, 1, 1], [], []>} : vector<8x256xbf16>, vector<256x512xbf16>, vector<8x512xf32> -> vector<8x512xf32>
    %466 = vector.broadcast %463 : vector<1x512xf32> to vector<8x512xf32>
    %467 = arith.addf %466, %465 : vector<8x512xf32>
    %468 = vector.extract_strided_slice %467 {offsets = [0, 0], sizes = [8, 128], strides = [1, 1]} : vector<8x512xf32> to vector<8x128xf32>
    %469 = arith.negf %468 : vector<8x128xf32>
    %470 = math.exp %469 : vector<8x128xf32>
    %cst_130 = arith.constant 1.000000e+00 : f32
    %471 = vector.broadcast %cst_130 : f32 to vector<8x128xf32>
    %472 = arith.addf %471, %470 : vector<8x128xf32>
    %473 = arith.divf %471, %472 : vector<8x128xf32>
    %474 = vector.extract_strided_slice %467 {offsets = [0, 128], sizes = [8, 128], strides = [1, 1]} : vector<8x512xf32> to vector<8x128xf32>
    %475 = arith.negf %474 : vector<8x128xf32>
    %476 = math.exp %475 : vector<8x128xf32>
    %cst_131 = arith.constant 1.000000e+00 : f32
    %477 = vector.broadcast %cst_131 : f32 to vector<8x128xf32>
    %478 = arith.addf %477, %476 : vector<8x128xf32>
    %479 = arith.divf %477, %478 : vector<8x128xf32>
    %480 = vector.extract_strided_slice %467 {offsets = [0, 256], sizes = [8, 128], strides = [1, 1]} : vector<8x512xf32> to vector<8x128xf32>
    %481 = math.tanh %480 : vector<8x128xf32>
    %482 = vector.extract_strided_slice %467 {offsets = [0, 384], sizes = [8, 128], strides = [1, 1]} : vector<8x512xf32> to vector<8x128xf32>
    %483 = arith.negf %482 : vector<8x128xf32>
    %484 = math.exp %483 : vector<8x128xf32>
    %cst_132 = arith.constant 1.000000e+00 : f32
    %485 = vector.broadcast %cst_132 : f32 to vector<8x128xf32>
    %486 = arith.addf %485, %484 : vector<8x128xf32>
    %487 = arith.divf %485, %486 : vector<8x128xf32>
    %488 = arith.mulf %479, %395 : vector<8x128xf32>
    %489 = arith.mulf %473, %481 : vector<8x128xf32>
    %490 = arith.addf %488, %489 : vector<8x128xf32>
    %491 = math.tanh %490 : vector<8x128xf32>
    %492 = arith.mulf %487, %491 : vector<8x128xf32>
    %c6 = arith.constant 6 : index
    %c0_133 = arith.constant 0 : index
    %c0_134 = arith.constant 0 : index
    %493 = vector.load %arg12[%c6, %c0_133, %c0_134] : memref<8x8x512xf32, #tpu.memory_space<vmem>>, vector<1x8x512xf32>
    %494 = vector.shape_cast %493 : vector<1x8x512xf32> to vector<8x512xf32>
    %495 = arith.truncf %428 : vector<8x128xf32> to vector<8x128xbf16>
    %c0_135 = arith.constant 0 : index
    %c0_136 = arith.constant 0 : index
    %496 = vector.load %arg3[%c0_135, %c0_136] : memref<128x512xbf16, #tpu.memory_space<vmem>>, vector<128x512xbf16>
    %cst_137 = arith.constant dense<0.000000e+00> : vector<8x512xf32>
    %497 = tpu.matmul %495, %496, %cst_137 {dimension_numbers = #tpu.dot_dimension_numbers<[1], [0], [0], [1], [0, 0, 1, 1], [], []>} : vector<8x128xbf16>, vector<128x512xbf16>, vector<8x512xf32> -> vector<8x512xf32>
    %498 = arith.addf %494, %497 : vector<8x512xf32>
    %499 = vector.extract_strided_slice %498 {offsets = [0, 0], sizes = [8, 128], strides = [1, 1]} : vector<8x512xf32> to vector<8x128xf32>
    %500 = arith.negf %499 : vector<8x128xf32>
    %501 = math.exp %500 : vector<8x128xf32>
    %cst_138 = arith.constant 1.000000e+00 : f32
    %502 = vector.broadcast %cst_138 : f32 to vector<8x128xf32>
    %503 = arith.addf %502, %501 : vector<8x128xf32>
    %504 = arith.divf %502, %503 : vector<8x128xf32>
    %505 = vector.extract_strided_slice %498 {offsets = [0, 128], sizes = [8, 128], strides = [1, 1]} : vector<8x512xf32> to vector<8x128xf32>
    %506 = arith.negf %505 : vector<8x128xf32>
    %507 = math.exp %506 : vector<8x128xf32>
    %cst_139 = arith.constant 1.000000e+00 : f32
    %508 = vector.broadcast %cst_139 : f32 to vector<8x128xf32>
    %509 = arith.addf %508, %507 : vector<8x128xf32>
    %510 = arith.divf %508, %509 : vector<8x128xf32>
    %511 = vector.extract_strided_slice %498 {offsets = [0, 256], sizes = [8, 128], strides = [1, 1]} : vector<8x512xf32> to vector<8x128xf32>
    %512 = math.tanh %511 : vector<8x128xf32>
    %513 = vector.extract_strided_slice %498 {offsets = [0, 384], sizes = [8, 128], strides = [1, 1]} : vector<8x512xf32> to vector<8x128xf32>
    %514 = arith.negf %513 : vector<8x128xf32>
    %515 = math.exp %514 : vector<8x128xf32>
    %cst_140 = arith.constant 1.000000e+00 : f32
    %516 = vector.broadcast %cst_140 : f32 to vector<8x128xf32>
    %517 = arith.addf %516, %515 : vector<8x128xf32>
    %518 = arith.divf %516, %517 : vector<8x128xf32>
    %519 = arith.mulf %510, %426 : vector<8x128xf32>
    %520 = arith.mulf %504, %512 : vector<8x128xf32>
    %521 = arith.addf %519, %520 : vector<8x128xf32>
    %522 = math.tanh %521 : vector<8x128xf32>
    %523 = arith.mulf %518, %522 : vector<8x128xf32>
    %524 = tpu.concatenate %428, %460 in 1 : vector<8x128xf32>, vector<8x128xf32> -> vector<8x256xf32>
    %525 = arith.truncf %524 : vector<8x256xf32> to vector<8x256xbf16>
    %c0_141 = arith.constant 0 : index
    %c0_142 = arith.constant 0 : index
    %526 = vector.load %arg6[%c0_141, %c0_142] : memref<1x512xf32, #tpu.memory_space<vmem>>, vector<1x512xf32>
    %c0_143 = arith.constant 0 : index
    %c0_144 = arith.constant 0 : index
    %527 = vector.load %arg13[%c0_143, %c0_144] : memref<256x512xbf16, #tpu.memory_space<vmem>>, vector<256x512xbf16>
    %cst_145 = arith.constant dense<0.000000e+00> : vector<8x512xf32>
    %528 = tpu.matmul %525, %527, %cst_145 {dimension_numbers = #tpu.dot_dimension_numbers<[1], [0], [0], [1], [0, 0, 1, 1], [], []>} : vector<8x256xbf16>, vector<256x512xbf16>, vector<8x512xf32> -> vector<8x512xf32>
    %529 = vector.broadcast %526 : vector<1x512xf32> to vector<8x512xf32>
    %530 = arith.addf %529, %528 : vector<8x512xf32>
    %531 = vector.extract_strided_slice %530 {offsets = [0, 0], sizes = [8, 128], strides = [1, 1]} : vector<8x512xf32> to vector<8x128xf32>
    %532 = arith.negf %531 : vector<8x128xf32>
    %533 = math.exp %532 : vector<8x128xf32>
    %cst_146 = arith.constant 1.000000e+00 : f32
    %534 = vector.broadcast %cst_146 : f32 to vector<8x128xf32>
    %535 = arith.addf %534, %533 : vector<8x128xf32>
    %536 = arith.divf %534, %535 : vector<8x128xf32>
    %537 = vector.extract_strided_slice %530 {offsets = [0, 128], sizes = [8, 128], strides = [1, 1]} : vector<8x512xf32> to vector<8x128xf32>
    %538 = arith.negf %537 : vector<8x128xf32>
    %539 = math.exp %538 : vector<8x128xf32>
    %cst_147 = arith.constant 1.000000e+00 : f32
    %540 = vector.broadcast %cst_147 : f32 to vector<8x128xf32>
    %541 = arith.addf %540, %539 : vector<8x128xf32>
    %542 = arith.divf %540, %541 : vector<8x128xf32>
    %543 = vector.extract_strided_slice %530 {offsets = [0, 256], sizes = [8, 128], strides = [1, 1]} : vector<8x512xf32> to vector<8x128xf32>
    %544 = math.tanh %543 : vector<8x128xf32>
    %545 = vector.extract_strided_slice %530 {offsets = [0, 384], sizes = [8, 128], strides = [1, 1]} : vector<8x512xf32> to vector<8x128xf32>
    %546 = arith.negf %545 : vector<8x128xf32>
    %547 = math.exp %546 : vector<8x128xf32>
    %cst_148 = arith.constant 1.000000e+00 : f32
    %548 = vector.broadcast %cst_148 : f32 to vector<8x128xf32>
    %549 = arith.addf %548, %547 : vector<8x128xf32>
    %550 = arith.divf %548, %549 : vector<8x128xf32>
    %551 = arith.mulf %542, %458 : vector<8x128xf32>
    %552 = arith.mulf %536, %544 : vector<8x128xf32>
    %553 = arith.addf %551, %552 : vector<8x128xf32>
    %554 = math.tanh %553 : vector<8x128xf32>
    %555 = arith.mulf %550, %554 : vector<8x128xf32>
    %556 = tpu.concatenate %460, %492 in 1 : vector<8x128xf32>, vector<8x128xf32> -> vector<8x256xf32>
    %557 = arith.truncf %556 : vector<8x256xf32> to vector<8x256xbf16>
    %c0_149 = arith.constant 0 : index
    %c0_150 = arith.constant 0 : index
    %558 = vector.load %arg8[%c0_149, %c0_150] : memref<1x512xf32, #tpu.memory_space<vmem>>, vector<1x512xf32>
    %c0_151 = arith.constant 0 : index
    %c0_152 = arith.constant 0 : index
    %559 = vector.load %arg14[%c0_151, %c0_152] : memref<256x512xbf16, #tpu.memory_space<vmem>>, vector<256x512xbf16>
    %cst_153 = arith.constant dense<0.000000e+00> : vector<8x512xf32>
    %560 = tpu.matmul %557, %559, %cst_153 {dimension_numbers = #tpu.dot_dimension_numbers<[1], [0], [0], [1], [0, 0, 1, 1], [], []>} : vector<8x256xbf16>, vector<256x512xbf16>, vector<8x512xf32> -> vector<8x512xf32>
    %561 = vector.broadcast %558 : vector<1x512xf32> to vector<8x512xf32>
    %562 = arith.addf %561, %560 : vector<8x512xf32>
    %563 = vector.extract_strided_slice %562 {offsets = [0, 0], sizes = [8, 128], strides = [1, 1]} : vector<8x512xf32> to vector<8x128xf32>
    %564 = arith.negf %563 : vector<8x128xf32>
    %565 = math.exp %564 : vector<8x128xf32>
    %cst_154 = arith.constant 1.000000e+00 : f32
    %566 = vector.broadcast %cst_154 : f32 to vector<8x128xf32>
    %567 = arith.addf %566, %565 : vector<8x128xf32>
    %568 = arith.divf %566, %567 : vector<8x128xf32>
    %569 = vector.extract_strided_slice %562 {offsets = [0, 128], sizes = [8, 128], strides = [1, 1]} : vector<8x512xf32> to vector<8x128xf32>
    %570 = arith.negf %569 : vector<8x128xf32>
    %571 = math.exp %570 : vector<8x128xf32>
    %cst_155 = arith.constant 1.000000e+00 : f32
    %572 = vector.broadcast %cst_155 : f32 to vector<8x128xf32>
    %573 = arith.addf %572, %571 : vector<8x128xf32>
    %574 = arith.divf %572, %573 : vector<8x128xf32>
    %575 = vector.extract_strided_slice %562 {offsets = [0, 256], sizes = [8, 128], strides = [1, 1]} : vector<8x512xf32> to vector<8x128xf32>
    %576 = math.tanh %575 : vector<8x128xf32>
    %577 = vector.extract_strided_slice %562 {offsets = [0, 384], sizes = [8, 128], strides = [1, 1]} : vector<8x512xf32> to vector<8x128xf32>
    %578 = arith.negf %577 : vector<8x128xf32>
    %579 = math.exp %578 : vector<8x128xf32>
    %cst_156 = arith.constant 1.000000e+00 : f32
    %580 = vector.broadcast %cst_156 : f32 to vector<8x128xf32>
    %581 = arith.addf %580, %579 : vector<8x128xf32>
    %582 = arith.divf %580, %581 : vector<8x128xf32>
    %583 = arith.mulf %574, %490 : vector<8x128xf32>
    %584 = arith.mulf %568, %576 : vector<8x128xf32>
    %585 = arith.addf %583, %584 : vector<8x128xf32>
    %586 = math.tanh %585 : vector<8x128xf32>
    %587 = arith.mulf %582, %586 : vector<8x128xf32>
    %c7 = arith.constant 7 : index
    %c0_157 = arith.constant 0 : index
    %c0_158 = arith.constant 0 : index
    %588 = vector.load %arg12[%c7, %c0_157, %c0_158] : memref<8x8x512xf32, #tpu.memory_space<vmem>>, vector<1x8x512xf32>
    %589 = vector.shape_cast %588 : vector<1x8x512xf32> to vector<8x512xf32>
    %590 = arith.truncf %523 : vector<8x128xf32> to vector<8x128xbf16>
    %c0_159 = arith.constant 0 : index
    %c0_160 = arith.constant 0 : index
    %591 = vector.load %arg3[%c0_159, %c0_160] : memref<128x512xbf16, #tpu.memory_space<vmem>>, vector<128x512xbf16>
    %cst_161 = arith.constant dense<0.000000e+00> : vector<8x512xf32>
    %592 = tpu.matmul %590, %591, %cst_161 {dimension_numbers = #tpu.dot_dimension_numbers<[1], [0], [0], [1], [0, 0, 1, 1], [], []>} : vector<8x128xbf16>, vector<128x512xbf16>, vector<8x512xf32> -> vector<8x512xf32>
    %593 = arith.addf %589, %592 : vector<8x512xf32>
    %594 = vector.extract_strided_slice %593 {offsets = [0, 0], sizes = [8, 128], strides = [1, 1]} : vector<8x512xf32> to vector<8x128xf32>
    %595 = arith.negf %594 : vector<8x128xf32>
    %596 = math.exp %595 : vector<8x128xf32>
    %cst_162 = arith.constant 1.000000e+00 : f32
    %597 = vector.broadcast %cst_162 : f32 to vector<8x128xf32>
    %598 = arith.addf %597, %596 : vector<8x128xf32>
    %599 = arith.divf %597, %598 : vector<8x128xf32>
    %600 = vector.extract_strided_slice %593 {offsets = [0, 128], sizes = [8, 128], strides = [1, 1]} : vector<8x512xf32> to vector<8x128xf32>
    %601 = arith.negf %600 : vector<8x128xf32>
    %602 = math.exp %601 : vector<8x128xf32>
    %cst_163 = arith.constant 1.000000e+00 : f32
    %603 = vector.broadcast %cst_163 : f32 to vector<8x128xf32>
    %604 = arith.addf %603, %602 : vector<8x128xf32>
    %605 = arith.divf %603, %604 : vector<8x128xf32>
    %606 = vector.extract_strided_slice %593 {offsets = [0, 256], sizes = [8, 128], strides = [1, 1]} : vector<8x512xf32> to vector<8x128xf32>
    %607 = math.tanh %606 : vector<8x128xf32>
    %608 = vector.extract_strided_slice %593 {offsets = [0, 384], sizes = [8, 128], strides = [1, 1]} : vector<8x512xf32> to vector<8x128xf32>
    %609 = arith.negf %608 : vector<8x128xf32>
    %610 = math.exp %609 : vector<8x128xf32>
    %cst_164 = arith.constant 1.000000e+00 : f32
    %611 = vector.broadcast %cst_164 : f32 to vector<8x128xf32>
    %612 = arith.addf %611, %610 : vector<8x128xf32>
    %613 = arith.divf %611, %612 : vector<8x128xf32>
    %614 = arith.mulf %605, %521 : vector<8x128xf32>
    %615 = arith.mulf %599, %607 : vector<8x128xf32>
    %616 = arith.addf %614, %615 : vector<8x128xf32>
    %617 = math.tanh %616 : vector<8x128xf32>
    %618 = arith.mulf %613, %617 : vector<8x128xf32>
    %619 = tpu.concatenate %523, %555 in 1 : vector<8x128xf32>, vector<8x128xf32> -> vector<8x256xf32>
    %620 = arith.truncf %619 : vector<8x256xf32> to vector<8x256xbf16>
    %c0_165 = arith.constant 0 : index
    %c0_166 = arith.constant 0 : index
    %621 = vector.load %arg6[%c0_165, %c0_166] : memref<1x512xf32, #tpu.memory_space<vmem>>, vector<1x512xf32>
    %c0_167 = arith.constant 0 : index
    %c0_168 = arith.constant 0 : index
    %622 = vector.load %arg13[%c0_167, %c0_168] : memref<256x512xbf16, #tpu.memory_space<vmem>>, vector<256x512xbf16>
    %cst_169 = arith.constant dense<0.000000e+00> : vector<8x512xf32>
    %623 = tpu.matmul %620, %622, %cst_169 {dimension_numbers = #tpu.dot_dimension_numbers<[1], [0], [0], [1], [0, 0, 1, 1], [], []>} : vector<8x256xbf16>, vector<256x512xbf16>, vector<8x512xf32> -> vector<8x512xf32>
    %624 = vector.broadcast %621 : vector<1x512xf32> to vector<8x512xf32>
    %625 = arith.addf %624, %623 : vector<8x512xf32>
    %626 = vector.extract_strided_slice %625 {offsets = [0, 0], sizes = [8, 128], strides = [1, 1]} : vector<8x512xf32> to vector<8x128xf32>
    %627 = arith.negf %626 : vector<8x128xf32>
    %628 = math.exp %627 : vector<8x128xf32>
    %cst_170 = arith.constant 1.000000e+00 : f32
    %629 = vector.broadcast %cst_170 : f32 to vector<8x128xf32>
    %630 = arith.addf %629, %628 : vector<8x128xf32>
    %631 = arith.divf %629, %630 : vector<8x128xf32>
    %632 = vector.extract_strided_slice %625 {offsets = [0, 128], sizes = [8, 128], strides = [1, 1]} : vector<8x512xf32> to vector<8x128xf32>
    %633 = arith.negf %632 : vector<8x128xf32>
    %634 = math.exp %633 : vector<8x128xf32>
    %cst_171 = arith.constant 1.000000e+00 : f32
    %635 = vector.broadcast %cst_171 : f32 to vector<8x128xf32>
    %636 = arith.addf %635, %634 : vector<8x128xf32>
    %637 = arith.divf %635, %636 : vector<8x128xf32>
    %638 = vector.extract_strided_slice %625 {offsets = [0, 256], sizes = [8, 128], strides = [1, 1]} : vector<8x512xf32> to vector<8x128xf32>
    %639 = math.tanh %638 : vector<8x128xf32>
    %640 = vector.extract_strided_slice %625 {offsets = [0, 384], sizes = [8, 128], strides = [1, 1]} : vector<8x512xf32> to vector<8x128xf32>
    %641 = arith.negf %640 : vector<8x128xf32>
    %642 = math.exp %641 : vector<8x128xf32>
    %cst_172 = arith.constant 1.000000e+00 : f32
    %643 = vector.broadcast %cst_172 : f32 to vector<8x128xf32>
    %644 = arith.addf %643, %642 : vector<8x128xf32>
    %645 = arith.divf %643, %644 : vector<8x128xf32>
    %646 = arith.mulf %637, %553 : vector<8x128xf32>
    %647 = arith.mulf %631, %639 : vector<8x128xf32>
    %648 = arith.addf %646, %647 : vector<8x128xf32>
    %649 = math.tanh %648 : vector<8x128xf32>
    %650 = arith.mulf %645, %649 : vector<8x128xf32>
    %651 = tpu.concatenate %555, %587 in 1 : vector<8x128xf32>, vector<8x128xf32> -> vector<8x256xf32>
    %652 = arith.truncf %651 : vector<8x256xf32> to vector<8x256xbf16>
    %c0_173 = arith.constant 0 : index
    %c0_174 = arith.constant 0 : index
    %653 = vector.load %arg8[%c0_173, %c0_174] : memref<1x512xf32, #tpu.memory_space<vmem>>, vector<1x512xf32>
    %c0_175 = arith.constant 0 : index
    %c0_176 = arith.constant 0 : index
    %654 = vector.load %arg14[%c0_175, %c0_176] : memref<256x512xbf16, #tpu.memory_space<vmem>>, vector<256x512xbf16>
    %cst_177 = arith.constant dense<0.000000e+00> : vector<8x512xf32>
    %655 = tpu.matmul %652, %654, %cst_177 {dimension_numbers = #tpu.dot_dimension_numbers<[1], [0], [0], [1], [0, 0, 1, 1], [], []>} : vector<8x256xbf16>, vector<256x512xbf16>, vector<8x512xf32> -> vector<8x512xf32>
    %656 = vector.broadcast %653 : vector<1x512xf32> to vector<8x512xf32>
    %657 = arith.addf %656, %655 : vector<8x512xf32>
    %658 = vector.extract_strided_slice %657 {offsets = [0, 0], sizes = [8, 128], strides = [1, 1]} : vector<8x512xf32> to vector<8x128xf32>
    %659 = arith.negf %658 : vector<8x128xf32>
    %660 = math.exp %659 : vector<8x128xf32>
    %cst_178 = arith.constant 1.000000e+00 : f32
    %661 = vector.broadcast %cst_178 : f32 to vector<8x128xf32>
    %662 = arith.addf %661, %660 : vector<8x128xf32>
    %663 = arith.divf %661, %662 : vector<8x128xf32>
    %664 = vector.extract_strided_slice %657 {offsets = [0, 128], sizes = [8, 128], strides = [1, 1]} : vector<8x512xf32> to vector<8x128xf32>
    %665 = arith.negf %664 : vector<8x128xf32>
    %666 = math.exp %665 : vector<8x128xf32>
    %cst_179 = arith.constant 1.000000e+00 : f32
    %667 = vector.broadcast %cst_179 : f32 to vector<8x128xf32>
    %668 = arith.addf %667, %666 : vector<8x128xf32>
    %669 = arith.divf %667, %668 : vector<8x128xf32>
    %670 = vector.extract_strided_slice %657 {offsets = [0, 256], sizes = [8, 128], strides = [1, 1]} : vector<8x512xf32> to vector<8x128xf32>
    %671 = math.tanh %670 : vector<8x128xf32>
    %672 = vector.extract_strided_slice %657 {offsets = [0, 384], sizes = [8, 128], strides = [1, 1]} : vector<8x512xf32> to vector<8x128xf32>
    %673 = arith.negf %672 : vector<8x128xf32>
    %674 = math.exp %673 : vector<8x128xf32>
    %cst_180 = arith.constant 1.000000e+00 : f32
    %675 = vector.broadcast %cst_180 : f32 to vector<8x128xf32>
    %676 = arith.addf %675, %674 : vector<8x128xf32>
    %677 = arith.divf %675, %676 : vector<8x128xf32>
    %678 = arith.mulf %669, %585 : vector<8x128xf32>
    %679 = arith.mulf %663, %671 : vector<8x128xf32>
    %680 = arith.addf %678, %679 : vector<8x128xf32>
    %681 = math.tanh %680 : vector<8x128xf32>
    %682 = arith.mulf %677, %681 : vector<8x128xf32>
    %683 = tpu.concatenate %618, %650 in 1 : vector<8x128xf32>, vector<8x128xf32> -> vector<8x256xf32>
    %684 = arith.truncf %683 : vector<8x256xf32> to vector<8x256xbf16>
    %c0_181 = arith.constant 0 : index
    %c0_182 = arith.constant 0 : index
    %685 = vector.load %arg6[%c0_181, %c0_182] : memref<1x512xf32, #tpu.memory_space<vmem>>, vector<1x512xf32>
    %c0_183 = arith.constant 0 : index
    %c0_184 = arith.constant 0 : index
    %686 = vector.load %arg13[%c0_183, %c0_184] : memref<256x512xbf16, #tpu.memory_space<vmem>>, vector<256x512xbf16>
    %cst_185 = arith.constant dense<0.000000e+00> : vector<8x512xf32>
    %687 = tpu.matmul %684, %686, %cst_185 {dimension_numbers = #tpu.dot_dimension_numbers<[1], [0], [0], [1], [0, 0, 1, 1], [], []>} : vector<8x256xbf16>, vector<256x512xbf16>, vector<8x512xf32> -> vector<8x512xf32>
    %688 = vector.broadcast %685 : vector<1x512xf32> to vector<8x512xf32>
    %689 = arith.addf %688, %687 : vector<8x512xf32>
    %690 = vector.extract_strided_slice %689 {offsets = [0, 0], sizes = [8, 128], strides = [1, 1]} : vector<8x512xf32> to vector<8x128xf32>
    %691 = arith.negf %690 : vector<8x128xf32>
    %692 = math.exp %691 : vector<8x128xf32>
    %cst_186 = arith.constant 1.000000e+00 : f32
    %693 = vector.broadcast %cst_186 : f32 to vector<8x128xf32>
    %694 = arith.addf %693, %692 : vector<8x128xf32>
    %695 = arith.divf %693, %694 : vector<8x128xf32>
    %696 = vector.extract_strided_slice %689 {offsets = [0, 128], sizes = [8, 128], strides = [1, 1]} : vector<8x512xf32> to vector<8x128xf32>
    %697 = arith.negf %696 : vector<8x128xf32>
    %698 = math.exp %697 : vector<8x128xf32>
    %cst_187 = arith.constant 1.000000e+00 : f32
    %699 = vector.broadcast %cst_187 : f32 to vector<8x128xf32>
    %700 = arith.addf %699, %698 : vector<8x128xf32>
    %701 = arith.divf %699, %700 : vector<8x128xf32>
    %702 = vector.extract_strided_slice %689 {offsets = [0, 256], sizes = [8, 128], strides = [1, 1]} : vector<8x512xf32> to vector<8x128xf32>
    %703 = math.tanh %702 : vector<8x128xf32>
    %704 = vector.extract_strided_slice %689 {offsets = [0, 384], sizes = [8, 128], strides = [1, 1]} : vector<8x512xf32> to vector<8x128xf32>
    %705 = arith.negf %704 : vector<8x128xf32>
    %706 = math.exp %705 : vector<8x128xf32>
    %cst_188 = arith.constant 1.000000e+00 : f32
    %707 = vector.broadcast %cst_188 : f32 to vector<8x128xf32>
    %708 = arith.addf %707, %706 : vector<8x128xf32>
    %709 = arith.divf %707, %708 : vector<8x128xf32>
    %710 = arith.mulf %701, %648 : vector<8x128xf32>
    %711 = arith.mulf %695, %703 : vector<8x128xf32>
    %712 = arith.addf %710, %711 : vector<8x128xf32>
    %713 = math.tanh %712 : vector<8x128xf32>
    %714 = arith.mulf %709, %713 : vector<8x128xf32>
    %715 = tpu.concatenate %650, %682 in 1 : vector<8x128xf32>, vector<8x128xf32> -> vector<8x256xf32>
    %716 = arith.truncf %715 : vector<8x256xf32> to vector<8x256xbf16>
    %c0_189 = arith.constant 0 : index
    %c0_190 = arith.constant 0 : index
    %717 = vector.load %arg8[%c0_189, %c0_190] : memref<1x512xf32, #tpu.memory_space<vmem>>, vector<1x512xf32>
    %c0_191 = arith.constant 0 : index
    %c0_192 = arith.constant 0 : index
    %718 = vector.load %arg14[%c0_191, %c0_192] : memref<256x512xbf16, #tpu.memory_space<vmem>>, vector<256x512xbf16>
    %cst_193 = arith.constant dense<0.000000e+00> : vector<8x512xf32>
    %719 = tpu.matmul %716, %718, %cst_193 {dimension_numbers = #tpu.dot_dimension_numbers<[1], [0], [0], [1], [0, 0, 1, 1], [], []>} : vector<8x256xbf16>, vector<256x512xbf16>, vector<8x512xf32> -> vector<8x512xf32>
    %720 = vector.broadcast %717 : vector<1x512xf32> to vector<8x512xf32>
    %721 = arith.addf %720, %719 : vector<8x512xf32>
    %722 = vector.extract_strided_slice %721 {offsets = [0, 0], sizes = [8, 128], strides = [1, 1]} : vector<8x512xf32> to vector<8x128xf32>
    %723 = arith.negf %722 : vector<8x128xf32>
    %724 = math.exp %723 : vector<8x128xf32>
    %cst_194 = arith.constant 1.000000e+00 : f32
    %725 = vector.broadcast %cst_194 : f32 to vector<8x128xf32>
    %726 = arith.addf %725, %724 : vector<8x128xf32>
    %727 = arith.divf %725, %726 : vector<8x128xf32>
    %728 = vector.extract_strided_slice %721 {offsets = [0, 128], sizes = [8, 128], strides = [1, 1]} : vector<8x512xf32> to vector<8x128xf32>
    %729 = arith.negf %728 : vector<8x128xf32>
    %730 = math.exp %729 : vector<8x128xf32>
    %cst_195 = arith.constant 1.000000e+00 : f32
    %731 = vector.broadcast %cst_195 : f32 to vector<8x128xf32>
    %732 = arith.addf %731, %730 : vector<8x128xf32>
    %733 = arith.divf %731, %732 : vector<8x128xf32>
    %734 = vector.extract_strided_slice %721 {offsets = [0, 256], sizes = [8, 128], strides = [1, 1]} : vector<8x512xf32> to vector<8x128xf32>
    %735 = math.tanh %734 : vector<8x128xf32>
    %736 = vector.extract_strided_slice %721 {offsets = [0, 384], sizes = [8, 128], strides = [1, 1]} : vector<8x512xf32> to vector<8x128xf32>
    %737 = arith.negf %736 : vector<8x128xf32>
    %738 = math.exp %737 : vector<8x128xf32>
    %cst_196 = arith.constant 1.000000e+00 : f32
    %739 = vector.broadcast %cst_196 : f32 to vector<8x128xf32>
    %740 = arith.addf %739, %738 : vector<8x128xf32>
    %741 = arith.divf %739, %740 : vector<8x128xf32>
    %742 = arith.mulf %733, %680 : vector<8x128xf32>
    %743 = arith.mulf %727, %735 : vector<8x128xf32>
    %744 = arith.addf %742, %743 : vector<8x128xf32>
    %745 = math.tanh %744 : vector<8x128xf32>
    %746 = arith.mulf %741, %745 : vector<8x128xf32>
    %747 = tpu.concatenate %714, %746 in 1 : vector<8x128xf32>, vector<8x128xf32> -> vector<8x256xf32>
    %748 = arith.truncf %747 : vector<8x256xf32> to vector<8x256xbf16>
    %c0_197 = arith.constant 0 : index
    %c0_198 = arith.constant 0 : index
    %749 = vector.load %arg8[%c0_197, %c0_198] : memref<1x512xf32, #tpu.memory_space<vmem>>, vector<1x512xf32>
    %c0_199 = arith.constant 0 : index
    %c0_200 = arith.constant 0 : index
    %750 = vector.load %arg14[%c0_199, %c0_200] : memref<256x512xbf16, #tpu.memory_space<vmem>>, vector<256x512xbf16>
    %cst_201 = arith.constant dense<0.000000e+00> : vector<8x512xf32>
    %751 = tpu.matmul %748, %750, %cst_201 {dimension_numbers = #tpu.dot_dimension_numbers<[1], [0], [0], [1], [0, 0, 1, 1], [], []>} : vector<8x256xbf16>, vector<256x512xbf16>, vector<8x512xf32> -> vector<8x512xf32>
    %752 = vector.broadcast %749 : vector<1x512xf32> to vector<8x512xf32>
    %753 = arith.addf %752, %751 : vector<8x512xf32>
    %754 = vector.extract_strided_slice %753 {offsets = [0, 0], sizes = [8, 128], strides = [1, 1]} : vector<8x512xf32> to vector<8x128xf32>
    %755 = arith.negf %754 : vector<8x128xf32>
    %756 = math.exp %755 : vector<8x128xf32>
    %cst_202 = arith.constant 1.000000e+00 : f32
    %757 = vector.broadcast %cst_202 : f32 to vector<8x128xf32>
    %758 = arith.addf %757, %756 : vector<8x128xf32>
    %759 = arith.divf %757, %758 : vector<8x128xf32>
    %760 = vector.extract_strided_slice %753 {offsets = [0, 128], sizes = [8, 128], strides = [1, 1]} : vector<8x512xf32> to vector<8x128xf32>
    %761 = arith.negf %760 : vector<8x128xf32>
    %762 = math.exp %761 : vector<8x128xf32>
    %cst_203 = arith.constant 1.000000e+00 : f32
    %763 = vector.broadcast %cst_203 : f32 to vector<8x128xf32>
    %764 = arith.addf %763, %762 : vector<8x128xf32>
    %765 = arith.divf %763, %764 : vector<8x128xf32>
    %766 = vector.extract_strided_slice %753 {offsets = [0, 256], sizes = [8, 128], strides = [1, 1]} : vector<8x512xf32> to vector<8x128xf32>
    %767 = math.tanh %766 : vector<8x128xf32>
    %768 = vector.extract_strided_slice %753 {offsets = [0, 384], sizes = [8, 128], strides = [1, 1]} : vector<8x512xf32> to vector<8x128xf32>
    %769 = arith.negf %768 : vector<8x128xf32>
    %770 = math.exp %769 : vector<8x128xf32>
    %cst_204 = arith.constant 1.000000e+00 : f32
    %771 = vector.broadcast %cst_204 : f32 to vector<8x128xf32>
    %772 = arith.addf %771, %770 : vector<8x128xf32>
    %773 = arith.divf %771, %772 : vector<8x128xf32>
    %774 = arith.mulf %765, %744 : vector<8x128xf32>
    %775 = arith.mulf %759, %767 : vector<8x128xf32>
    %776 = arith.addf %774, %775 : vector<8x128xf32>
    %777 = math.tanh %776 : vector<8x128xf32>
    %778 = arith.mulf %773, %777 : vector<8x128xf32>
    %c0_205 = arith.constant 0 : index
    %c0_206 = arith.constant 0 : index
    %779 = vector.load %arg9[%c0_205, %c0_206] : memref<128x1xf32, #tpu.memory_space<vmem>>, vector<128x1xf32>
    %cst_207 = arith.constant dense<0.000000e+00> : vector<8x1xf32>
    %780 = tpu.matmul %778, %779, %cst_207 {dimension_numbers = #tpu.dot_dimension_numbers<[1], [0], [0], [1], [0, 0, 1, 1], [], []>} : vector<8x128xf32>, vector<128x1xf32>, vector<8x1xf32> -> vector<8x1xf32>
    %c0_208 = arith.constant 0 : index
    %c0_209 = arith.constant 0 : index
    %781 = vector.load %arg10[%c0_208, %c0_209] : memref<1x1xf32, #tpu.memory_space<vmem>>, vector<1x1xf32>
    %782 = vector.broadcast %781 : vector<1x1xf32> to vector<8x1xf32>
    %783 = arith.addf %780, %782 : vector<8x1xf32>
    %c0_210 = arith.constant 0 : index
    %c0_211 = arith.constant 0 : index
    %784 = vector.load %arg11[%c0_210, %c0_211] : memref<8x1xf32, #tpu.memory_space<vmem>>, vector<8x1xf32>
    tpu.vector_store %arg11[%c0_210, %c0_211], %783 {strides = array<i32>} : memref<8x1xf32, #tpu.memory_space<vmem>>, vector<8x1xf32>,
    return
  }
  func.func @transform_0(%arg0: i32) -> (i32, i32, i32) {
    %c0_i32 = arith.constant 0 : i32
    %c0_i32_0 = arith.constant 0 : i32
    %c0_i32_1 = arith.constant 0 : i32
    %c0_i32_2 = arith.constant 0 : i32
    return %c0_i32, %c0_i32_0, %c0_i32_1 : i32, i32, i32
  }
  func.func @transform_1(%arg0: i32) -> (i32, i32) {
    %c0_i32 = arith.constant 0 : i32
    %c0_i32_0 = arith.constant 0 : i32
    %c0_i32_1 = arith.constant 0 : i32
    return %c0_i32, %c0_i32_0 : i32, i32
  }
  func.func @transform_2(%arg0: i32) -> (i32, i32) {
    %c0_i32 = arith.constant 0 : i32
    %c0_i32_0 = arith.constant 0 : i32
    %c0_i32_1 = arith.constant 0 : i32
    return %c0_i32, %c0_i32_0 : i32, i32
  }
  func.func @transform_3(%arg0: i32) -> (i32, i32) {
    %c0_i32 = arith.constant 0 : i32
    %c0_i32_0 = arith.constant 0 : i32
    %c0_i32_1 = arith.constant 0 : i32
    return %c0_i32, %c0_i32_0 : i32, i32
  }
  func.func @transform_5(%arg0: i32) -> (i32, i32) {
    %c0_i32 = arith.constant 0 : i32
    %c0_i32_0 = arith.constant 0 : i32
    %c0_i32_1 = arith.constant 0 : i32
    return %c0_i32, %c0_i32_0 : i32, i32
  }
  func.func @transform_7(%arg0: i32) -> (i32, i32) {
    %c0_i32 = arith.constant 0 : i32
    %c0_i32_0 = arith.constant 0 : i32
    %c0_i32_1 = arith.constant 0 : i32
    return %c0_i32, %c0_i32_0 : i32, i32
  }
  func.func @transform_8(%arg0: i32) -> (i32, i32) {
    %c0_i32 = arith.constant 0 : i32
    %c0_i32_0 = arith.constant 0 : i32
    %c0_i32_1 = arith.constant 0 : i32
    return %c0_i32, %c0_i32_0 : i32, i32
  }
  func.func @transform_9(%arg0: i32) -> (i32, i32) {
    %c0_i32 = arith.constant 0 : i32
    %c0_i32_0 = arith.constant 0 : i32
    %c0_i32_1 = arith.constant 0 : i32
    return %c0_i32, %c0_i32_0 : i32, i32
  }
  func.func @transform_10(%arg0: i32) -> (i32, i32) {
    %c0_i32 = arith.constant 0 : i32
    %c0_i32_0 = arith.constant 0 : i32
    %c0_i32_1 = arith.constant 0 : i32
    return %c0_i32, %c0_i32_0 : i32, i32
  }
}

</mosaic_0001>

<llo_original>
// kernel: lstm_model_forward.1
$region0: #{lstm_model_forward.1}
  #allocation0 [shape = 'u32[]', space=smem, size = 0x4, offset = 0x4, fixed_abs, tag = 'smem constant byte address 0x4 - core index']
  #allocation1 [shape = 'u32[144,128]{1,0:T(1,128)}', space=vmem, size = 0x12000, scoped, tag = 'internal scratch']
  #allocation2 [shape = 'f32[8,8,512]{2,1,0:T(8,128)}', space=vmem, size = 0x20000, scoped, tag = 'scratch operand']
  #allocation3 [shape = 'bf16[256,512]{1,0:T(8,128)(2,1)}', space=vmem, size = 0x40000, scoped, tag = 'scratch operand']
  #allocation4 [shape = 'bf16[256,512]{1,0:T(8,128)(2,1)}', space=vmem, size = 0x40000, scoped, tag = 'scratch operand']
  #allocation5 [shape = 's32[2]{0}', space=sflag, size = 0x8, scoped, tag = 'scratch operand']
  #allocation6 [shape = 'f32[1,1]{1,0:T(1,128)S(1)}', space=vmem, size = 0x200, scoped, tag = 'scoped memory for lstm_model_forward.1']
  #allocation9 [shape = 's32[]', space=sflag, size = 0x4, offset = 0, fixed_abs, tag = 'sflag constant byte address 0x0 - dummy sync flag']
  #allocation10 [shape = 's32[]', space=sflag, size = 0x4, offset = 0, fixed_abs, tag = 'sflag constant byte address 0x0 - dummy sync flag']
  #allocation11 [shape = 'u32[]', space=smem, size = 0x4, offset = 0x44, fixed_abs, tag = 'smem constant byte address 0x44 - assertion arg 0']
  #allocation12 [shape = 'u32[]', space=smem, size = 0x4, offset = 0x48, fixed_abs, tag = 'smem constant byte address 0x48 - assertion arg 1']
  #allocation13 [shape = 's32[]', space=sflag, size = 0x4, offset = 0, fixed_abs, tag = 'sflag constant byte address 0x0 - dummy sync flag']
  #allocation14 [shape = 's32[]', space=sflag, size = 0x4, offset = 0, fixed_abs, tag = 'sflag constant byte address 0x0 - dummy sync flag']
  %s0 = inlined_call_operand.vmem [shape: f32[8,8,16], index: 0, kind: input, shape index: {}]
  %s1 = inlined_call_operand.vmem [shape: bf16[16,512], index: 1, kind: input, shape index: {}]
  %s2 = inlined_call_operand.hbm [shape: bf16[128,512], index: 2, kind: input, shape index: {}]
  %s3 = inlined_call_operand.vmem [shape: f32[1,512], index: 3, kind: input, shape index: {}]
  %s4 = inlined_call_operand.hbm [shape: bf16[256,512], index: 4, kind: input, shape index: {}]
  %s5 = inlined_call_operand.vmem [shape: f32[1,512], index: 5, kind: input, shape index: {}]
  %s6 = inlined_call_operand.hbm [shape: bf16[256,512], index: 6, kind: input, shape index: {}]
  %s7 = inlined_call_operand.vmem [shape: f32[1,512], index: 7, kind: input, shape index: {}]
  %s8 = inlined_call_operand.vmem [shape: f32[128,1], index: 8, kind: input, shape index: {}]
  %s9 = inlined_call_operand.<no memory space> [shape: f32[1,1], index: 9, kind: input, shape index: {}]
  %s10 = inlined_call_operand.vmem [shape: f32[8,1], index: 10, kind: output, shape index: {}]
  %s11 = sld [smem:[#allocation0]]
  $region54: #{lstm_model_forward.1} parent=0
    _
  %s13 = ssub.s32 1, %s11
  %s14 = scalar_select 0, %s13, %s11
  %v15 = vstv %s9
  %16 = vst [vmem:[#allocation6] sm:$0x1] %v15
  $region1: #{lstm_model_forward.1} parent=0
    #allocation7 [shape = 'u8[131072]{0}', space=vmem, size = 0x20000, scoped, tag = 'input window, operand 2, single buffered']
    #allocation8 [shape = 's32[1]{0}', space=sflag, size = 0x4, scoped, tag = 'scoped memory for lstm_model_forward.1']
    %17 = vsyncpa [#allocation8], 0
    // Predicated region
    $region2: #{lstm_model_forward.1} parent=1 // pred_check
      _
    $region3: #{lstm_model_forward.1} parent=1 // pred_check_branch
      %19 = sbr.rel (0) target = $region5
    $region4: #{lstm_model_forward.1} parent=1 // pred_region
      _
    $region5: #{lstm_model_forward.1} parent=1 // pred_fallthru
      _
    // Predicated region
    $region6: #{lstm_model_forward.1} parent=1 // pred_check
      _
    $region7: #{lstm_model_forward.1} parent=1 // pred_check_branch
      %21 = sbr.rel (0) target = $region9
    $region8: #{lstm_model_forward.1} parent=1 // pred_region
      _
    $region9: #{lstm_model_forward.1} parent=1 // pred_fallthru
      _
    // Predicated region
    $region10: #{lstm_model_forward.1} parent=1 // pred_check
      _
    $region11: #{lstm_model_forward.1} parent=1 // pred_check_branch
      %23 = sbr.rel (0) target = $region13
    $region12: #{lstm_model_forward.1} parent=1 // pred_region
      %s25 = ssub.s32 4096, 4096
      %26 = vsyncadd [#allocation8], %s25
      %s27 = sshll.u32 [#allocation7], 4
      %s28 = int_to_ptr.vmem [resolvable:$true] %s27
      %33 = dma.hbm_to_vmem [thread:$0]  %s2, 4096, %s28, [#allocation8], 256, 256, 16
    $region13: #{lstm_model_forward.1} parent=1 // pred_fallthru
      _
    // Predicated region
    $region14: #{lstm_model_forward.1} parent=1 // pred_check
      _
    $region15: #{lstm_model_forward.1} parent=1 // pred_check_branch
      %35 = sbr.rel (0) target = $region17
    $region16: #{lstm_model_forward.1} parent=1 // pred_region
      _
    $region17: #{lstm_model_forward.1} parent=1 // pred_fallthru
      _
    // Predicated region
    $region18: #{lstm_model_forward.1} parent=1 // pred_check
      _
    $region19: #{lstm_model_forward.1} parent=1 // pred_check_branch
      %37 = sbr.rel (0) target = $region21
    $region20: #{lstm_model_forward.1} parent=1 // pred_region
      _
    $region21: #{lstm_model_forward.1} parent=1 // pred_fallthru
      _
    // Predicated region
    $region22: #{lstm_model_forward.1} parent=1 // pred_check
      _
    $region23: #{lstm_model_forward.1} parent=1 // pred_check_branch
      %39 = sbr.rel (0) target = $region25
    $region24: #{lstm_model_forward.1} parent=1 // pred_region
      _
    $region25: #{lstm_model_forward.1} parent=1 // pred_fallthru
      _
    // Predicated region
    $region26: #{lstm_model_forward.1} parent=1 // pred_check
      _
    $region27: #{lstm_model_forward.1} parent=1 // pred_check_branch
      %41 = sbr.rel (0) target = $region29
    $region28: #{lstm_model_forward.1} parent=1 // pred_region
      _
    $region29: #{lstm_model_forward.1} parent=1 // pred_fallthru
      _
    // Predicated region
    $region30: #{lstm_model_forward.1} parent=1 // pred_check
      _
    $region31: #{lstm_model_forward.1} parent=1 // pred_check_branch
      %43 = sbr.rel (0) target = $region33
    $region32: #{lstm_model_forward.1} parent=1 // pred_region
      _
    $region33: #{lstm_model_forward.1} parent=1 // pred_fallthru
      _
    // Predicated region
    $region34: #{lstm_model_forward.1} parent=1 // pred_check
      _
    $region35: #{lstm_model_forward.1} parent=1 // pred_check_branch
      %45 = sbr.rel (0) target = $region37
    $region36: #{lstm_model_forward.1} parent=1 // pred_region
      %46 = dma.done [#allocation8], 4096
    $region37: #{lstm_model_forward.1} parent=1 // pred_fallthru
      _
    // Predicated region
    $region38: #{lstm_model_forward.1} parent=1 // pred_check
      _
    $region39: #{lstm_model_forward.1} parent=1 // pred_check_branch
      %49 = sbr.rel target = $region41
    $region40: #{lstm_model_forward.1} parent=1 // pred_region
      %50 = sst [smem:[#allocation11]] [#allocation10]
      %51 = sst [smem:[#allocation12]] [#allocation9]
    $region41: #{lstm_model_forward.1} parent=1 // pred_fallthru
      _
    %53 = shalt.err (0)
    %s55 = sshll.u32 [#allocation3], 4
    %s56 = int_to_ptr.vmem [resolvable:$true] %s55
    %58 = dma.hbm_to_vmem [thread:$0]  %s4, 8192, %s56, [#allocation5]
    %s59 = scalar_lea.sflag [#allocation5], 1
    // Predicated region
    $region42: #{lstm_model_forward.1} parent=1 // pred_check
      _
    $region43: #{lstm_model_forward.1} parent=1 // pred_check_branch
      %61 = sbr.rel target = $region45
    $region44: #{lstm_model_forward.1} parent=1 // pred_region
      %62 = sst [smem:[#allocation11]] [#allocation14]
      %63 = sst [smem:[#allocation12]] [#allocation13]
    $region45: #{lstm_model_forward.1} parent=1 // pred_fallthru
      _
    %65 = shalt.err (0)
    %s67 = sshll.u32 [#allocation4], 4
    %s68 = int_to_ptr.vmem [resolvable:$true] %s67
    %70 = dma.hbm_to_vmem [thread:$0]  %s6, 8192, %s68, %s59
    %v71 = vld [vmem:[%s0] sm:$0xff]
    %v72 = vld [vmem:[%s0 + $0x8] sm:$0xff]
    %v73 = vld [vmem:[%s0 + $0x10] sm:$0xff]
    %v74 = vld [vmem:[%s0 + $0x18] sm:$0xff]
    %v75 = vld [vmem:[%s0 + $0x20] sm:$0xff]
    %v76 = vld [vmem:[%s0 + $0x28] sm:$0xff]
    %v77 = vld [vmem:[%s0 + $0x30] sm:$0xff]
    %v78 = vld [vmem:[%s0 + $0x38] sm:$0xff]
    %v79 = vpack.c.bf16 %v72, %v71
    %v80 = vpack.c.bf16 %v74, %v73
    %v81 = vpack.c.bf16 %v76, %v75
    %v82 = vpack.c.bf16 %v78, %v77
    %v83 = vld [vmem:[%s1] sm:$0xff]
    %v84 = vld [vmem:[%s1 + $0x8] sm:$0xff]
    %v85 = vld [vmem:[%s1 + $0x10] sm:$0xff]
    %v86 = vld [vmem:[%s1 + $0x18] sm:$0xff]
    %v87 = vld [vmem:[%s3] sm:$0xf]
    %v89 = vlaneseq
    %v90 = vshrl.u32 %v89, 7
    %v91 = vsub.s32 0, %v90
    %v92 = vrot.slane %v87, %v91
    %v93 = vlaneseq
    %v94 = vshrl.u32 %v93, 7
    %v95 = vsub.s32 1, %v94
    %v96 = vrot.slane %v87, %v95
    %v97 = vlaneseq
    %v98 = vshrl.u32 %v97, 7
    %v99 = vsub.s32 2, %v98
    %v100 = vrot.slane %v87, %v99
    %v101 = vlaneseq
    %v102 = vshrl.u32 %v101, 7
    %v103 = vsub.s32 3, %v102
    %v104 = vrot.slane %v87, %v103
    %v113 = vunpack.c.l.b16 %v83
    %v114 = vunpack.c.h.b16 %v83
    %v115 = vunpack.c.l.b16 %v84
    %v116 = vunpack.c.h.b16 %v84
    %v117 = vunpack.c.l.b16 %v85
    %v118 = vunpack.c.h.b16 %v85
    %v119 = vunpack.c.l.b16 %v86
    %v120 = vunpack.c.h.b16 %v86
    %v121 = vpack.c.b16 %v117, %v113
    %v122 = vpack.c.b16 %v118, %v114
    %v123 = vpack.c.b16 %v119, %v115
    %v124 = vpack.c.b16 %v120, %v116
    %vm129 = vcmask 130048
    %v131 = vsel %vm129, %v79, 0
    %v134 = vsel %vm129, %v80, 0
    %v137 = vsel %vm129, %v81, 0
    %v140 = vsel %vm129, %v82, 0
    %142 = vmatprep.subr.bf16.mxu0 0
    %143 = vmatpush1.bf16.msra.mxu0 0
    %144 = vmatprep.subr.bf16.mxu0 0
    %145 = vmatpush1.bf16.msra.mxu0 0
    %146 = vmatprep.subr.bf16.mxu0 0
    %147 = vmatpush1.bf16.msra.mxu0 0
    %148 = vmatprep.subr.bf16.mxu0 0
    %149 = vmatpush1.bf16.msra.mxu0 0
    %150 = vmatprep.subr.bf16.mxu0 0
    %151 = vmatpush1.bf16.msra.mxu0 0
    %152 = vmatprep.subr.bf16.mxu0 0
    %153 = vmatpush1.bf16.msra.mxu0 0
    %154 = vmatprep.subr.bf16.mxu0 0
    %155 = vmatpush1.bf16.msra.mxu0 0
    %156 = vmatprep.subr.bf16.mxu0 %v122
    %157 = vmatpush1.bf16.msra.mxu0 %v121
    %158 = vmatprep.subr.bf16.mxu0 0
    %159 = vmatpush2.bf16.msra.mxu0 0
    %160 = vmatprep.subr.bf16.mxu0 0
    %161 = vmatpush2.bf16.msra.mxu0 0
    %162 = vmatprep.subr.bf16.mxu0 0
    %163 = vmatpush2.bf16.msra.mxu0 0
    %164 = vmatprep.subr.bf16.mxu0 0
    %165 = vmatpush2.bf16.msra.mxu0 0
    %166 = vmatprep.subr.bf16.mxu0 0
    %167 = vmatpush2.bf16.msra.mxu0 0
    %168 = vmatprep.subr.bf16.mxu0 0
    %169 = vmatpush2.bf16.msra.mxu0 0
    %170 = vmatprep.subr.bf16.mxu0 0
    %171 = vmatpush2.bf16.msra.mxu0 0
    %172 = vmatprep.subr.bf16.mxu0 0
    %173 = vmatpush2.bf16.msra.mxu0 0
    %174 = vmatprep.mubr.bf16.mxu0 0
    %175 = vmatmul.mubr.bf16.gmra.mxu0 %v131
    %v176 = vpop.f32.mrf.mxu0
    %v177 = vadd.f32 %v92, %v176
    %v178 = vpop.f32.mrf.mxu0
    %v179 = vadd.f32 %v96, %v178
    %v180 = vpop.f32.mrf.mxu0
    %v181 = vadd.f32 %v92, %v180
    %v182 = vpop.f32.mrf.mxu0
    %v183 = vadd.f32 %v96, %v182
    %184 = vmatprep.mubr.bf16.mxu0 0
    %185 = vmatmul.mubr.bf16.gmra.mxu0 %v134
    %v186 = vpop.f32.mrf.mxu0
    %v187 = vadd.f32 %v92, %v186
    %v188 = vpop.f32.mrf.mxu0
    %v189 = vadd.f32 %v96, %v188
    %v190 = vpop.f32.mrf.mxu0
    %v191 = vadd.f32 %v92, %v190
    %v192 = vpop.f32.mrf.mxu0
    %v193 = vadd.f32 %v96, %v192
    %194 = vmatprep.mubr.bf16.mxu0 0
    %195 = vmatmul.mubr.bf16.gmra.mxu0 %v137
    %v196 = vpop.f32.mrf.mxu0
    %v197 = vadd.f32 %v92, %v196
    %v198 = vpop.f32.mrf.mxu0
    %v199 = vadd.f32 %v96, %v198
    %v200 = vpop.f32.mrf.mxu0
    %v201 = vadd.f32 %v92, %v200
    %v202 = vpop.f32.mrf.mxu0
    %v203 = vadd.f32 %v96, %v202
    %204 = vmatprep.mubr.bf16.mxu0 0
    %205 = vmatmul.mubr.bf16.gmra.mxu0 %v140
    %v206 = vpop.f32.mrf.mxu0
    %v207 = vadd.f32 %v92, %v206
    %v208 = vpop.f32.mrf.mxu0
    %v209 = vadd.f32 %v96, %v208
    %v210 = vpop.f32.mrf.mxu0
    %v211 = vadd.f32 %v92, %v210
    %v212 = vpop.f32.mrf.mxu0
    %v213 = vadd.f32 %v96, %v212
    %214 = vdwg.mxu0
    %215 = vmatprep.subr.bf16.mxu0 0
    %216 = vmatpush1.bf16.msra.mxu0 0
    %217 = vmatprep.subr.bf16.mxu0 0
    %218 = vmatpush1.bf16.msra.mxu0 0
    %219 = vmatprep.subr.bf16.mxu0 0
    %220 = vmatpush1.bf16.msra.mxu0 0
    %221 = vmatprep.subr.bf16.mxu0 0
    %222 = vmatpush1.bf16.msra.mxu0 0
    %223 = vmatprep.subr.bf16.mxu0 0
    %224 = vmatpush1.bf16.msra.mxu0 0
    %225 = vmatprep.subr.bf16.mxu0 0
    %226 = vmatpush1.bf16.msra.mxu0 0
    %227 = vmatprep.subr.bf16.mxu0 0
    %228 = vmatpush1.bf16.msra.mxu0 0
    %229 = vmatprep.subr.bf16.mxu0 %v124
    %230 = vmatpush1.bf16.msra.mxu0 %v123
    %231 = vmatprep.subr.bf16.mxu0 0
    %232 = vmatpush2.bf16.msra.mxu0 0
    %233 = vmatprep.subr.bf16.mxu0 0
    %234 = vmatpush2.bf16.msra.mxu0 0
    %235 = vmatprep.subr.bf16.mxu0 0
    %236 = vmatpush2.bf16.msra.mxu0 0
    %237 = vmatprep.subr.bf16.mxu0 0
    %238 = vmatpush2.bf16.msra.mxu0 0
    %239 = vmatprep.subr.bf16.mxu0 0
    %240 = vmatpush2.bf16.msra.mxu0 0
    %241 = vmatprep.subr.bf16.mxu0 0
    %242 = vmatpush2.bf16.msra.mxu0 0
    %243 = vmatprep.subr.bf16.mxu0 0
    %244 = vmatpush2.bf16.msra.mxu0 0
    %245 = vmatprep.subr.bf16.mxu0 0
    %246 = vmatpush2.bf16.msra.mxu0 0
    %247 = vmatprep.mubr.bf16.mxu0 0
    %248 = vmatmul.mubr.bf16.gmra.mxu0 %v131
    %v249 = vpop.f32.mrf.mxu0
    %v250 = vadd.f32 %v100, %v249
    %v251 = vpop.f32.mrf.mxu0
    %v252 = vadd.f32 %v104, %v251
    %v253 = vpop.f32.mrf.mxu0
    %v254 = vadd.f32 %v100, %v253
    %v255 = vpop.f32.mrf.mxu0
    %v256 = vadd.f32 %v104, %v255
    %257 = vmatprep.mubr.bf16.mxu0 0
    %258 = vmatmul.mubr.bf16.gmra.mxu0 %v134
    %v259 = vpop.f32.mrf.mxu0
    %v260 = vadd.f32 %v100, %v259
    %v261 = vpop.f32.mrf.mxu0
    %v262 = vadd.f32 %v104, %v261
    %v263 = vpop.f32.mrf.mxu0
    %v264 = vadd.f32 %v100, %v263
    %v265 = vpop.f32.mrf.mxu0
    %v266 = vadd.f32 %v104, %v265
    %267 = vmatprep.mubr.bf16.mxu0 0
    %268 = vmatmul.mubr.bf16.gmra.mxu0 %v137
    %v269 = vpop.f32.mrf.mxu0
    %v270 = vadd.f32 %v100, %v269
    %v271 = vpop.f32.mrf.mxu0
    %v272 = vadd.f32 %v104, %v271
    %v273 = vpop.f32.mrf.mxu0
    %v274 = vadd.f32 %v100, %v273
    %v275 = vpop.f32.mrf.mxu0
    %v276 = vadd.f32 %v104, %v275
    %277 = vmatprep.mubr.bf16.mxu0 0
    %278 = vmatmul.mubr.bf16.gmra.mxu0 %v140
    %v279 = vpop.f32.mrf.mxu0
    %v280 = vadd.f32 %v100, %v279
    %v281 = vpop.f32.mrf.mxu0
    %v282 = vadd.f32 %v104, %v281
    %v283 = vpop.f32.mrf.mxu0
    %v284 = vadd.f32 %v100, %v283
    %v285 = vpop.f32.mrf.mxu0
    %v286 = vadd.f32 %v104, %v285
    %287 = vdwg.mxu0
    %288 = vst [vmem:[#allocation2] sm:$0xff] %v177
    %289 = vst [vmem:[#allocation2 + $0x8] sm:$0xff] %v179
    %290 = vst [vmem:[#allocation2 + $0x10] sm:$0xff] %v250
    %291 = vst [vmem:[#allocation2 + $0x18] sm:$0xff] %v252
    %292 = vst [vmem:[#allocation2 + $0x20] sm:$0xff] %v181
    %293 = vst [vmem:[#allocation2 + $0x28] sm:$0xff] %v183
    %294 = vst [vmem:[#allocation2 + $0x30] sm:$0xff] %v254
    %295 = vst [vmem:[#allocation2 + $0x38] sm:$0xff] %v256
    %296 = vst [vmem:[#allocation2 + $0x40] sm:$0xff] %v187
    %297 = vst [vmem:[#allocation2 + $0x48] sm:$0xff] %v189
    %298 = vst [vmem:[#allocation2 + $0x50] sm:$0xff] %v260
    %299 = vst [vmem:[#allocation2 + $0x58] sm:$0xff] %v262
    %300 = vst [vmem:[#allocation2 + $0x60] sm:$0xff] %v191
    %301 = vst [vmem:[#allocation2 + $0x68] sm:$0xff] %v193
    %302 = vst [vmem:[#allocation2 + $0x70] sm:$0xff] %v264
    %303 = vst [vmem:[#allocation2 + $0x78] sm:$0xff] %v266
    %304 = vst [vmem:[#allocation2 + $0x80] sm:$0xff] %v197
    %305 = vst [vmem:[#allocation2 + $0x88] sm:$0xff] %v199
    %306 = vst [vmem:[#allocation2 + $0x90] sm:$0xff] %v270
    %307 = vst [vmem:[#allocation2 + $0x98] sm:$0xff] %v272
    %308 = vst [vmem:[#allocation2 + $0xa0] sm:$0xff] %v201
    %309 = vst [vmem:[#allocation2 + $0xa8] sm:$0xff] %v203
    %310 = vst [vmem:[#allocation2 + $0xb0] sm:$0xff] %v274
    %311 = vst [vmem:[#allocation2 + $0xb8] sm:$0xff] %v276
    %312 = vst [vmem:[#allocation2 + $0xc0] sm:$0xff] %v207
    %313 = vst [vmem:[#allocation2 + $0xc8] sm:$0xff] %v209
    %314 = vst [vmem:[#allocation2 + $0xd0] sm:$0xff] %v280
    %315 = vst [vmem:[#allocation2 + $0xd8] sm:$0xff] %v282
    %316 = vst [vmem:[#allocation2 + $0xe0] sm:$0xff] %v211
    %317 = vst [vmem:[#allocation2 + $0xe8] sm:$0xff] %v213
    %318 = vst [vmem:[#allocation2 + $0xf0] sm:$0xff] %v284
    %319 = vst [vmem:[#allocation2 + $0xf8] sm:$0xff] %v286
    %v320 = vld [vmem:[#allocation2] sm:$0xff]
    %v321 = vld [vmem:[#allocation2 + $0x8] sm:$0xff]
    %v322 = vld [vmem:[#allocation2 + $0x10] sm:$0xff]
    %v323 = vld [vmem:[#allocation2 + $0x18] sm:$0xff]
    %v324 = vld [vmem:[#allocation7] sm:$0xff]
    %v325 = vld [vmem:[#allocation7 + $0x8] sm:$0xff]
    %v326 = vld [vmem:[#allocation7 + $0x10] sm:$0xff]
    %v327 = vld [vmem:[#allocation7 + $0x18] sm:$0xff]
    %v328 = vld [vmem:[#allocation7 + $0x20] sm:$0xff]
    %v329 = vld [vmem:[#allocation7 + $0x28] sm:$0xff]
    %v330 = vld [vmem:[#allocation7 + $0x30] sm:$0xff]
    %v331 = vld [vmem:[#allocation7 + $0x38] sm:$0xff]
    %v332 = vld [vmem:[#allocation7 + $0x40] sm:$0xff]
    %v333 = vld [vmem:[#allocation7 + $0x48] sm:$0xff]
    %v334 = vld [vmem:[#allocation7 + $0x50] sm:$0xff]
    %v335 = vld [vmem:[#allocation7 + $0x58] sm:$0xff]
    %v336 = vld [vmem:[#allocation7 + $0x60] sm:$0xff]
    %v337 = vld [vmem:[#allocation7 + $0x68] sm:$0xff]
    %v338 = vld [vmem:[#allocation7 + $0x70] sm:$0xff]
    %v339 = vld [vmem:[#allocation7 + $0x78] sm:$0xff]
    %v340 = vld [vmem:[#allocation7 + $0x80] sm:$0xff]
    %v341 = vld [vmem:[#allocation7 + $0x88] sm:$0xff]
    %v342 = vld [vmem:[#allocation7 + $0x90] sm:$0xff]
    %v343 = vld [vmem:[#allocation7 + $0x98] sm:$0xff]
    %v344 = vld [vmem:[#allocation7 + $0xa0] sm:$0xff]
    %v345 = vld [vmem:[#allocation7 + $0xa8] sm:$0xff]
    %v346 = vld [vmem:[#allocation7 + $0xb0] sm:$0xff]
    %v347 = vld [vmem:[#allocation7 + $0xb8] sm:$0xff]
    %v348 = vld [vmem:[#allocation7 + $0xc0] sm:$0xff]
    %v349 = vld [vmem:[#allocation7 + $0xc8] sm:$0xff]
    %v350 = vld [vmem:[#allocation7 + $0xd0] sm:$0xff]
    %v351 = vld [vmem:[#allocation7 + $0xd8] sm:$0xff]
    %v352 = vld [vmem:[#allocation7 + $0xe0] sm:$0xff]
    %v353 = vld [vmem:[#allocation7 + $0xe8] sm:$0xff]
    %v354 = vld [vmem:[#allocation7 + $0xf0] sm:$0xff]
    %v355 = vld [vmem:[#allocation7 + $0xf8] sm:$0xff]
    %v388 = vunpack.c.l.b16 %v324
    %v389 = vunpack.c.h.b16 %v324
    %v390 = vunpack.c.l.b16 %v325
    %v391 = vunpack.c.h.b16 %v325
    %v392 = vunpack.c.l.b16 %v326
    %v393 = vunpack.c.h.b16 %v326
    %v394 = vunpack.c.l.b16 %v327
    %v395 = vunpack.c.h.b16 %v327
    %v396 = vunpack.c.l.b16 %v328
    %v397 = vunpack.c.h.b16 %v328
    %v398 = vunpack.c.l.b16 %v329
    %v399 = vunpack.c.h.b16 %v329
    %v400 = vunpack.c.l.b16 %v330
    %v401 = vunpack.c.h.b16 %v330
    %v402 = vunpack.c.l.b16 %v331
    %v403 = vunpack.c.h.b16 %v331
    %v404 = vunpack.c.l.b16 %v332
    %v405 = vunpack.c.h.b16 %v332
    %v406 = vunpack.c.l.b16 %v333
    %v407 = vunpack.c.h.b16 %v333
    %v408 = vunpack.c.l.b16 %v334
    %v409 = vunpack.c.h.b16 %v334
    %v410 = vunpack.c.l.b16 %v335
    %v411 = vunpack.c.h.b16 %v335
    %v412 = vunpack.c.l.b16 %v336
    %v413 = vunpack.c.h.b16 %v336
    %v414 = vunpack.c.l.b16 %v337
    %v415 = vunpack.c.h.b16 %v337
    %v416 = vunpack.c.l.b16 %v338
    %v417 = vunpack.c.h.b16 %v338
    %v418 = vunpack.c.l.b16 %v339
    %v419 = vunpack.c.h.b16 %v339
    %v420 = vunpack.c.l.b16 %v340
    %v421 = vunpack.c.h.b16 %v340
    %v422 = vunpack.c.l.b16 %v341
    %v423 = vunpack.c.h.b16 %v341
    %v424 = vunpack.c.l.b16 %v342
    %v425 = vunpack.c.h.b16 %v342
    %v426 = vunpack.c.l.b16 %v343
    %v427 = vunpack.c.h.b16 %v343
    %v428 = vunpack.c.l.b16 %v344
    %v429 = vunpack.c.h.b16 %v344
    %v430 = vunpack.c.l.b16 %v345
    %v431 = vunpack.c.h.b16 %v345
    %v432 = vunpack.c.l.b16 %v346
    %v433 = vunpack.c.h.b16 %v346
    %v434 = vunpack.c.l.b16 %v347
    %v435 = vunpack.c.h.b16 %v347
    %v436 = vunpack.c.l.b16 %v348
    %v437 = vunpack.c.h.b16 %v348
    %v438 = vunpack.c.l.b16 %v349
    %v439 = vunpack.c.h.b16 %v349
    %v440 = vunpack.c.l.b16 %v350
    %v441 = vunpack.c.h.b16 %v350
    %v442 = vunpack.c.l.b16 %v351
    %v443 = vunpack.c.h.b16 %v351
    %v444 = vunpack.c.l.b16 %v352
    %v445 = vunpack.c.h.b16 %v352
    %v446 = vunpack.c.l.b16 %v353
    %v447 = vunpack.c.h.b16 %v353
    %v448 = vunpack.c.l.b16 %v354
    %v449 = vunpack.c.h.b16 %v354
    %v450 = vunpack.c.l.b16 %v355
    %v451 = vunpack.c.h.b16 %v355
    %v452 = vpack.c.b16 %v392, %v388
    %v453 = vpack.c.b16 %v393, %v389
    %v454 = vpack.c.b16 %v394, %v390
    %v455 = vpack.c.b16 %v395, %v391
    %v456 = vpack.c.b16 %v400, %v396
    %v457 = vpack.c.b16 %v401, %v397
    %v458 = vpack.c.b16 %v402, %v398
    %v459 = vpack.c.b16 %v403, %v399
    %v460 = vpack.c.b16 %v408, %v404
    %v461 = vpack.c.b16 %v409, %v405
    %v462 = vpack.c.b16 %v410, %v406
    %v463 = vpack.c.b16 %v411, %v407
    %v464 = vpack.c.b16 %v416, %v412
    %v465 = vpack.c.b16 %v417, %v413
    %v466 = vpack.c.b16 %v418, %v414
    %v467 = vpack.c.b16 %v419, %v415
    %v468 = vpack.c.b16 %v424, %v420
    %v469 = vpack.c.b16 %v425, %v421
    %v470 = vpack.c.b16 %v426, %v422
    %v471 = vpack.c.b16 %v427, %v423
    %v472 = vpack.c.b16 %v432, %v428
    %v473 = vpack.c.b16 %v433, %v429
    %v474 = vpack.c.b16 %v434, %v430
    %v475 = vpack.c.b16 %v435, %v431
    %v476 = vpack.c.b16 %v440, %v436
    %v477 = vpack.c.b16 %v441, %v437
    %v478 = vpack.c.b16 %v442, %v438
    %v479 = vpack.c.b16 %v443, %v439
    %v480 = vpack.c.b16 %v448, %v444
    %v481 = vpack.c.b16 %v449, %v445
    %v482 = vpack.c.b16 %v450, %v446
    %v483 = vpack.c.b16 %v451, %v447
    %516 = vmatprep.subr.bf16.mxu0 %v481
    %517 = vmatpush1.bf16.msra.mxu0 %v480
    %518 = vmatprep.subr.bf16.mxu0 %v477
    %519 = vmatpush1.bf16.msra.mxu0 %v476
    %520 = vmatprep.subr.bf16.mxu0 %v473
    %521 = vmatpush1.bf16.msra.mxu0 %v472
    %522 = vmatprep.subr.bf16.mxu0 %v469
    %523 = vmatpush1.bf16.msra.mxu0 %v468
    %524 = vmatprep.subr.bf16.mxu0 %v465
    %525 = vmatpush1.bf16.msra.mxu0 %v464
    %526 = vmatprep.subr.bf16.mxu0 %v461
    %527 = vmatpush1.bf16.msra.mxu0 %v460
    %528 = vmatprep.subr.bf16.mxu0 %v457
    %529 = vmatpush1.bf16.msra.mxu0 %v456
    %530 = vmatprep.subr.bf16.mxu0 %v453
    %531 = vmatpush1.bf16.msra.mxu0 %v452
    %532 = vmatprep.subr.bf16.mxu0 0
    %533 = vmatpush2.bf16.msra.mxu0 0
    %534 = vmatprep.subr.bf16.mxu0 0
    %535 = vmatpush2.bf16.msra.mxu0 0
    %536 = vmatprep.subr.bf16.mxu0 0
    %537 = vmatpush2.bf16.msra.mxu0 0
    %538 = vmatprep.subr.bf16.mxu0 0
    %539 = vmatpush2.bf16.msra.mxu0 0
    %540 = vmatprep.subr.bf16.mxu0 0
    %541 = vmatpush2.bf16.msra.mxu0 0
    %542 = vmatprep.subr.bf16.mxu0 0
    %543 = vmatpush2.bf16.msra.mxu0 0
    %544 = vmatprep.subr.bf16.mxu0 0
    %545 = vmatpush2.bf16.msra.mxu0 0
    %546 = vmatprep.subr.bf16.mxu0 0
    %547 = vmatpush2.bf16.msra.mxu0 0
    %548 = vmatprep.mubr.bf16.mxu0 0
    %549 = vmatmul.mubr.bf16.gmra.mxu0 0
    %v550 = vpop.f32.mrf.mxu0
    %v551 = vadd.f32 0.0, %v550
    %v552 = vpop.f32.mrf.mxu0
    %v553 = vadd.f32 0.0, %v552
    %v554 = vpop.f32.mrf.mxu0
    %v555 = vpop.f32.mrf.mxu0
    %556 = vdwg.mxu0
    %557 = vmatprep.subr.bf16.mxu0 %v483
    %558 = vmatpush1.bf16.msra.mxu0 %v482
    %559 = vmatprep.subr.bf16.mxu0 %v479
    %560 = vmatpush1.bf16.msra.mxu0 %v478
    %561 = vmatprep.subr.bf16.mxu0 %v475
    %562 = vmatpush1.bf16.msra.mxu0 %v474
    %563 = vmatprep.subr.bf16.mxu0 %v471
    %564 = vmatpush1.bf16.msra.mxu0 %v470
    %565 = vmatprep.subr.bf16.mxu0 %v467
    %566 = vmatpush1.bf16.msra.mxu0 %v466
    %567 = vmatprep.subr.bf16.mxu0 %v463
    %568 = vmatpush1.bf16.msra.mxu0 %v462
    %569 = vmatprep.subr.bf16.mxu0 %v459
    %570 = vmatpush1.bf16.msra.mxu0 %v458
    %571 = vmatprep.subr.bf16.mxu0 %v455
    %572 = vmatpush1.bf16.msra.mxu0 %v454
    %573 = vmatprep.subr.bf16.mxu0 0
    %574 = vmatpush2.bf16.msra.mxu0 0
    %575 = vmatprep.subr.bf16.mxu0 0
    %576 = vmatpush2.bf16.msra.mxu0 0
    %577 = vmatprep.subr.bf16.mxu0 0
    %578 = vmatpush2.bf16.msra.mxu0 0
    %579 = vmatprep.subr.bf16.mxu0 0
    %580 = vmatpush2.bf16.msra.mxu0 0
    %581 = vmatprep.subr.bf16.mxu0 0
    %582 = vmatpush2.bf16.msra.mxu0 0
    %583 = vmatprep.subr.bf16.mxu0 0
    %584 = vmatpush2.bf16.msra.mxu0 0
    %585 = vmatprep.subr.bf16.mxu0 0
    %586 = vmatpush2.bf16.msra.mxu0 0
    %587 = vmatprep.subr.bf16.mxu0 0
    %588 = vmatpush2.bf16.msra.mxu0 0
    %589 = vmatprep.mubr.bf16.mxu0 0
    %590 = vmatmul.mubr.bf16.gmra.mxu0 0
    %v591 = vpop.f32.mrf.mxu0
    %v592 = vadd.f32 0.0, %v591
    %v593 = vpop.f32.mrf.mxu0
    %v594 = vadd.f32 0.0, %v593
    %v595 = vpop.f32.mrf.mxu0
    %v596 = vpop.f32.mrf.mxu0
    %597 = vdwg.mxu0
    %v598 = vadd.f32 %v320, %v551
    %v599 = vadd.f32 %v321, %v553
    %v600 = vadd.f32 %v322, %v592
    %v601 = vadd.f32 %v323, %v594
    %v602 = vxor.u32 %v598, 2147483648
    %v603 = vmul.f32 %v602, 1.442695
    %v604 = vpow.pop %v603
    %v605 = vadd.f32 %v604, 1.0
    %v606 = vrcp.pop %v605
    %v607 = vmul.f32 1.0, %v606
    %v608 = vxor.u32 %v599, 2147483648
    %v609 = vmul.f32 %v608, 1.442695
    %v610 = vpow.pop %v609
    %v611 = vadd.f32 %v610, 1.0
    %v612 = vrcp.pop %v611
    %v613 = vmul.f32 1.0, %v612
    %v614 = vtanh.pop %v600
    %v615 = vxor.u32 %v601, 2147483648
    %v616 = vmul.f32 %v615, 1.442695
    %v617 = vpow.pop %v616
    %v618 = vadd.f32 %v617, 1.0
    %v619 = vrcp.pop %v618
    %v620 = vmul.f32 1.0, %v619
    %v621 = vmul.f32 %v613, 0.0
    %v622 = vmul.f32 %v607, %v614
    %v623 = vadd.f32 %v621, %v622
    %v624 = vtanh.pop %v623
    %v625 = vmul.f32 %v620, %v624
    %s626 = smul.u32 4, 32
    %s627 = smul.u32 %s626, 4
    %s628 = sshll.u32 %s627, 4
    %629 = dma.done [#allocation5], %s628
    %s630 = scalar_lea.vmem [#allocation2], 32
    %v631 = vld [vmem:[%s630] sm:$0xff]
    %v632 = vld [vmem:[%s630 + $0x8] sm:$0xff]
    %v633 = vld [vmem:[%s630 + $0x10] sm:$0xff]
    %v634 = vld [vmem:[%s630 + $0x18] sm:$0xff]
    %v635 = vpack.c.bf16 %v625, %v625
    %v636 = vld [vmem:[#allocation7] sm:$0xff]
    %v637 = vld [vmem:[#allocation7 + $0x8] sm:$0xff]
    %v638 = vld [vmem:[#allocation7 + $0x10] sm:$0xff]
    %v639 = vld [vmem:[#allocation7 + $0x18] sm:$0xff]
    %v640 = vld [vmem:[#allocation7 + $0x20] sm:$0xff]
    %v641 = vld [vmem:[#allocation7 + $0x28] sm:$0xff]
    %v642 = vld [vmem:[#allocation7 + $0x30] sm:$0xff]
    %v643 = vld [vmem:[#allocation7 + $0x38] sm:$0xff]
    %v644 = vld [vmem:[#allocation7 + $0x40] sm:$0xff]
    %v645 = vld [vmem:[#allocation7 + $0x48] sm:$0xff]
    %v646 = vld [vmem:[#allocation7 + $0x50] sm:$0xff]
    %v647 = vld [vmem:[#allocation7 + $0x58] sm:$0xff]
    %v648 = vld [vmem:[#allocation7 + $0x60] sm:$0xff]
    %v649 = vld [vmem:[#allocation7 + $0x68] sm:$0xff]
    %v650 = vld [vmem:[#allocation7 + $0x70] sm:$0xff]
    %v651 = vld [vmem:[#allocation7 + $0x78] sm:$0xff]
    %v652 = vld [vmem:[#allocation7 + $0x80] sm:$0xff]
    %v653 = vld [vmem:[#allocation7 + $0x88] sm:$0xff]
    %v654 = vld [vmem:[#allocation7 + $0x90] sm:$0xff]
    %v655 = vld [vmem:[#allocation7 + $0x98] sm:$0xff]
    %v656 = vld [vmem:[#allocation7 + $0xa0] sm:$0xff]
    %v657 = vld [vmem:[#allocation7 + $0xa8] sm:$0xff]
    %v658 = vld [vmem:[#allocation7 + $0xb0] sm:$0xff]
    %v659 = vld [vmem:[#allocation7 + $0xb8] sm:$0xff]
    %v660 = vld [vmem:[#allocation7 + $0xc0] sm:$0xff]
    %v661 = vld [vmem:[#allocation7 + $0xc8] sm:$0xff]
    %v662 = vld [vmem:[#allocation7 + $0xd0] sm:$0xff]
    %v663 = vld [vmem:[#allocation7 + $0xd8] sm:$0xff]
    %v664 = vld [vmem:[#allocation7 + $0xe0] sm:$0xff]
    %v665 = vld [vmem:[#allocation7 + $0xe8] sm:$0xff]
    %v666 = vld [vmem:[#allocation7 + $0xf0] sm:$0xff]
    %v667 = vld [vmem:[#allocation7 + $0xf8] sm:$0xff]
    %v700 = vunpack.c.l.b16 %v636
    %v701 = vunpack.c.h.b16 %v636
    %v702 = vunpack.c.l.b16 %v637
    %v703 = vunpack.c.h.b16 %v637
    %v704 = vunpack.c.l.b16 %v638
    %v705 = vunpack.c.h.b16 %v638
    %v706 = vunpack.c.l.b16 %v639
    %v707 = vunpack.c.h.b16 %v639
    %v708 = vunpack.c.l.b16 %v640
    %v709 = vunpack.c.h.b16 %v640
    %v710 = vunpack.c.l.b16 %v641
    %v711 = vunpack.c.h.b16 %v641
    %v712 = vunpack.c.l.b16 %v642
    %v713 = vunpack.c.h.b16 %v642
    %v714 = vunpack.c.l.b16 %v643
    %v715 = vunpack.c.h.b16 %v643
    %v716 = vunpack.c.l.b16 %v644
    %v717 = vunpack.c.h.b16 %v644
    %v718 = vunpack.c.l.b16 %v645
    %v719 = vunpack.c.h.b16 %v645
    %v720 = vunpack.c.l.b16 %v646
    %v721 = vunpack.c.h.b16 %v646
    %v722 = vunpack.c.l.b16 %v647
    %v723 = vunpack.c.h.b16 %v647
    %v724 = vunpack.c.l.b16 %v648
    %v725 = vunpack.c.h.b16 %v648
    %v726 = vunpack.c.l.b16 %v649
    %v727 = vunpack.c.h.b16 %v649
    %v728 = vunpack.c.l.b16 %v650
    %v729 = vunpack.c.h.b16 %v650
    %v730 = vunpack.c.l.b16 %v651
    %v731 = vunpack.c.h.b16 %v651
    %v732 = vunpack.c.l.b16 %v652
    %v733 = vunpack.c.h.b16 %v652
    %v734 = vunpack.c.l.b16 %v653
    %v735 = vunpack.c.h.b16 %v653
    %v736 = vunpack.c.l.b16 %v654
    %v737 = vunpack.c.h.b16 %v654
    %v738 = vunpack.c.l.b16 %v655
    %v739 = vunpack.c.h.b16 %v655
    %v740 = vunpack.c.l.b16 %v656
    %v741 = vunpack.c.h.b16 %v656
    %v742 = vunpack.c.l.b16 %v657
    %v743 = vunpack.c.h.b16 %v657
    %v744 = vunpack.c.l.b16 %v658
    %v745 = vunpack.c.h.b16 %v658
    %v746 = vunpack.c.l.b16 %v659
    %v747 = vunpack.c.h.b16 %v659
    %v748 = vunpack.c.l.b16 %v660
    %v749 = vunpack.c.h.b16 %v660
    %v750 = vunpack.c.l.b16 %v661
    %v751 = vunpack.c.h.b16 %v661
    %v752 = vunpack.c.l.b16 %v662
    %v753 = vunpack.c.h.b16 %v662
    %v754 = vunpack.c.l.b16 %v663
    %v755 = vunpack.c.h.b16 %v663
    %v756 = vunpack.c.l.b16 %v664
    %v757 = vunpack.c.h.b16 %v664
    %v758 = vunpack.c.l.b16 %v665
    %v759 = vunpack.c.h.b16 %v665
    %v760 = vunpack.c.l.b16 %v666
    %v761 = vunpack.c.h.b16 %v666
    %v762 = vunpack.c.l.b16 %v667
    %v763 = vunpack.c.h.b16 %v667
    %v764 = vpack.c.b16 %v704, %v700
    %v765 = vpack.c.b16 %v705, %v701
    %v766 = vpack.c.b16 %v706, %v702
    %v767 = vpack.c.b16 %v707, %v703
    %v768 = vpack.c.b16 %v712, %v708
    %v769 = vpack.c.b16 %v713, %v709
    %v770 = vpack.c.b16 %v714, %v710
    %v771 = vpack.c.b16 %v715, %v711
    %v772 = vpack.c.b16 %v720, %v716
    %v773 = vpack.c.b16 %v721, %v717
    %v774 = vpack.c.b16 %v722, %v718
    %v775 = vpack.c.b16 %v723, %v719
    %v776 = vpack.c.b16 %v728, %v724
    %v777 = vpack.c.b16 %v729, %v725
    %v778 = vpack.c.b16 %v730, %v726
    %v779 = vpack.c.b16 %v731, %v727
    %v780 = vpack.c.b16 %v736, %v732
    %v781 = vpack.c.b16 %v737, %v733
    %v782 = vpack.c.b16 %v738, %v734
    %v783 = vpack.c.b16 %v739, %v735
    %v784 = vpack.c.b16 %v744, %v740
    %v785 = vpack.c.b16 %v745, %v741
    %v786 = vpack.c.b16 %v746, %v742
    %v787 = vpack.c.b16 %v747, %v743
    %v788 = vpack.c.b16 %v752, %v748
    %v789 = vpack.c.b16 %v753, %v749
    %v790 = vpack.c.b16 %v754, %v750
    %v791 = vpack.c.b16 %v755, %v751
    %v792 = vpack.c.b16 %v760, %v756
    %v793 = vpack.c.b16 %v761, %v757
    %v794 = vpack.c.b16 %v762, %v758
    %v795 = vpack.c.b16 %v763, %v759
    %828 = vmatprep.subr.bf16.mxu0 %v793
    %829 = vmatpush1.bf16.msra.mxu0 %v792
    %830 = vmatprep.subr.bf16.mxu0 %v789
    %831 = vmatpush1.bf16.msra.mxu0 %v788
    %832 = vmatprep.subr.bf16.mxu0 %v785
    %833 = vmatpush1.bf16.msra.mxu0 %v784
    %834 = vmatprep.subr.bf16.mxu0 %v781
    %835 = vmatpush1.bf16.msra.mxu0 %v780
    %836 = vmatprep.subr.bf16.mxu0 %v777
    %837 = vmatpush1.bf16.msra.mxu0 %v776
    %838 = vmatprep.subr.bf16.mxu0 %v773
    %839 = vmatpush1.bf16.msra.mxu0 %v772
    %840 = vmatprep.subr.bf16.mxu0 %v769
    %841 = vmatpush1.bf16.msra.mxu0 %v768
    %842 = vmatprep.subr.bf16.mxu0 %v765
    %843 = vmatpush1.bf16.msra.mxu0 %v764
    %844 = vmatprep.subr.bf16.mxu0 0
    %845 = vmatpush2.bf16.msra.mxu0 0
    %846 = vmatprep.subr.bf16.mxu0 0
    %847 = vmatpush2.bf16.msra.mxu0 0
    %848 = vmatprep.subr.bf16.mxu0 0
    %849 = vmatpush2.bf16.msra.mxu0 0
    %850 = vmatprep.subr.bf16.mxu0 0
    %851 = vmatpush2.bf16.msra.mxu0 0
    %852 = vmatprep.subr.bf16.mxu0 0
    %853 = vmatpush2.bf16.msra.mxu0 0
    %854 = vmatprep.subr.bf16.mxu0 0
    %855 = vmatpush2.bf16.msra.mxu0 0
    %856 = vmatprep.subr.bf16.mxu0 0
    %857 = vmatpush2.bf16.msra.mxu0 0
    %858 = vmatprep.subr.bf16.mxu0 0
    %859 = vmatpush2.bf16.msra.mxu0 0
    %860 = vmatprep.mubr.bf16.mxu0 0
    %861 = vmatmul.mubr.bf16.gmra.mxu0 %v635
    %v862 = vpop.f32.mrf.mxu0
    %v863 = vadd.f32 0.0, %v862
    %v864 = vpop.f32.mrf.mxu0
    %v865 = vadd.f32 0.0, %v864
    %v866 = vpop.f32.mrf.mxu0
    %v867 = vpop.f32.mrf.mxu0
    %868 = vdwg.mxu0
    %869 = vmatprep.subr.bf16.mxu0 %v795
    %870 = vmatpush1.bf16.msra.mxu0 %v794
    %871 = vmatprep.subr.bf16.mxu0 %v791
    %872 = vmatpush1.bf16.msra.mxu0 %v790
    %873 = vmatprep.subr.bf16.mxu0 %v787
    %874 = vmatpush1.bf16.msra.mxu0 %v786
    %875 = vmatprep.subr.bf16.mxu0 %v783
    %876 = vmatpush1.bf16.msra.mxu0 %v782
    %877 = vmatprep.subr.bf16.mxu0 %v779
    %878 = vmatpush1.bf16.msra.mxu0 %v778
    %879 = vmatprep.subr.bf16.mxu0 %v775
    %880 = vmatpush1.bf16.msra.mxu0 %v774
    %881 = vmatprep.subr.bf16.mxu0 %v771
    %882 = vmatpush1.bf16.msra.mxu0 %v770
    %883 = vmatprep.subr.bf16.mxu0 %v767
    %884 = vmatpush1.bf16.msra.mxu0 %v766
    %885 = vmatprep.subr.bf16.mxu0 0
    %886 = vmatpush2.bf16.msra.mxu0 0
    %887 = vmatprep.subr.bf16.mxu0 0
    %888 = vmatpush2.bf16.msra.mxu0 0
    %889 = vmatprep.subr.bf16.mxu0 0
    %890 = vmatpush2.bf16.msra.mxu0 0
    %891 = vmatprep.subr.bf16.mxu0 0
    %892 = vmatpush2.bf16.msra.mxu0 0
    %893 = vmatprep.subr.bf16.mxu0 0
    %894 = vmatpush2.bf16.msra.mxu0 0
    %895 = vmatprep.subr.bf16.mxu0 0
    %896 = vmatpush2.bf16.msra.mxu0 0
    %897 = vmatprep.subr.bf16.mxu0 0
    %898 = vmatpush2.bf16.msra.mxu0 0
    %899 = vmatprep.subr.bf16.mxu0 0
    %900 = vmatpush2.bf16.msra.mxu0 0
    %901 = vmatprep.mubr.bf16.mxu0 0
    %902 = vmatmul.mubr.bf16.gmra.mxu0 %v635
    %v903 = vpop.f32.mrf.mxu0
    %v904 = vadd.f32 0.0, %v903
    %v905 = vpop.f32.mrf.mxu0
    %v906 = vadd.f32 0.0, %v905
    %v907 = vpop.f32.mrf.mxu0
    %v908 = vpop.f32.mrf.mxu0
    %909 = vdwg.mxu0
    %v910 = vadd.f32 %v631, %v863
    %v911 = vadd.f32 %v632, %v865
    %v912 = vadd.f32 %v633, %v904
    %v913 = vadd.f32 %v634, %v906
    %v914 = vxor.u32 %v910, 2147483648
    %v915 = vmul.f32 %v914, 1.442695
    %v916 = vpow.pop %v915
    %v917 = vadd.f32 %v916, 1.0
    %v918 = vrcp.pop %v917
    %v919 = vmul.f32 1.0, %v918
    %v920 = vxor.u32 %v911, 2147483648
    %v921 = vmul.f32 %v920, 1.442695
    %v922 = vpow.pop %v921
    %v923 = vadd.f32 %v922, 1.0
    %v924 = vrcp.pop %v923
    %v925 = vmul.f32 1.0, %v924
    %v926 = vtanh.pop %v912
    %v927 = vxor.u32 %v913, 2147483648
    %v928 = vmul.f32 %v927, 1.442695
    %v929 = vpow.pop %v928
    %v930 = vadd.f32 %v929, 1.0
    %v931 = vrcp.pop %v930
    %v932 = vmul.f32 1.0, %v931
    %v933 = vmul.f32 %v925, %v623
    %v934 = vmul.f32 %v919, %v926
    %v935 = vadd.f32 %v933, %v934
    %v936 = vtanh.pop %v935
    %v937 = vmul.f32 %v932, %v936
    %v938 = vpack.c.bf16 0.0, 0.0
    %v939 = vld [vmem:[%s5] sm:$0xf]
    %v940 = vld [vmem:[#allocation3] sm:$0xff]
    %v941 = vld [vmem:[#allocation3 + $0x8] sm:$0xff]
    %v942 = vld [vmem:[#allocation3 + $0x10] sm:$0xff]
    %v943 = vld [vmem:[#allocation3 + $0x18] sm:$0xff]
    %v944 = vld [vmem:[#allocation3 + $0x20] sm:$0xff]
    %v945 = vld [vmem:[#allocation3 + $0x28] sm:$0xff]
    %v946 = vld [vmem:[#allocation3 + $0x30] sm:$0xff]
    %v947 = vld [vmem:[#allocation3 + $0x38] sm:$0xff]
    %v948 = vld [vmem:[#allocation3 + $0x40] sm:$0xff]
    %v949 = vld [vmem:[#allocation3 + $0x48] sm:$0xff]
    %v950 = vld [vmem:[#allocation3 + $0x50] sm:$0xff]
    %v951 = vld [vmem:[#allocation3 + $0x58] sm:$0xff]
    %v952 = vld [vmem:[#allocation3 + $0x60] sm:$0xff]
    %v953 = vld [vmem:[#allocation3 + $0x68] sm:$0xff]
    %v954 = vld [vmem:[#allocation3 + $0x70] sm:$0xff]
    %v955 = vld [vmem:[#allocation3 + $0x78] sm:$0xff]
    %v956 = vld [vmem:[#allocation3 + $0x80] sm:$0xff]
    %v957 = vld [vmem:[#allocation3 + $0x88] sm:$0xff]
    %v958 = vld [vmem:[#allocation3 + $0x90] sm:$0xff]
    %v959 = vld [vmem:[#allocation3 + $0x98] sm:$0xff]
    %v960 = vld [vmem:[#allocation3 + $0xa0] sm:$0xff]
    %v961 = vld [vmem:[#allocation3 + $0xa8] sm:$0xff]
    %v962 = vld [vmem:[#allocation3 + $0xb0] sm:$0xff]
    %v963 = vld [vmem:[#allocation3 + $0xb8] sm:$0xff]
    %v964 = vld [vmem:[#allocation3 + $0xc0] sm:$0xff]
    %v965 = vld [vmem:[#allocation3 + $0xc8] sm:$0xff]
    %v966 = vld [vmem:[#allocation3 + $0xd0] sm:$0xff]
    %v967 = vld [vmem:[#allocation3 + $0xd8] sm:$0xff]
    %v968 = vld [vmem:[#allocation3 + $0xe0] sm:$0xff]
    %v969 = vld [vmem:[#allocation3 + $0xe8] sm:$0xff]
    %v970 = vld [vmem:[#allocation3 + $0xf0] sm:$0xff]
    %v971 = vld [vmem:[#allocation3 + $0xf8] sm:$0xff]
    %v972 = vld [vmem:[#allocation3 + $0x100] sm:$0xff]
    %v973 = vld [vmem:[#allocation3 + $0x108] sm:$0xff]
    %v974 = vld [vmem:[#allocation3 + $0x110] sm:$0xff]
    %v975 = vld [vmem:[#allocation3 + $0x118] sm:$0xff]
    %v976 = vld [vmem:[#allocation3 + $0x120] sm:$0xff]
    %v977 = vld [vmem:[#allocation3 + $0x128] sm:$0xff]
    %v978 = vld [vmem:[#allocation3 + $0x130] sm:$0xff]
    %v979 = vld [vmem:[#allocation3 + $0x138] sm:$0xff]
    %v980 = vld [vmem:[#allocation3 + $0x140] sm:$0xff]
    %v981 = vld [vmem:[#allocation3 + $0x148] sm:$0xff]
    %v982 = vld [vmem:[#allocation3 + $0x150] sm:$0xff]
    %v983 = vld [vmem:[#allocation3 + $0x158] sm:$0xff]
    %v984 = vld [vmem:[#allocation3 + $0x160] sm:$0xff]
    %v985 = vld [vmem:[#allocation3 + $0x168] sm:$0xff]
    %v986 = vld [vmem:[#allocation3 + $0x170] sm:$0xff]
    %v987 = vld [vmem:[#allocation3 + $0x178] sm:$0xff]
    %v988 = vld [vmem:[#allocation3 + $0x180] sm:$0xff]
    %v989 = vld [vmem:[#allocation3 + $0x188] sm:$0xff]
    %v990 = vld [vmem:[#allocation3 + $0x190] sm:$0xff]
    %v991 = vld [vmem:[#allocation3 + $0x198] sm:$0xff]
    %v992 = vld [vmem:[#allocation3 + $0x1a0] sm:$0xff]
    %v993 = vld [vmem:[#allocation3 + $0x1a8] sm:$0xff]
    %v994 = vld [vmem:[#allocation3 + $0x1b0] sm:$0xff]
    %v995 = vld [vmem:[#allocation3 + $0x1b8] sm:$0xff]
    %v996 = vld [vmem:[#allocation3 + $0x1c0] sm:$0xff]
    %v997 = vld [vmem:[#allocation3 + $0x1c8] sm:$0xff]
    %v998 = vld [vmem:[#allocation3 + $0x1d0] sm:$0xff]
    %v999 = vld [vmem:[#allocation3 + $0x1d8] sm:$0xff]
    %v1000 = vld [vmem:[#allocation3 + $0x1e0] sm:$0xff]
    %v1001 = vld [vmem:[#allocation3 + $0x1e8] sm:$0xff]
    %v1002 = vld [vmem:[#allocation3 + $0x1f0] sm:$0xff]
    %v1003 = vld [vmem:[#allocation3 + $0x1f8] sm:$0xff]
    %v1068 = vunpack.c.l.b16 %v940
    %v1069 = vunpack.c.h.b16 %v940
    %v1070 = vunpack.c.l.b16 %v941
    %v1071 = vunpack.c.h.b16 %v941
    %v1072 = vunpack.c.l.b16 %v942
    %v1073 = vunpack.c.h.b16 %v942
    %v1074 = vunpack.c.l.b16 %v943
    %v1075 = vunpack.c.h.b16 %v943
    %v1076 = vunpack.c.l.b16 %v944
    %v1077 = vunpack.c.h.b16 %v944
    %v1078 = vunpack.c.l.b16 %v945
    %v1079 = vunpack.c.h.b16 %v945
    %v1080 = vunpack.c.l.b16 %v946
    %v1081 = vunpack.c.h.b16 %v946
    %v1082 = vunpack.c.l.b16 %v947
    %v1083 = vunpack.c.h.b16 %v947
    %v1084 = vunpack.c.l.b16 %v948
    %v1085 = vunpack.c.h.b16 %v948
    %v1086 = vunpack.c.l.b16 %v949
    %v1087 = vunpack.c.h.b16 %v949
    %v1088 = vunpack.c.l.b16 %v950
    %v1089 = vunpack.c.h.b16 %v950
    %v1090 = vunpack.c.l.b16 %v951
    %v1091 = vunpack.c.h.b16 %v951
    %v1092 = vunpack.c.l.b16 %v952
    %v1093 = vunpack.c.h.b16 %v952
    %v1094 = vunpack.c.l.b16 %v953
    %v1095 = vunpack.c.h.b16 %v953
    %v1096 = vunpack.c.l.b16 %v954
    %v1097 = vunpack.c.h.b16 %v954
    %v1098 = vunpack.c.l.b16 %v955
    %v1099 = vunpack.c.h.b16 %v955
    %v1100 = vunpack.c.l.b16 %v956
    %v1101 = vunpack.c.h.b16 %v956
    %v1102 = vunpack.c.l.b16 %v957
    %v1103 = vunpack.c.h.b16 %v957
    %v1104 = vunpack.c.l.b16 %v958
    %v1105 = vunpack.c.h.b16 %v958
    %v1106 = vunpack.c.l.b16 %v959
    %v1107 = vunpack.c.h.b16 %v959
    %v1108 = vunpack.c.l.b16 %v960
    %v1109 = vunpack.c.h.b16 %v960
    %v1110 = vunpack.c.l.b16 %v961
    %v1111 = vunpack.c.h.b16 %v961
    %v1112 = vunpack.c.l.b16 %v962
    %v1113 = vunpack.c.h.b16 %v962
    %v1114 = vunpack.c.l.b16 %v963
    %v1115 = vunpack.c.h.b16 %v963
    %v1116 = vunpack.c.l.b16 %v964
    %v1117 = vunpack.c.h.b16 %v964
    %v1118 = vunpack.c.l.b16 %v965
    %v1119 = vunpack.c.h.b16 %v965
    %v1120 = vunpack.c.l.b16 %v966
    %v1121 = vunpack.c.h.b16 %v966
    %v1122 = vunpack.c.l.b16 %v967
    %v1123 = vunpack.c.h.b16 %v967
    %v1124 = vunpack.c.l.b16 %v968
    %v1125 = vunpack.c.h.b16 %v968
    %v1126 = vunpack.c.l.b16 %v969
    %v1127 = vunpack.c.h.b16 %v969
    %v1128 = vunpack.c.l.b16 %v970
    %v1129 = vunpack.c.h.b16 %v970
    %v1130 = vunpack.c.l.b16 %v971
    %v1131 = vunpack.c.h.b16 %v971
    %v1132 = vunpack.c.l.b16 %v972
    %v1133 = vunpack.c.h.b16 %v972
    %v1134 = vunpack.c.l.b16 %v973
    %v1135 = vunpack.c.h.b16 %v973
    %v1136 = vunpack.c.l.b16 %v974
    %v1137 = vunpack.c.h.b16 %v974
    %v1138 = vunpack.c.l.b16 %v975
    %v1139 = vunpack.c.h.b16 %v975
    %v1140 = vunpack.c.l.b16 %v976
    %v1141 = vunpack.c.h.b16 %v976
    %v1142 = vunpack.c.l.b16 %v977
    %v1143 = vunpack.c.h.b16 %v977
    %v1144 = vunpack.c.l.b16 %v978
    %v1145 = vunpack.c.h.b16 %v978
    %v1146 = vunpack.c.l.b16 %v979
    %v1147 = vunpack.c.h.b16 %v979
    %v1148 = vunpack.c.l.b16 %v980
    %v1149 = vunpack.c.h.b16 %v980
    %v1150 = vunpack.c.l.b16 %v981
    %v1151 = vunpack.c.h.b16 %v981
    %v1152 = vunpack.c.l.b16 %v982
    %v1153 = vunpack.c.h.b16 %v982
    %v1154 = vunpack.c.l.b16 %v983
    %v1155 = vunpack.c.h.b16 %v983
    %v1156 = vunpack.c.l.b16 %v984
    %v1157 = vunpack.c.h.b16 %v984
    %v1158 = vunpack.c.l.b16 %v985
    %v1159 = vunpack.c.h.b16 %v985
    %v1160 = vunpack.c.l.b16 %v986
    %v1161 = vunpack.c.h.b16 %v986
    %v1162 = vunpack.c.l.b16 %v987
    %v1163 = vunpack.c.h.b16 %v987
    %v1164 = vunpack.c.l.b16 %v988
    %v1165 = vunpack.c.h.b16 %v988
    %v1166 = vunpack.c.l.b16 %v989
    %v1167 = vunpack.c.h.b16 %v989
    %v1168 = vunpack.c.l.b16 %v990
    %v1169 = vunpack.c.h.b16 %v990
    %v1170 = vunpack.c.l.b16 %v991
    %v1171 = vunpack.c.h.b16 %v991
    %v1172 = vunpack.c.l.b16 %v992
    %v1173 = vunpack.c.h.b16 %v992
    %v1174 = vunpack.c.l.b16 %v993
    %v1175 = vunpack.c.h.b16 %v993
    %v1176 = vunpack.c.l.b16 %v994
    %v1177 = vunpack.c.h.b16 %v994
    %v1178 = vunpack.c.l.b16 %v995
    %v1179 = vunpack.c.h.b16 %v995
    %v1180 = vunpack.c.l.b16 %v996
    %v1181 = vunpack.c.h.b16 %v996
    %v1182 = vunpack.c.l.b16 %v997
    %v1183 = vunpack.c.h.b16 %v997
    %v1184 = vunpack.c.l.b16 %v998
    %v1185 = vunpack.c.h.b16 %v998
    %v1186 = vunpack.c.l.b16 %v999
    %v1187 = vunpack.c.h.b16 %v999
    %v1188 = vunpack.c.l.b16 %v1000
    %v1189 = vunpack.c.h.b16 %v1000
    %v1190 = vunpack.c.l.b16 %v1001
    %v1191 = vunpack.c.h.b16 %v1001
    %v1192 = vunpack.c.l.b16 %v1002
    %v1193 = vunpack.c.h.b16 %v1002
    %v1194 = vunpack.c.l.b16 %v1003
    %v1195 = vunpack.c.h.b16 %v1003
    %v1196 = vpack.c.b16 %v1072, %v1068
    %v1197 = vpack.c.b16 %v1073, %v1069
    %v1198 = vpack.c.b16 %v1074, %v1070
    %v1199 = vpack.c.b16 %v1075, %v1071
    %v1200 = vpack.c.b16 %v1080, %v1076
    %v1201 = vpack.c.b16 %v1081, %v1077
    %v1202 = vpack.c.b16 %v1082, %v1078
    %v1203 = vpack.c.b16 %v1083, %v1079
    %v1204 = vpack.c.b16 %v1088, %v1084
    %v1205 = vpack.c.b16 %v1089, %v1085
    %v1206 = vpack.c.b16 %v1090, %v1086
    %v1207 = vpack.c.b16 %v1091, %v1087
    %v1208 = vpack.c.b16 %v1096, %v1092
    %v1209 = vpack.c.b16 %v1097, %v1093
    %v1210 = vpack.c.b16 %v1098, %v1094
    %v1211 = vpack.c.b16 %v1099, %v1095
    %v1212 = vpack.c.b16 %v1104, %v1100
    %v1213 = vpack.c.b16 %v1105, %v1101
    %v1214 = vpack.c.b16 %v1106, %v1102
    %v1215 = vpack.c.b16 %v1107, %v1103
    %v1216 = vpack.c.b16 %v1112, %v1108
    %v1217 = vpack.c.b16 %v1113, %v1109
    %v1218 = vpack.c.b16 %v1114, %v1110
    %v1219 = vpack.c.b16 %v1115, %v1111
    %v1220 = vpack.c.b16 %v1120, %v1116
    %v1221 = vpack.c.b16 %v1121, %v1117
    %v1222 = vpack.c.b16 %v1122, %v1118
    %v1223 = vpack.c.b16 %v1123, %v1119
    %v1224 = vpack.c.b16 %v1128, %v1124
    %v1225 = vpack.c.b16 %v1129, %v1125
    %v1226 = vpack.c.b16 %v1130, %v1126
    %v1227 = vpack.c.b16 %v1131, %v1127
    %v1228 = vpack.c.b16 %v1136, %v1132
    %v1229 = vpack.c.b16 %v1137, %v1133
    %v1230 = vpack.c.b16 %v1138, %v1134
    %v1231 = vpack.c.b16 %v1139, %v1135
    %v1232 = vpack.c.b16 %v1144, %v1140
    %v1233 = vpack.c.b16 %v1145, %v1141
    %v1234 = vpack.c.b16 %v1146, %v1142
    %v1235 = vpack.c.b16 %v1147, %v1143
    %v1236 = vpack.c.b16 %v1152, %v1148
    %v1237 = vpack.c.b16 %v1153, %v1149
    %v1238 = vpack.c.b16 %v1154, %v1150
    %v1239 = vpack.c.b16 %v1155, %v1151
    %v1240 = vpack.c.b16 %v1160, %v1156
    %v1241 = vpack.c.b16 %v1161, %v1157
    %v1242 = vpack.c.b16 %v1162, %v1158
    %v1243 = vpack.c.b16 %v1163, %v1159
    %v1244 = vpack.c.b16 %v1168, %v1164
    %v1245 = vpack.c.b16 %v1169, %v1165
    %v1246 = vpack.c.b16 %v1170, %v1166
    %v1247 = vpack.c.b16 %v1171, %v1167
    %v1248 = vpack.c.b16 %v1176, %v1172
    %v1249 = vpack.c.b16 %v1177, %v1173
    %v1250 = vpack.c.b16 %v1178, %v1174
    %v1251 = vpack.c.b16 %v1179, %v1175
    %v1252 = vpack.c.b16 %v1184, %v1180
    %v1253 = vpack.c.b16 %v1185, %v1181
    %v1254 = vpack.c.b16 %v1186, %v1182
    %v1255 = vpack.c.b16 %v1187, %v1183
    %v1256 = vpack.c.b16 %v1192, %v1188
    %v1257 = vpack.c.b16 %v1193, %v1189
    %v1258 = vpack.c.b16 %v1194, %v1190
    %v1259 = vpack.c.b16 %v1195, %v1191
    %1324 = vmatprep.subr.bf16.mxu0 %v1225
    %1325 = vmatpush1.bf16.msra.mxu0 %v1224
    %1326 = vmatprep.subr.bf16.mxu0 %v1221
    %1327 = vmatpush1.bf16.msra.mxu0 %v1220
    %1328 = vmatprep.subr.bf16.mxu0 %v1217
    %1329 = vmatpush1.bf16.msra.mxu0 %v1216
    %1330 = vmatprep.subr.bf16.mxu0 %v1213
    %1331 = vmatpush1.bf16.msra.mxu0 %v1212
    %1332 = vmatprep.subr.bf16.mxu0 %v1209
    %1333 = vmatpush1.bf16.msra.mxu0 %v1208
    %1334 = vmatprep.subr.bf16.mxu0 %v1205
    %1335 = vmatpush1.bf16.msra.mxu0 %v1204
    %1336 = vmatprep.subr.bf16.mxu0 %v1201
    %1337 = vmatpush1.bf16.msra.mxu0 %v1200
    %1338 = vmatprep.subr.bf16.mxu0 %v1197
    %1339 = vmatpush1.bf16.msra.mxu0 %v1196
    %1340 = vmatprep.subr.bf16.mxu0 %v1257
    %1341 = vmatpush2.bf16.msra.mxu0 %v1256
    %1342 = vmatprep.subr.bf16.mxu0 %v1253
    %1343 = vmatpush2.bf16.msra.mxu0 %v1252
    %1344 = vmatprep.subr.bf16.mxu0 %v1249
    %1345 = vmatpush2.bf16.msra.mxu0 %v1248
    %1346 = vmatprep.subr.bf16.mxu0 %v1245
    %1347 = vmatpush2.bf16.msra.mxu0 %v1244
    %1348 = vmatprep.subr.bf16.mxu0 %v1241
    %1349 = vmatpush2.bf16.msra.mxu0 %v1240
    %1350 = vmatprep.subr.bf16.mxu0 %v1237
    %1351 = vmatpush2.bf16.msra.mxu0 %v1236
    %1352 = vmatprep.subr.bf16.mxu0 %v1233
    %1353 = vmatpush2.bf16.msra.mxu0 %v1232
    %1354 = vmatprep.subr.bf16.mxu0 %v1229
    %1355 = vmatpush2.bf16.msra.mxu0 %v1228
    %1356 = vmatprep.mubr.bf16.mxu0 %v938
    %1357 = vmatmul.mubr.bf16.gmra.mxu0 %v635
    %v1358 = vpop.f32.mrf.mxu0
    %v1359 = vadd.f32 0.0, %v1358
    %v1360 = vpop.f32.mrf.mxu0
    %v1361 = vadd.f32 0.0, %v1360
    %v1362 = vpop.f32.mrf.mxu0
    %v1363 = vpop.f32.mrf.mxu0
    %1364 = vdwg.mxu0
    %1365 = vmatprep.subr.bf16.mxu0 %v1227
    %1366 = vmatpush1.bf16.msra.mxu0 %v1226
    %1367 = vmatprep.subr.bf16.mxu0 %v1223
    %1368 = vmatpush1.bf16.msra.mxu0 %v1222
    %1369 = vmatprep.subr.bf16.mxu0 %v1219
    %1370 = vmatpush1.bf16.msra.mxu0 %v1218
    %1371 = vmatprep.subr.bf16.mxu0 %v1215
    %1372 = vmatpush1.bf16.msra.mxu0 %v1214
    %1373 = vmatprep.subr.bf16.mxu0 %v1211
    %1374 = vmatpush1.bf16.msra.mxu0 %v1210
    %1375 = vmatprep.subr.bf16.mxu0 %v1207
    %1376 = vmatpush1.bf16.msra.mxu0 %v1206
    %1377 = vmatprep.subr.bf16.mxu0 %v1203
    %1378 = vmatpush1.bf16.msra.mxu0 %v1202
    %1379 = vmatprep.subr.bf16.mxu0 %v1199
    %1380 = vmatpush1.bf16.msra.mxu0 %v1198
    %1381 = vmatprep.subr.bf16.mxu0 %v1259
    %1382 = vmatpush2.bf16.msra.mxu0 %v1258
    %1383 = vmatprep.subr.bf16.mxu0 %v1255
    %1384 = vmatpush2.bf16.msra.mxu0 %v1254
    %1385 = vmatprep.subr.bf16.mxu0 %v1251
    %1386 = vmatpush2.bf16.msra.mxu0 %v1250
    %1387 = vmatprep.subr.bf16.mxu0 %v1247
    %1388 = vmatpush2.bf16.msra.mxu0 %v1246
    %1389 = vmatprep.subr.bf16.mxu0 %v1243
    %1390 = vmatpush2.bf16.msra.mxu0 %v1242
    %1391 = vmatprep.subr.bf16.mxu0 %v1239
    %1392 = vmatpush2.bf16.msra.mxu0 %v1238
    %1393 = vmatprep.subr.bf16.mxu0 %v1235
    %1394 = vmatpush2.bf16.msra.mxu0 %v1234
    %1395 = vmatprep.subr.bf16.mxu0 %v1231
    %1396 = vmatpush2.bf16.msra.mxu0 %v1230
    %1397 = vmatprep.mubr.bf16.mxu0 %v938
    %1398 = vmatmul.mubr.bf16.gmra.mxu0 %v635
    %v1399 = vpop.f32.mrf.mxu0
    %v1400 = vadd.f32 0.0, %v1399
    %v1401 = vpop.f32.mrf.mxu0
    %v1402 = vadd.f32 0.0, %v1401
    %v1403 = vpop.f32.mrf.mxu0
    %v1404 = vpop.f32.mrf.mxu0
    %1405 = vdwg.mxu0
    %v1407 = vlaneseq
    %v1408 = vshrl.u32 %v1407, 7
    %v1409 = vsub.s32 0, %v1408
    %v1410 = vrot.slane %v939, %v1409
    %v1411 = vlaneseq
    %v1412 = vshrl.u32 %v1411, 7
    %v1413 = vsub.s32 1, %v1412
    %v1414 = vrot.slane %v939, %v1413
    %v1415 = vlaneseq
    %v1416 = vshrl.u32 %v1415, 7
    %v1417 = vsub.s32 2, %v1416
    %v1418 = vrot.slane %v939, %v1417
    %v1419 = vlaneseq
    %v1420 = vshrl.u32 %v1419, 7
    %v1421 = vsub.s32 3, %v1420
    %v1422 = vrot.slane %v939, %v1421
    %v1427 = vadd.f32 %v1410, %v1359
    %v1428 = vadd.f32 %v1414, %v1361
    %v1429 = vadd.f32 %v1418, %v1400
    %v1430 = vadd.f32 %v1422, %v1402
    %v1431 = vxor.u32 %v1427, 2147483648
    %v1432 = vmul.f32 %v1431, 1.442695
    %v1433 = vpow.pop %v1432
    %v1434 = vadd.f32 %v1433, 1.0
    %v1435 = vrcp.pop %v1434
    %v1436 = vmul.f32 1.0, %v1435
    %v1437 = vxor.u32 %v1428, 2147483648
    %v1438 = vmul.f32 %v1437, 1.442695
    %v1439 = vpow.pop %v1438
    %v1440 = vadd.f32 %v1439, 1.0
    %v1441 = vrcp.pop %v1440
    %v1442 = vmul.f32 1.0, %v1441
    %v1443 = vtanh.pop %v1429
    %v1444 = vxor.u32 %v1430, 2147483648
    %v1445 = vmul.f32 %v1444, 1.442695
    %v1446 = vpow.pop %v1445
    %v1447 = vadd.f32 %v1446, 1.0
    %v1448 = vrcp.pop %v1447
    %v1449 = vmul.f32 1.0, %v1448
    %v1450 = vmul.f32 %v1442, 0.0
    %v1451 = vmul.f32 %v1436, %v1443
    %v1452 = vadd.f32 %v1450, %v1451
    %v1453 = vtanh.pop %v1452
    %v1454 = vmul.f32 %v1449, %v1453
    %s1455 = sshll.u32 %s627, 4
    %1456 = dma.done %s59, %s1455
    %s1457 = scalar_lea.vmem [#allocation2], 64
    %v1458 = vld [vmem:[%s1457] sm:$0xff]
    %v1459 = vld [vmem:[%s1457 + $0x8] sm:$0xff]
    %v1460 = vld [vmem:[%s1457 + $0x10] sm:$0xff]
    %v1461 = vld [vmem:[%s1457 + $0x18] sm:$0xff]
    %v1462 = vpack.c.bf16 %v937, %v937
    %v1463 = vld [vmem:[#allocation7] sm:$0xff]
    %v1464 = vld [vmem:[#allocation7 + $0x8] sm:$0xff]
    %v1465 = vld [vmem:[#allocation7 + $0x10] sm:$0xff]
    %v1466 = vld [vmem:[#allocation7 + $0x18] sm:$0xff]
    %v1467 = vld [vmem:[#allocation7 + $0x20] sm:$0xff]
    %v1468 = vld [vmem:[#allocation7 + $0x28] sm:$0xff]
    %v1469 = vld [vmem:[#allocation7 + $0x30] sm:$0xff]
    %v1470 = vld [vmem:[#allocation7 + $0x38] sm:$0xff]
    %v1471 = vld [vmem:[#allocation7 + $0x40] sm:$0xff]
    %v1472 = vld [vmem:[#allocation7 + $0x48] sm:$0xff]
    %v1473 = vld [vmem:[#allocation7 + $0x50] sm:$0xff]
    %v1474 = vld [vmem:[#allocation7 + $0x58] sm:$0xff]
    %v1475 = vld [vmem:[#allocation7 + $0x60] sm:$0xff]
    %v1476 = vld [vmem:[#allocation7 + $0x68] sm:$0xff]
    %v1477 = vld [vmem:[#allocation7 + $0x70] sm:$0xff]
    %v1478 = vld [vmem:[#allocation7 + $0x78] sm:$0xff]
    %v1479 = vld [vmem:[#allocation7 + $0x80] sm:$0xff]
    %v1480 = vld [vmem:[#allocation7 + $0x88] sm:$0xff]
    %v1481 = vld [vmem:[#allocation7 + $0x90] sm:$0xff]
    %v1482 = vld [vmem:[#allocation7 + $0x98] sm:$0xff]
    %v1483 = vld [vmem:[#allocation7 + $0xa0] sm:$0xff]
    %v1484 = vld [vmem:[#allocation7 + $0xa8] sm:$0xff]
    %v1485 = vld [vmem:[#allocation7 + $0xb0] sm:$0xff]
    %v1486 = vld [vmem:[#allocation7 + $0xb8] sm:$0xff]
    %v1487 = vld [vmem:[#allocation7 + $0xc0] sm:$0xff]
    %v1488 = vld [vmem:[#allocation7 + $0xc8] sm:$0xff]
    %v1489 = vld [vmem:[#allocation7 + $0xd0] sm:$0xff]
    %v1490 = vld [vmem:[#allocation7 + $0xd8] sm:$0xff]
    %v1491 = vld [vmem:[#allocation7 + $0xe0] sm:$0xff]
    %v1492 = vld [vmem:[#allocation7 + $0xe8] sm:$0xff]
    %v1493 = vld [vmem:[#allocation7 + $0xf0] sm:$0xff]
    %v1494 = vld [vmem:[#allocation7 + $0xf8] sm:$0xff]
    %v1527 = vunpack.c.l.b16 %v1463
    %v1528 = vunpack.c.h.b16 %v1463
    %v1529 = vunpack.c.l.b16 %v1464
    %v1530 = vunpack.c.h.b16 %v1464
    %v1531 = vunpack.c.l.b16 %v1465
    %v1532 = vunpack.c.h.b16 %v1465
    %v1533 = vunpack.c.l.b16 %v1466
    %v1534 = vunpack.c.h.b16 %v1466
    %v1535 = vunpack.c.l.b16 %v1467
    %v1536 = vunpack.c.h.b16 %v1467
    %v1537 = vunpack.c.l.b16 %v1468
    %v1538 = vunpack.c.h.b16 %v1468
    %v1539 = vunpack.c.l.b16 %v1469
    %v1540 = vunpack.c.h.b16 %v1469
    %v1541 = vunpack.c.l.b16 %v1470
    %v1542 = vunpack.c.h.b16 %v1470
    %v1543 = vunpack.c.l.b16 %v1471
    %v1544 = vunpack.c.h.b16 %v1471
    %v1545 = vunpack.c.l.b16 %v1472
    %v1546 = vunpack.c.h.b16 %v1472
    %v1547 = vunpack.c.l.b16 %v1473
    %v1548 = vunpack.c.h.b16 %v1473
    %v1549 = vunpack.c.l.b16 %v1474
    %v1550 = vunpack.c.h.b16 %v1474
    %v1551 = vunpack.c.l.b16 %v1475
    %v1552 = vunpack.c.h.b16 %v1475
    %v1553 = vunpack.c.l.b16 %v1476
    %v1554 = vunpack.c.h.b16 %v1476
    %v1555 = vunpack.c.l.b16 %v1477
    %v1556 = vunpack.c.h.b16 %v1477
    %v1557 = vunpack.c.l.b16 %v1478
    %v1558 = vunpack.c.h.b16 %v1478
    %v1559 = vunpack.c.l.b16 %v1479
    %v1560 = vunpack.c.h.b16 %v1479
    %v1561 = vunpack.c.l.b16 %v1480
    %v1562 = vunpack.c.h.b16 %v1480
    %v1563 = vunpack.c.l.b16 %v1481
    %v1564 = vunpack.c.h.b16 %v1481
    %v1565 = vunpack.c.l.b16 %v1482
    %v1566 = vunpack.c.h.b16 %v1482
    %v1567 = vunpack.c.l.b16 %v1483
    %v1568 = vunpack.c.h.b16 %v1483
    %v1569 = vunpack.c.l.b16 %v1484
    %v1570 = vunpack.c.h.b16 %v1484
    %v1571 = vunpack.c.l.b16 %v1485
    %v1572 = vunpack.c.h.b16 %v1485
    %v1573 = vunpack.c.l.b16 %v1486
    %v1574 = vunpack.c.h.b16 %v1486
    %v1575 = vunpack.c.l.b16 %v1487
    %v1576 = vunpack.c.h.b16 %v1487
    %v1577 = vunpack.c.l.b16 %v1488
    %v1578 = vunpack.c.h.b16 %v1488
    %v1579 = vunpack.c.l.b16 %v1489
    %v1580 = vunpack.c.h.b16 %v1489
    %v1581 = vunpack.c.l.b16 %v1490
    %v1582 = vunpack.c.h.b16 %v1490
    %v1583 = vunpack.c.l.b16 %v1491
    %v1584 = vunpack.c.h.b16 %v1491
    %v1585 = vunpack.c.l.b16 %v1492
    %v1586 = vunpack.c.h.b16 %v1492
    %v1587 = vunpack.c.l.b16 %v1493
    %v1588 = vunpack.c.h.b16 %v1493
    %v1589 = vunpack.c.l.b16 %v1494
    %v1590 = vunpack.c.h.b16 %v1494
    %v1591 = vpack.c.b16 %v1531, %v1527
    %v1592 = vpack.c.b16 %v1532, %v1528
    %v1593 = vpack.c.b16 %v1533, %v1529
    %v1594 = vpack.c.b16 %v1534, %v1530
    %v1595 = vpack.c.b16 %v1539, %v1535
    %v1596 = vpack.c.b16 %v1540, %v1536
    %v1597 = vpack.c.b16 %v1541, %v1537
    %v1598 = vpack.c.b16 %v1542, %v1538
    %v1599 = vpack.c.b16 %v1547, %v1543
    %v1600 = vpack.c.b16 %v1548, %v1544
    %v1601 = vpack.c.b16 %v1549, %v1545
    %v1602 = vpack.c.b16 %v1550, %v1546
    %v1603 = vpack.c.b16 %v1555, %v1551
    %v1604 = vpack.c.b16 %v1556, %v1552
    %v1605 = vpack.c.b16 %v1557, %v1553
    %v1606 = vpack.c.b16 %v1558, %v1554
    %v1607 = vpack.c.b16 %v1563, %v1559
    %v1608 = vpack.c.b16 %v1564, %v1560
    %v1609 = vpack.c.b16 %v1565, %v1561
    %v1610 = vpack.c.b16 %v1566, %v1562
    %v1611 = vpack.c.b16 %v1571, %v1567
    %v1612 = vpack.c.b16 %v1572, %v1568
    %v1613 = vpack.c.b16 %v1573, %v1569
    %v1614 = vpack.c.b16 %v1574, %v1570
    %v1615 = vpack.c.b16 %v1579, %v1575
    %v1616 = vpack.c.b16 %v1580, %v1576
    %v1617 = vpack.c.b16 %v1581, %v1577
    %v1618 = vpack.c.b16 %v1582, %v1578
    %v1619 = vpack.c.b16 %v1587, %v1583
    %v1620 = vpack.c.b16 %v1588, %v1584
    %v1621 = vpack.c.b16 %v1589, %v1585
    %v1622 = vpack.c.b16 %v1590, %v1586
    %1655 = vmatprep.subr.bf16.mxu0 %v1620
    %1656 = vmatpush1.bf16.msra.mxu0 %v1619
    %1657 = vmatprep.subr.bf16.mxu0 %v1616
    %1658 = vmatpush1.bf16.msra.mxu0 %v1615
    %1659 = vmatprep.subr.bf16.mxu0 %v1612
    %1660 = vmatpush1.bf16.msra.mxu0 %v1611
    %1661 = vmatprep.subr.bf16.mxu0 %v1608
    %1662 = vmatpush1.bf16.msra.mxu0 %v1607
    %1663 = vmatprep.subr.bf16.mxu0 %v1604
    %1664 = vmatpush1.bf16.msra.mxu0 %v1603
    %1665 = vmatprep.subr.bf16.mxu0 %v1600
    %1666 = vmatpush1.bf16.msra.mxu0 %v1599
    %1667 = vmatprep.subr.bf16.mxu0 %v1596
    %1668 = vmatpush1.bf16.msra.mxu0 %v1595
    %1669 = vmatprep.subr.bf16.mxu0 %v1592
    %1670 = vmatpush1.bf16.msra.mxu0 %v1591
    %1671 = vmatprep.subr.bf16.mxu0 0
    %1672 = vmatpush2.bf16.msra.mxu0 0
    %1673 = vmatprep.subr.bf16.mxu0 0
    %1674 = vmatpush2.bf16.msra.mxu0 0
    %1675 = vmatprep.subr.bf16.mxu0 0
    %1676 = vmatpush2.bf16.msra.mxu0 0
    %1677 = vmatprep.subr.bf16.mxu0 0
    %1678 = vmatpush2.bf16.msra.mxu0 0
    %1679 = vmatprep.subr.bf16.mxu0 0
    %1680 = vmatpush2.bf16.msra.mxu0 0
    %1681 = vmatprep.subr.bf16.mxu0 0
    %1682 = vmatpush2.bf16.msra.mxu0 0
    %1683 = vmatprep.subr.bf16.mxu0 0
    %1684 = vmatpush2.bf16.msra.mxu0 0
    %1685 = vmatprep.subr.bf16.mxu0 0
    %1686 = vmatpush2.bf16.msra.mxu0 0
    %1687 = vmatprep.mubr.bf16.mxu0 0
    %1688 = vmatmul.mubr.bf16.gmra.mxu0 %v1462
    %v1689 = vpop.f32.mrf.mxu0
    %v1690 = vadd.f32 0.0, %v1689
    %v1691 = vpop.f32.mrf.mxu0
    %v1692 = vadd.f32 0.0, %v1691
    %v1693 = vpop.f32.mrf.mxu0
    %v1694 = vpop.f32.mrf.mxu0
    %1695 = vdwg.mxu0
    %1696 = vmatprep.subr.bf16.mxu0 %v1622
    %1697 = vmatpush1.bf16.msra.mxu0 %v1621
    %1698 = vmatprep.subr.bf16.mxu0 %v1618
    %1699 = vmatpush1.bf16.msra.mxu0 %v1617
    %1700 = vmatprep.subr.bf16.mxu0 %v1614
    %1701 = vmatpush1.bf16.msra.mxu0 %v1613
    %1702 = vmatprep.subr.bf16.mxu0 %v1610
    %1703 = vmatpush1.bf16.msra.mxu0 %v1609
    %1704 = vmatprep.subr.bf16.mxu0 %v1606
    %1705 = vmatpush1.bf16.msra.mxu0 %v1605
    %1706 = vmatprep.subr.bf16.mxu0 %v1602
    %1707 = vmatpush1.bf16.msra.mxu0 %v1601
    %1708 = vmatprep.subr.bf16.mxu0 %v1598
    %1709 = vmatpush1.bf16.msra.mxu0 %v1597
    %1710 = vmatprep.subr.bf16.mxu0 %v1594
    %1711 = vmatpush1.bf16.msra.mxu0 %v1593
    %1712 = vmatprep.subr.bf16.mxu0 0
    %1713 = vmatpush2.bf16.msra.mxu0 0
    %1714 = vmatprep.subr.bf16.mxu0 0
    %1715 = vmatpush2.bf16.msra.mxu0 0
    %1716 = vmatprep.subr.bf16.mxu0 0
    %1717 = vmatpush2.bf16.msra.mxu0 0
    %1718 = vmatprep.subr.bf16.mxu0 0
    %1719 = vmatpush2.bf16.msra.mxu0 0
    %1720 = vmatprep.subr.bf16.mxu0 0
    %1721 = vmatpush2.bf16.msra.mxu0 0
    %1722 = vmatprep.subr.bf16.mxu0 0
    %1723 = vmatpush2.bf16.msra.mxu0 0
    %1724 = vmatprep.subr.bf16.mxu0 0
    %1725 = vmatpush2.bf16.msra.mxu0 0
    %1726 = vmatprep.subr.bf16.mxu0 0
    %1727 = vmatpush2.bf16.msra.mxu0 0
    %1728 = vmatprep.mubr.bf16.mxu0 0
    %1729 = vmatmul.mubr.bf16.gmra.mxu0 %v1462
    %v1730 = vpop.f32.mrf.mxu0
    %v1731 = vadd.f32 0.0, %v1730
    %v1732 = vpop.f32.mrf.mxu0
    %v1733 = vadd.f32 0.0, %v1732
    %v1734 = vpop.f32.mrf.mxu0
    %v1735 = vpop.f32.mrf.mxu0
    %1736 = vdwg.mxu0
    %v1737 = vadd.f32 %v1458, %v1690
    %v1738 = vadd.f32 %v1459, %v1692
    %v1739 = vadd.f32 %v1460, %v1731
    %v1740 = vadd.f32 %v1461, %v1733
    %v1741 = vxor.u32 %v1737, 2147483648
    %v1742 = vmul.f32 %v1741, 1.442695
    %v1743 = vpow.pop %v1742
    %v1744 = vadd.f32 %v1743, 1.0
    %v1745 = vrcp.pop %v1744
    %v1746 = vmul.f32 1.0, %v1745
    %v1747 = vxor.u32 %v1738, 2147483648
    %v1748 = vmul.f32 %v1747, 1.442695
    %v1749 = vpow.pop %v1748
    %v1750 = vadd.f32 %v1749, 1.0
    %v1751 = vrcp.pop %v1750
    %v1752 = vmul.f32 1.0, %v1751
    %v1753 = vtanh.pop %v1739
    %v1754 = vxor.u32 %v1740, 2147483648
    %v1755 = vmul.f32 %v1754, 1.442695
    %v1756 = vpow.pop %v1755
    %v1757 = vadd.f32 %v1756, 1.0
    %v1758 = vrcp.pop %v1757
    %v1759 = vmul.f32 1.0, %v1758
    %v1760 = vmul.f32 %v1752, %v935
    %v1761 = vmul.f32 %v1746, %v1753
    %v1762 = vadd.f32 %v1760, %v1761
    %v1763 = vtanh.pop %v1762
    %v1764 = vmul.f32 %v1759, %v1763
    %v1765 = vpack.c.bf16 %v1454, %v1454
    %v1766 = vld [vmem:[%s5] sm:$0xf]
    %v1767 = vld [vmem:[#allocation3] sm:$0xff]
    %v1768 = vld [vmem:[#allocation3 + $0x8] sm:$0xff]
    %v1769 = vld [vmem:[#allocation3 + $0x10] sm:$0xff]
    %v1770 = vld [vmem:[#allocation3 + $0x18] sm:$0xff]
    %v1771 = vld [vmem:[#allocation3 + $0x20] sm:$0xff]
    %v1772 = vld [vmem:[#allocation3 + $0x28] sm:$0xff]
    %v1773 = vld [vmem:[#allocation3 + $0x30] sm:$0xff]
    %v1774 = vld [vmem:[#allocation3 + $0x38] sm:$0xff]
    %v1775 = vld [vmem:[#allocation3 + $0x40] sm:$0xff]
    %v1776 = vld [vmem:[#allocation3 + $0x48] sm:$0xff]
    %v1777 = vld [vmem:[#allocation3 + $0x50] sm:$0xff]
    %v1778 = vld [vmem:[#allocation3 + $0x58] sm:$0xff]
    %v1779 = vld [vmem:[#allocation3 + $0x60] sm:$0xff]
    %v1780 = vld [vmem:[#allocation3 + $0x68] sm:$0xff]
    %v1781 = vld [vmem:[#allocation3 + $0x70] sm:$0xff]
    %v1782 = vld [vmem:[#allocation3 + $0x78] sm:$0xff]
    %v1783 = vld [vmem:[#allocation3 + $0x80] sm:$0xff]
    %v1784 = vld [vmem:[#allocation3 + $0x88] sm:$0xff]
    %v1785 = vld [vmem:[#allocation3 + $0x90] sm:$0xff]
    %v1786 = vld [vmem:[#allocation3 + $0x98] sm:$0xff]
    %v1787 = vld [vmem:[#allocation3 + $0xa0] sm:$0xff]
    %v1788 = vld [vmem:[#allocation3 + $0xa8] sm:$0xff]
    %v1789 = vld [vmem:[#allocation3 + $0xb0] sm:$0xff]
    %v1790 = vld [vmem:[#allocation3 + $0xb8] sm:$0xff]
    %v1791 = vld [vmem:[#allocation3 + $0xc0] sm:$0xff]
    %v1792 = vld [vmem:[#allocation3 + $0xc8] sm:$0xff]
    %v1793 = vld [vmem:[#allocation3 + $0xd0] sm:$0xff]
    %v1794 = vld [vmem:[#allocation3 + $0xd8] sm:$0xff]
    %v1795 = vld [vmem:[#allocation3 + $0xe0] sm:$0xff]
    %v1796 = vld [vmem:[#allocation3 + $0xe8] sm:$0xff]
    %v1797 = vld [vmem:[#allocation3 + $0xf0] sm:$0xff]
    %v1798 = vld [vmem:[#allocation3 + $0xf8] sm:$0xff]
    %v1799 = vld [vmem:[#allocation3 + $0x100] sm:$0xff]
    %v1800 = vld [vmem:[#allocation3 + $0x108] sm:$0xff]
    %v1801 = vld [vmem:[#allocation3 + $0x110] sm:$0xff]
    %v1802 = vld [vmem:[#allocation3 + $0x118] sm:$0xff]
    %v1803 = vld [vmem:[#allocation3 + $0x120] sm:$0xff]
    %v1804 = vld [vmem:[#allocation3 + $0x128] sm:$0xff]
    %v1805 = vld [vmem:[#allocation3 + $0x130] sm:$0xff]
    %v1806 = vld [vmem:[#allocation3 + $0x138] sm:$0xff]
    %v1807 = vld [vmem:[#allocation3 + $0x140] sm:$0xff]
    %v1808 = vld [vmem:[#allocation3 + $0x148] sm:$0xff]
    %v1809 = vld [vmem:[#allocation3 + $0x150] sm:$0xff]
    %v1810 = vld [vmem:[#allocation3 + $0x158] sm:$0xff]
    %v1811 = vld [vmem:[#allocation3 + $0x160] sm:$0xff]
    %v1812 = vld [vmem:[#allocation3 + $0x168] sm:$0xff]
    %v1813 = vld [vmem:[#allocation3 + $0x170] sm:$0xff]
    %v1814 = vld [vmem:[#allocation3 + $0x178] sm:$0xff]
    %v1815 = vld [vmem:[#allocation3 + $0x180] sm:$0xff]
    %v1816 = vld [vmem:[#allocation3 + $0x188] sm:$0xff]
    %v1817 = vld [vmem:[#allocation3 + $0x190] sm:$0xff]
    %v1818 = vld [vmem:[#allocation3 + $0x198] sm:$0xff]
    %v1819 = vld [vmem:[#allocation3 + $0x1a0] sm:$0xff]
    %v1820 = vld [vmem:[#allocation3 + $0x1a8] sm:$0xff]
    %v1821 = vld [vmem:[#allocation3 + $0x1b0] sm:$0xff]
    %v1822 = vld [vmem:[#allocation3 + $0x1b8] sm:$0xff]
    %v1823 = vld [vmem:[#allocation3 + $0x1c0] sm:$0xff]
    %v1824 = vld [vmem:[#allocation3 + $0x1c8] sm:$0xff]
    %v1825 = vld [vmem:[#allocation3 + $0x1d0] sm:$0xff]
    %v1826 = vld [vmem:[#allocation3 + $0x1d8] sm:$0xff]
    %v1827 = vld [vmem:[#allocation3 + $0x1e0] sm:$0xff]
    %v1828 = vld [vmem:[#allocation3 + $0x1e8] sm:$0xff]
    %v1829 = vld [vmem:[#allocation3 + $0x1f0] sm:$0xff]
    %v1830 = vld [vmem:[#allocation3 + $0x1f8] sm:$0xff]
    %v1895 = vunpack.c.l.b16 %v1767
    %v1896 = vunpack.c.h.b16 %v1767
    %v1897 = vunpack.c.l.b16 %v1768
    %v1898 = vunpack.c.h.b16 %v1768
    %v1899 = vunpack.c.l.b16 %v1769
    %v1900 = vunpack.c.h.b16 %v1769
    %v1901 = vunpack.c.l.b16 %v1770
    %v1902 = vunpack.c.h.b16 %v1770
    %v1903 = vunpack.c.l.b16 %v1771
    %v1904 = vunpack.c.h.b16 %v1771
    %v1905 = vunpack.c.l.b16 %v1772
    %v1906 = vunpack.c.h.b16 %v1772
    %v1907 = vunpack.c.l.b16 %v1773
    %v1908 = vunpack.c.h.b16 %v1773
    %v1909 = vunpack.c.l.b16 %v1774
    %v1910 = vunpack.c.h.b16 %v1774
    %v1911 = vunpack.c.l.b16 %v1775
    %v1912 = vunpack.c.h.b16 %v1775
    %v1913 = vunpack.c.l.b16 %v1776
    %v1914 = vunpack.c.h.b16 %v1776
    %v1915 = vunpack.c.l.b16 %v1777
    %v1916 = vunpack.c.h.b16 %v1777
    %v1917 = vunpack.c.l.b16 %v1778
    %v1918 = vunpack.c.h.b16 %v1778
    %v1919 = vunpack.c.l.b16 %v1779
    %v1920 = vunpack.c.h.b16 %v1779
    %v1921 = vunpack.c.l.b16 %v1780
    %v1922 = vunpack.c.h.b16 %v1780
    %v1923 = vunpack.c.l.b16 %v1781
    %v1924 = vunpack.c.h.b16 %v1781
    %v1925 = vunpack.c.l.b16 %v1782
    %v1926 = vunpack.c.h.b16 %v1782
    %v1927 = vunpack.c.l.b16 %v1783
    %v1928 = vunpack.c.h.b16 %v1783
    %v1929 = vunpack.c.l.b16 %v1784
    %v1930 = vunpack.c.h.b16 %v1784
    %v1931 = vunpack.c.l.b16 %v1785
    %v1932 = vunpack.c.h.b16 %v1785
    %v1933 = vunpack.c.l.b16 %v1786
    %v1934 = vunpack.c.h.b16 %v1786
    %v1935 = vunpack.c.l.b16 %v1787
    %v1936 = vunpack.c.h.b16 %v1787
    %v1937 = vunpack.c.l.b16 %v1788
    %v1938 = vunpack.c.h.b16 %v1788
    %v1939 = vunpack.c.l.b16 %v1789
    %v1940 = vunpack.c.h.b16 %v1789
    %v1941 = vunpack.c.l.b16 %v1790
    %v1942 = vunpack.c.h.b16 %v1790
    %v1943 = vunpack.c.l.b16 %v1791
    %v1944 = vunpack.c.h.b16 %v1791
    %v1945 = vunpack.c.l.b16 %v1792
    %v1946 = vunpack.c.h.b16 %v1792
    %v1947 = vunpack.c.l.b16 %v1793
    %v1948 = vunpack.c.h.b16 %v1793
    %v1949 = vunpack.c.l.b16 %v1794
    %v1950 = vunpack.c.h.b16 %v1794
    %v1951 = vunpack.c.l.b16 %v1795
    %v1952 = vunpack.c.h.b16 %v1795
    %v1953 = vunpack.c.l.b16 %v1796
    %v1954 = vunpack.c.h.b16 %v1796
    %v1955 = vunpack.c.l.b16 %v1797
    %v1956 = vunpack.c.h.b16 %v1797
    %v1957 = vunpack.c.l.b16 %v1798
    %v1958 = vunpack.c.h.b16 %v1798
    %v1959 = vunpack.c.l.b16 %v1799
    %v1960 = vunpack.c.h.b16 %v1799
    %v1961 = vunpack.c.l.b16 %v1800
    %v1962 = vunpack.c.h.b16 %v1800
    %v1963 = vunpack.c.l.b16 %v1801
    %v1964 = vunpack.c.h.b16 %v1801
    %v1965 = vunpack.c.l.b16 %v1802
    %v1966 = vunpack.c.h.b16 %v1802
    %v1967 = vunpack.c.l.b16 %v1803
    %v1968 = vunpack.c.h.b16 %v1803
    %v1969 = vunpack.c.l.b16 %v1804
    %v1970 = vunpack.c.h.b16 %v1804
    %v1971 = vunpack.c.l.b16 %v1805
    %v1972 = vunpack.c.h.b16 %v1805
    %v1973 = vunpack.c.l.b16 %v1806
    %v1974 = vunpack.c.h.b16 %v1806
    %v1975 = vunpack.c.l.b16 %v1807
    %v1976 = vunpack.c.h.b16 %v1807
    %v1977 = vunpack.c.l.b16 %v1808
    %v1978 = vunpack.c.h.b16 %v1808
    %v1979 = vunpack.c.l.b16 %v1809
    %v1980 = vunpack.c.h.b16 %v1809
    %v1981 = vunpack.c.l.b16 %v1810
    %v1982 = vunpack.c.h.b16 %v1810
    %v1983 = vunpack.c.l.b16 %v1811
    %v1984 = vunpack.c.h.b16 %v1811
    %v1985 = vunpack.c.l.b16 %v1812
    %v1986 = vunpack.c.h.b16 %v1812
    %v1987 = vunpack.c.l.b16 %v1813
    %v1988 = vunpack.c.h.b16 %v1813
    %v1989 = vunpack.c.l.b16 %v1814
    %v1990 = vunpack.c.h.b16 %v1814
    %v1991 = vunpack.c.l.b16 %v1815
    %v1992 = vunpack.c.h.b16 %v1815
    %v1993 = vunpack.c.l.b16 %v1816
    %v1994 = vunpack.c.h.b16 %v1816
    %v1995 = vunpack.c.l.b16 %v1817
    %v1996 = vunpack.c.h.b16 %v1817
    %v1997 = vunpack.c.l.b16 %v1818
    %v1998 = vunpack.c.h.b16 %v1818
    %v1999 = vunpack.c.l.b16 %v1819
    %v2000 = vunpack.c.h.b16 %v1819
    %v2001 = vunpack.c.l.b16 %v1820
    %v2002 = vunpack.c.h.b16 %v1820
    %v2003 = vunpack.c.l.b16 %v1821
    %v2004 = vunpack.c.h.b16 %v1821
    %v2005 = vunpack.c.l.b16 %v1822
    %v2006 = vunpack.c.h.b16 %v1822
    %v2007 = vunpack.c.l.b16 %v1823
    %v2008 = vunpack.c.h.b16 %v1823
    %v2009 = vunpack.c.l.b16 %v1824
    %v2010 = vunpack.c.h.b16 %v1824
    %v2011 = vunpack.c.l.b16 %v1825
    %v2012 = vunpack.c.h.b16 %v1825
    %v2013 = vunpack.c.l.b16 %v1826
    %v2014 = vunpack.c.h.b16 %v1826
    %v2015 = vunpack.c.l.b16 %v1827
    %v2016 = vunpack.c.h.b16 %v1827
    %v2017 = vunpack.c.l.b16 %v1828
    %v2018 = vunpack.c.h.b16 %v1828
    %v2019 = vunpack.c.l.b16 %v1829
    %v2020 = vunpack.c.h.b16 %v1829
    %v2021 = vunpack.c.l.b16 %v1830
    %v2022 = vunpack.c.h.b16 %v1830
    %v2023 = vpack.c.b16 %v1899, %v1895
    %v2024 = vpack.c.b16 %v1900, %v1896
    %v2025 = vpack.c.b16 %v1901, %v1897
    %v2026 = vpack.c.b16 %v1902, %v1898
    %v2027 = vpack.c.b16 %v1907, %v1903
    %v2028 = vpack.c.b16 %v1908, %v1904
    %v2029 = vpack.c.b16 %v1909, %v1905
    %v2030 = vpack.c.b16 %v1910, %v1906
    %v2031 = vpack.c.b16 %v1915, %v1911
    %v2032 = vpack.c.b16 %v1916, %v1912
    %v2033 = vpack.c.b16 %v1917, %v1913
    %v2034 = vpack.c.b16 %v1918, %v1914
    %v2035 = vpack.c.b16 %v1923, %v1919
    %v2036 = vpack.c.b16 %v1924, %v1920
    %v2037 = vpack.c.b16 %v1925, %v1921
    %v2038 = vpack.c.b16 %v1926, %v1922
    %v2039 = vpack.c.b16 %v1931, %v1927
    %v2040 = vpack.c.b16 %v1932, %v1928
    %v2041 = vpack.c.b16 %v1933, %v1929
    %v2042 = vpack.c.b16 %v1934, %v1930
    %v2043 = vpack.c.b16 %v1939, %v1935
    %v2044 = vpack.c.b16 %v1940, %v1936
    %v2045 = vpack.c.b16 %v1941, %v1937
    %v2046 = vpack.c.b16 %v1942, %v1938
    %v2047 = vpack.c.b16 %v1947, %v1943
    %v2048 = vpack.c.b16 %v1948, %v1944
    %v2049 = vpack.c.b16 %v1949, %v1945
    %v2050 = vpack.c.b16 %v1950, %v1946
    %v2051 = vpack.c.b16 %v1955, %v1951
    %v2052 = vpack.c.b16 %v1956, %v1952
    %v2053 = vpack.c.b16 %v1957, %v1953
    %v2054 = vpack.c.b16 %v1958, %v1954
    %v2055 = vpack.c.b16 %v1963, %v1959
    %v2056 = vpack.c.b16 %v1964, %v1960
    %v2057 = vpack.c.b16 %v1965, %v1961
    %v2058 = vpack.c.b16 %v1966, %v1962
    %v2059 = vpack.c.b16 %v1971, %v1967
    %v2060 = vpack.c.b16 %v1972, %v1968
    %v2061 = vpack.c.b16 %v1973, %v1969
    %v2062 = vpack.c.b16 %v1974, %v1970
    %v2063 = vpack.c.b16 %v1979, %v1975
    %v2064 = vpack.c.b16 %v1980, %v1976
    %v2065 = vpack.c.b16 %v1981, %v1977
    %v2066 = vpack.c.b16 %v1982, %v1978
    %v2067 = vpack.c.b16 %v1987, %v1983
    %v2068 = vpack.c.b16 %v1988, %v1984
    %v2069 = vpack.c.b16 %v1989, %v1985
    %v2070 = vpack.c.b16 %v1990, %v1986
    %v2071 = vpack.c.b16 %v1995, %v1991
    %v2072 = vpack.c.b16 %v1996, %v1992
    %v2073 = vpack.c.b16 %v1997, %v1993
    %v2074 = vpack.c.b16 %v1998, %v1994
    %v2075 = vpack.c.b16 %v2003, %v1999
    %v2076 = vpack.c.b16 %v2004, %v2000
    %v2077 = vpack.c.b16 %v2005, %v2001
    %v2078 = vpack.c.b16 %v2006, %v2002
    %v2079 = vpack.c.b16 %v2011, %v2007
    %v2080 = vpack.c.b16 %v2012, %v2008
    %v2081 = vpack.c.b16 %v2013, %v2009
    %v2082 = vpack.c.b16 %v2014, %v2010
    %v2083 = vpack.c.b16 %v2019, %v2015
    %v2084 = vpack.c.b16 %v2020, %v2016
    %v2085 = vpack.c.b16 %v2021, %v2017
    %v2086 = vpack.c.b16 %v2022, %v2018
    %2151 = vmatprep.subr.bf16.mxu0 %v2052
    %2152 = vmatpush1.bf16.msra.mxu0 %v2051
    %2153 = vmatprep.subr.bf16.mxu0 %v2048
    %2154 = vmatpush1.bf16.msra.mxu0 %v2047
    %2155 = vmatprep.subr.bf16.mxu0 %v2044
    %2156 = vmatpush1.bf16.msra.mxu0 %v2043
    %2157 = vmatprep.subr.bf16.mxu0 %v2040
    %2158 = vmatpush1.bf16.msra.mxu0 %v2039
    %2159 = vmatprep.subr.bf16.mxu0 %v2036
    %2160 = vmatpush1.bf16.msra.mxu0 %v2035
    %2161 = vmatprep.subr.bf16.mxu0 %v2032
    %2162 = vmatpush1.bf16.msra.mxu0 %v2031
    %2163 = vmatprep.subr.bf16.mxu0 %v2028
    %2164 = vmatpush1.bf16.msra.mxu0 %v2027
    %2165 = vmatprep.subr.bf16.mxu0 %v2024
    %2166 = vmatpush1.bf16.msra.mxu0 %v2023
    %2167 = vmatprep.subr.bf16.mxu0 %v2084
    %2168 = vmatpush2.bf16.msra.mxu0 %v2083
    %2169 = vmatprep.subr.bf16.mxu0 %v2080
    %2170 = vmatpush2.bf16.msra.mxu0 %v2079
    %2171 = vmatprep.subr.bf16.mxu0 %v2076
    %2172 = vmatpush2.bf16.msra.mxu0 %v2075
    %2173 = vmatprep.subr.bf16.mxu0 %v2072
    %2174 = vmatpush2.bf16.msra.mxu0 %v2071
    %2175 = vmatprep.subr.bf16.mxu0 %v2068
    %2176 = vmatpush2.bf16.msra.mxu0 %v2067
    %2177 = vmatprep.subr.bf16.mxu0 %v2064
    %2178 = vmatpush2.bf16.msra.mxu0 %v2063
    %2179 = vmatprep.subr.bf16.mxu0 %v2060
    %2180 = vmatpush2.bf16.msra.mxu0 %v2059
    %2181 = vmatprep.subr.bf16.mxu0 %v2056
    %2182 = vmatpush2.bf16.msra.mxu0 %v2055
    %2183 = vmatprep.mubr.bf16.mxu0 %v1765
    %2184 = vmatmul.mubr.bf16.gmra.mxu0 %v1462
    %v2185 = vpop.f32.mrf.mxu0
    %v2186 = vadd.f32 0.0, %v2185
    %v2187 = vpop.f32.mrf.mxu0
    %v2188 = vadd.f32 0.0, %v2187
    %v2189 = vpop.f32.mrf.mxu0
    %v2190 = vpop.f32.mrf.mxu0
    %2191 = vdwg.mxu0
    %2192 = vmatprep.subr.bf16.mxu0 %v2054
    %2193 = vmatpush1.bf16.msra.mxu0 %v2053
    %2194 = vmatprep.subr.bf16.mxu0 %v2050
    %2195 = vmatpush1.bf16.msra.mxu0 %v2049
    %2196 = vmatprep.subr.bf16.mxu0 %v2046
    %2197 = vmatpush1.bf16.msra.mxu0 %v2045
    %2198 = vmatprep.subr.bf16.mxu0 %v2042
    %2199 = vmatpush1.bf16.msra.mxu0 %v2041
    %2200 = vmatprep.subr.bf16.mxu0 %v2038
    %2201 = vmatpush1.bf16.msra.mxu0 %v2037
    %2202 = vmatprep.subr.bf16.mxu0 %v2034
    %2203 = vmatpush1.bf16.msra.mxu0 %v2033
    %2204 = vmatprep.subr.bf16.mxu0 %v2030
    %2205 = vmatpush1.bf16.msra.mxu0 %v2029
    %2206 = vmatprep.subr.bf16.mxu0 %v2026
    %2207 = vmatpush1.bf16.msra.mxu0 %v2025
    %2208 = vmatprep.subr.bf16.mxu0 %v2086
    %2209 = vmatpush2.bf16.msra.mxu0 %v2085
    %2210 = vmatprep.subr.bf16.mxu0 %v2082
    %2211 = vmatpush2.bf16.msra.mxu0 %v2081
    %2212 = vmatprep.subr.bf16.mxu0 %v2078
    %2213 = vmatpush2.bf16.msra.mxu0 %v2077
    %2214 = vmatprep.subr.bf16.mxu0 %v2074
    %2215 = vmatpush2.bf16.msra.mxu0 %v2073
    %2216 = vmatprep.subr.bf16.mxu0 %v2070
    %2217 = vmatpush2.bf16.msra.mxu0 %v2069
    %2218 = vmatprep.subr.bf16.mxu0 %v2066
    %2219 = vmatpush2.bf16.msra.mxu0 %v2065
    %2220 = vmatprep.subr.bf16.mxu0 %v2062
    %2221 = vmatpush2.bf16.msra.mxu0 %v2061
    %2222 = vmatprep.subr.bf16.mxu0 %v2058
    %2223 = vmatpush2.bf16.msra.mxu0 %v2057
    %2224 = vmatprep.mubr.bf16.mxu0 %v1765
    %2225 = vmatmul.mubr.bf16.gmra.mxu0 %v1462
    %v2226 = vpop.f32.mrf.mxu0
    %v2227 = vadd.f32 0.0, %v2226
    %v2228 = vpop.f32.mrf.mxu0
    %v2229 = vadd.f32 0.0, %v2228
    %v2230 = vpop.f32.mrf.mxu0
    %v2231 = vpop.f32.mrf.mxu0
    %2232 = vdwg.mxu0
    %v2234 = vlaneseq
    %v2235 = vshrl.u32 %v2234, 7
    %v2236 = vsub.s32 0, %v2235
    %v2237 = vrot.slane %v1766, %v2236
    %v2238 = vlaneseq
    %v2239 = vshrl.u32 %v2238, 7
    %v2240 = vsub.s32 1, %v2239
    %v2241 = vrot.slane %v1766, %v2240
    %v2242 = vlaneseq
    %v2243 = vshrl.u32 %v2242, 7
    %v2244 = vsub.s32 2, %v2243
    %v2245 = vrot.slane %v1766, %v2244
    %v2246 = vlaneseq
    %v2247 = vshrl.u32 %v2246, 7
    %v2248 = vsub.s32 3, %v2247
    %v2249 = vrot.slane %v1766, %v2248
    %v2254 = vadd.f32 %v2237, %v2186
    %v2255 = vadd.f32 %v2241, %v2188
    %v2256 = vadd.f32 %v2245, %v2227
    %v2257 = vadd.f32 %v2249, %v2229
    %v2258 = vxor.u32 %v2254, 2147483648
    %v2259 = vmul.f32 %v2258, 1.442695
    %v2260 = vpow.pop %v2259
    %v2261 = vadd.f32 %v2260, 1.0
    %v2262 = vrcp.pop %v2261
    %v2263 = vmul.f32 1.0, %v2262
    %v2264 = vxor.u32 %v2255, 2147483648
    %v2265 = vmul.f32 %v2264, 1.442695
    %v2266 = vpow.pop %v2265
    %v2267 = vadd.f32 %v2266, 1.0
    %v2268 = vrcp.pop %v2267
    %v2269 = vmul.f32 1.0, %v2268
    %v2270 = vtanh.pop %v2256
    %v2271 = vxor.u32 %v2257, 2147483648
    %v2272 = vmul.f32 %v2271, 1.442695
    %v2273 = vpow.pop %v2272
    %v2274 = vadd.f32 %v2273, 1.0
    %v2275 = vrcp.pop %v2274
    %v2276 = vmul.f32 1.0, %v2275
    %v2277 = vmul.f32 %v2269, %v1452
    %v2278 = vmul.f32 %v2263, %v2270
    %v2279 = vadd.f32 %v2277, %v2278
    %v2280 = vtanh.pop %v2279
    %v2281 = vmul.f32 %v2276, %v2280
    %v2282 = vld [vmem:[%s7] sm:$0xf]
    %v2283 = vld [vmem:[#allocation4] sm:$0xff]
    %v2284 = vld [vmem:[#allocation4 + $0x8] sm:$0xff]
    %v2285 = vld [vmem:[#allocation4 + $0x10] sm:$0xff]
    %v2286 = vld [vmem:[#allocation4 + $0x18] sm:$0xff]
    %v2287 = vld [vmem:[#allocation4 + $0x20] sm:$0xff]
    %v2288 = vld [vmem:[#allocation4 + $0x28] sm:$0xff]
    %v2289 = vld [vmem:[#allocation4 + $0x30] sm:$0xff]
    %v2290 = vld [vmem:[#allocation4 + $0x38] sm:$0xff]
    %v2291 = vld [vmem:[#allocation4 + $0x40] sm:$0xff]
    %v2292 = vld [vmem:[#allocation4 + $0x48] sm:$0xff]
    %v2293 = vld [vmem:[#allocation4 + $0x50] sm:$0xff]
    %v2294 = vld [vmem:[#allocation4 + $0x58] sm:$0xff]
    %v2295 = vld [vmem:[#allocation4 + $0x60] sm:$0xff]
    %v2296 = vld [vmem:[#allocation4 + $0x68] sm:$0xff]
    %v2297 = vld [vmem:[#allocation4 + $0x70] sm:$0xff]
    %v2298 = vld [vmem:[#allocation4 + $0x78] sm:$0xff]
    %v2299 = vld [vmem:[#allocation4 + $0x80] sm:$0xff]
    %v2300 = vld [vmem:[#allocation4 + $0x88] sm:$0xff]
    %v2301 = vld [vmem:[#allocation4 + $0x90] sm:$0xff]
    %v2302 = vld [vmem:[#allocation4 + $0x98] sm:$0xff]
    %v2303 = vld [vmem:[#allocation4 + $0xa0] sm:$0xff]
    %v2304 = vld [vmem:[#allocation4 + $0xa8] sm:$0xff]
    %v2305 = vld [vmem:[#allocation4 + $0xb0] sm:$0xff]
    %v2306 = vld [vmem:[#allocation4 + $0xb8] sm:$0xff]
    %v2307 = vld [vmem:[#allocation4 + $0xc0] sm:$0xff]
    %v2308 = vld [vmem:[#allocation4 + $0xc8] sm:$0xff]
    %v2309 = vld [vmem:[#allocation4 + $0xd0] sm:$0xff]
    %v2310 = vld [vmem:[#allocation4 + $0xd8] sm:$0xff]
    %v2311 = vld [vmem:[#allocation4 + $0xe0] sm:$0xff]
    %v2312 = vld [vmem:[#allocation4 + $0xe8] sm:$0xff]
    %v2313 = vld [vmem:[#allocation4 + $0xf0] sm:$0xff]
    %v2314 = vld [vmem:[#allocation4 + $0xf8] sm:$0xff]
    %v2315 = vld [vmem:[#allocation4 + $0x100] sm:$0xff]
    %v2316 = vld [vmem:[#allocation4 + $0x108] sm:$0xff]
    %v2317 = vld [vmem:[#allocation4 + $0x110] sm:$0xff]
    %v2318 = vld [vmem:[#allocation4 + $0x118] sm:$0xff]
    %v2319 = vld [vmem:[#allocation4 + $0x120] sm:$0xff]
    %v2320 = vld [vmem:[#allocation4 + $0x128] sm:$0xff]
    %v2321 = vld [vmem:[#allocation4 + $0x130] sm:$0xff]
    %v2322 = vld [vmem:[#allocation4 + $0x138] sm:$0xff]
    %v2323 = vld [vmem:[#allocation4 + $0x140] sm:$0xff]
    %v2324 = vld [vmem:[#allocation4 + $0x148] sm:$0xff]
    %v2325 = vld [vmem:[#allocation4 + $0x150] sm:$0xff]
    %v2326 = vld [vmem:[#allocation4 + $0x158] sm:$0xff]
    %v2327 = vld [vmem:[#allocation4 + $0x160] sm:$0xff]
    %v2328 = vld [vmem:[#allocation4 + $0x168] sm:$0xff]
    %v2329 = vld [vmem:[#allocation4 + $0x170] sm:$0xff]
    %v2330 = vld [vmem:[#allocation4 + $0x178] sm:$0xff]
    %v2331 = vld [vmem:[#allocation4 + $0x180] sm:$0xff]
    %v2332 = vld [vmem:[#allocation4 + $0x188] sm:$0xff]
    %v2333 = vld [vmem:[#allocation4 + $0x190] sm:$0xff]
    %v2334 = vld [vmem:[#allocation4 + $0x198] sm:$0xff]
    %v2335 = vld [vmem:[#allocation4 + $0x1a0] sm:$0xff]
    %v2336 = vld [vmem:[#allocation4 + $0x1a8] sm:$0xff]
    %v2337 = vld [vmem:[#allocation4 + $0x1b0] sm:$0xff]
    %v2338 = vld [vmem:[#allocation4 + $0x1b8] sm:$0xff]
    %v2339 = vld [vmem:[#allocation4 + $0x1c0] sm:$0xff]
    %v2340 = vld [vmem:[#allocation4 + $0x1c8] sm:$0xff]
    %v2341 = vld [vmem:[#allocation4 + $0x1d0] sm:$0xff]
    %v2342 = vld [vmem:[#allocation4 + $0x1d8] sm:$0xff]
    %v2343 = vld [vmem:[#allocation4 + $0x1e0] sm:$0xff]
    %v2344 = vld [vmem:[#allocation4 + $0x1e8] sm:$0xff]
    %v2345 = vld [vmem:[#allocation4 + $0x1f0] sm:$0xff]
    %v2346 = vld [vmem:[#allocation4 + $0x1f8] sm:$0xff]
    %v2411 = vunpack.c.l.b16 %v2283
    %v2412 = vunpack.c.h.b16 %v2283
    %v2413 = vunpack.c.l.b16 %v2284
    %v2414 = vunpack.c.h.b16 %v2284
    %v2415 = vunpack.c.l.b16 %v2285
    %v2416 = vunpack.c.h.b16 %v2285
    %v2417 = vunpack.c.l.b16 %v2286
    %v2418 = vunpack.c.h.b16 %v2286
    %v2419 = vunpack.c.l.b16 %v2287
    %v2420 = vunpack.c.h.b16 %v2287
    %v2421 = vunpack.c.l.b16 %v2288
    %v2422 = vunpack.c.h.b16 %v2288
    %v2423 = vunpack.c.l.b16 %v2289
    %v2424 = vunpack.c.h.b16 %v2289
    %v2425 = vunpack.c.l.b16 %v2290
    %v2426 = vunpack.c.h.b16 %v2290
    %v2427 = vunpack.c.l.b16 %v2291
    %v2428 = vunpack.c.h.b16 %v2291
    %v2429 = vunpack.c.l.b16 %v2292
    %v2430 = vunpack.c.h.b16 %v2292
    %v2431 = vunpack.c.l.b16 %v2293
    %v2432 = vunpack.c.h.b16 %v2293
    %v2433 = vunpack.c.l.b16 %v2294
    %v2434 = vunpack.c.h.b16 %v2294
    %v2435 = vunpack.c.l.b16 %v2295
    %v2436 = vunpack.c.h.b16 %v2295
    %v2437 = vunpack.c.l.b16 %v2296
    %v2438 = vunpack.c.h.b16 %v2296
    %v2439 = vunpack.c.l.b16 %v2297
    %v2440 = vunpack.c.h.b16 %v2297
    %v2441 = vunpack.c.l.b16 %v2298
    %v2442 = vunpack.c.h.b16 %v2298
    %v2443 = vunpack.c.l.b16 %v2299
    %v2444 = vunpack.c.h.b16 %v2299
    %v2445 = vunpack.c.l.b16 %v2300
    %v2446 = vunpack.c.h.b16 %v2300
    %v2447 = vunpack.c.l.b16 %v2301
    %v2448 = vunpack.c.h.b16 %v2301
    %v2449 = vunpack.c.l.b16 %v2302
    %v2450 = vunpack.c.h.b16 %v2302
    %v2451 = vunpack.c.l.b16 %v2303
    %v2452 = vunpack.c.h.b16 %v2303
    %v2453 = vunpack.c.l.b16 %v2304
    %v2454 = vunpack.c.h.b16 %v2304
    %v2455 = vunpack.c.l.b16 %v2305
    %v2456 = vunpack.c.h.b16 %v2305
    %v2457 = vunpack.c.l.b16 %v2306
    %v2458 = vunpack.c.h.b16 %v2306
    %v2459 = vunpack.c.l.b16 %v2307
    %v2460 = vunpack.c.h.b16 %v2307
    %v2461 = vunpack.c.l.b16 %v2308
    %v2462 = vunpack.c.h.b16 %v2308
    %v2463 = vunpack.c.l.b16 %v2309
    %v2464 = vunpack.c.h.b16 %v2309
    %v2465 = vunpack.c.l.b16 %v2310
    %v2466 = vunpack.c.h.b16 %v2310
    %v2467 = vunpack.c.l.b16 %v2311
    %v2468 = vunpack.c.h.b16 %v2311
    %v2469 = vunpack.c.l.b16 %v2312
    %v2470 = vunpack.c.h.b16 %v2312
    %v2471 = vunpack.c.l.b16 %v2313
    %v2472 = vunpack.c.h.b16 %v2313
    %v2473 = vunpack.c.l.b16 %v2314
    %v2474 = vunpack.c.h.b16 %v2314
    %v2475 = vunpack.c.l.b16 %v2315
    %v2476 = vunpack.c.h.b16 %v2315
    %v2477 = vunpack.c.l.b16 %v2316
    %v2478 = vunpack.c.h.b16 %v2316
    %v2479 = vunpack.c.l.b16 %v2317
    %v2480 = vunpack.c.h.b16 %v2317
    %v2481 = vunpack.c.l.b16 %v2318
    %v2482 = vunpack.c.h.b16 %v2318
    %v2483 = vunpack.c.l.b16 %v2319
    %v2484 = vunpack.c.h.b16 %v2319
    %v2485 = vunpack.c.l.b16 %v2320
    %v2486 = vunpack.c.h.b16 %v2320
    %v2487 = vunpack.c.l.b16 %v2321
    %v2488 = vunpack.c.h.b16 %v2321
    %v2489 = vunpack.c.l.b16 %v2322
    %v2490 = vunpack.c.h.b16 %v2322
    %v2491 = vunpack.c.l.b16 %v2323
    %v2492 = vunpack.c.h.b16 %v2323
    %v2493 = vunpack.c.l.b16 %v2324
    %v2494 = vunpack.c.h.b16 %v2324
    %v2495 = vunpack.c.l.b16 %v2325
    %v2496 = vunpack.c.h.b16 %v2325
    %v2497 = vunpack.c.l.b16 %v2326
    %v2498 = vunpack.c.h.b16 %v2326
    %v2499 = vunpack.c.l.b16 %v2327
    %v2500 = vunpack.c.h.b16 %v2327
    %v2501 = vunpack.c.l.b16 %v2328
    %v2502 = vunpack.c.h.b16 %v2328
    %v2503 = vunpack.c.l.b16 %v2329
    %v2504 = vunpack.c.h.b16 %v2329
    %v2505 = vunpack.c.l.b16 %v2330
    %v2506 = vunpack.c.h.b16 %v2330
    %v2507 = vunpack.c.l.b16 %v2331
    %v2508 = vunpack.c.h.b16 %v2331
    %v2509 = vunpack.c.l.b16 %v2332
    %v2510 = vunpack.c.h.b16 %v2332
    %v2511 = vunpack.c.l.b16 %v2333
    %v2512 = vunpack.c.h.b16 %v2333
    %v2513 = vunpack.c.l.b16 %v2334
    %v2514 = vunpack.c.h.b16 %v2334
    %v2515 = vunpack.c.l.b16 %v2335
    %v2516 = vunpack.c.h.b16 %v2335
    %v2517 = vunpack.c.l.b16 %v2336
    %v2518 = vunpack.c.h.b16 %v2336
    %v2519 = vunpack.c.l.b16 %v2337
    %v2520 = vunpack.c.h.b16 %v2337
    %v2521 = vunpack.c.l.b16 %v2338
    %v2522 = vunpack.c.h.b16 %v2338
    %v2523 = vunpack.c.l.b16 %v2339
    %v2524 = vunpack.c.h.b16 %v2339
    %v2525 = vunpack.c.l.b16 %v2340
    %v2526 = vunpack.c.h.b16 %v2340
    %v2527 = vunpack.c.l.b16 %v2341
    %v2528 = vunpack.c.h.b16 %v2341
    %v2529 = vunpack.c.l.b16 %v2342
    %v2530 = vunpack.c.h.b16 %v2342
    %v2531 = vunpack.c.l.b16 %v2343
    %v2532 = vunpack.c.h.b16 %v2343
    %v2533 = vunpack.c.l.b16 %v2344
    %v2534 = vunpack.c.h.b16 %v2344
    %v2535 = vunpack.c.l.b16 %v2345
    %v2536 = vunpack.c.h.b16 %v2345
    %v2537 = vunpack.c.l.b16 %v2346
    %v2538 = vunpack.c.h.b16 %v2346
    %v2539 = vpack.c.b16 %v2415, %v2411
    %v2540 = vpack.c.b16 %v2416, %v2412
    %v2541 = vpack.c.b16 %v2417, %v2413
    %v2542 = vpack.c.b16 %v2418, %v2414
    %v2543 = vpack.c.b16 %v2423, %v2419
    %v2544 = vpack.c.b16 %v2424, %v2420
    %v2545 = vpack.c.b16 %v2425, %v2421
    %v2546 = vpack.c.b16 %v2426, %v2422
    %v2547 = vpack.c.b16 %v2431, %v2427
    %v2548 = vpack.c.b16 %v2432, %v2428
    %v2549 = vpack.c.b16 %v2433, %v2429
    %v2550 = vpack.c.b16 %v2434, %v2430
    %v2551 = vpack.c.b16 %v2439, %v2435
    %v2552 = vpack.c.b16 %v2440, %v2436
    %v2553 = vpack.c.b16 %v2441, %v2437
    %v2554 = vpack.c.b16 %v2442, %v2438
    %v2555 = vpack.c.b16 %v2447, %v2443
    %v2556 = vpack.c.b16 %v2448, %v2444
    %v2557 = vpack.c.b16 %v2449, %v2445
    %v2558 = vpack.c.b16 %v2450, %v2446
    %v2559 = vpack.c.b16 %v2455, %v2451
    %v2560 = vpack.c.b16 %v2456, %v2452
    %v2561 = vpack.c.b16 %v2457, %v2453
    %v2562 = vpack.c.b16 %v2458, %v2454
    %v2563 = vpack.c.b16 %v2463, %v2459
    %v2564 = vpack.c.b16 %v2464, %v2460
    %v2565 = vpack.c.b16 %v2465, %v2461
    %v2566 = vpack.c.b16 %v2466, %v2462
    %v2567 = vpack.c.b16 %v2471, %v2467
    %v2568 = vpack.c.b16 %v2472, %v2468
    %v2569 = vpack.c.b16 %v2473, %v2469
    %v2570 = vpack.c.b16 %v2474, %v2470
    %v2571 = vpack.c.b16 %v2479, %v2475
    %v2572 = vpack.c.b16 %v2480, %v2476
    %v2573 = vpack.c.b16 %v2481, %v2477
    %v2574 = vpack.c.b16 %v2482, %v2478
    %v2575 = vpack.c.b16 %v2487, %v2483
    %v2576 = vpack.c.b16 %v2488, %v2484
    %v2577 = vpack.c.b16 %v2489, %v2485
    %v2578 = vpack.c.b16 %v2490, %v2486
    %v2579 = vpack.c.b16 %v2495, %v2491
    %v2580 = vpack.c.b16 %v2496, %v2492
    %v2581 = vpack.c.b16 %v2497, %v2493
    %v2582 = vpack.c.b16 %v2498, %v2494
    %v2583 = vpack.c.b16 %v2503, %v2499
    %v2584 = vpack.c.b16 %v2504, %v2500
    %v2585 = vpack.c.b16 %v2505, %v2501
    %v2586 = vpack.c.b16 %v2506, %v2502
    %v2587 = vpack.c.b16 %v2511, %v2507
    %v2588 = vpack.c.b16 %v2512, %v2508
    %v2589 = vpack.c.b16 %v2513, %v2509
    %v2590 = vpack.c.b16 %v2514, %v2510
    %v2591 = vpack.c.b16 %v2519, %v2515
    %v2592 = vpack.c.b16 %v2520, %v2516
    %v2593 = vpack.c.b16 %v2521, %v2517
    %v2594 = vpack.c.b16 %v2522, %v2518
    %v2595 = vpack.c.b16 %v2527, %v2523
    %v2596 = vpack.c.b16 %v2528, %v2524
    %v2597 = vpack.c.b16 %v2529, %v2525
    %v2598 = vpack.c.b16 %v2530, %v2526
    %v2599 = vpack.c.b16 %v2535, %v2531
    %v2600 = vpack.c.b16 %v2536, %v2532
    %v2601 = vpack.c.b16 %v2537, %v2533
    %v2602 = vpack.c.b16 %v2538, %v2534
    %2667 = vmatprep.subr.bf16.mxu0 %v2568
    %2668 = vmatpush1.bf16.msra.mxu0 %v2567
    %2669 = vmatprep.subr.bf16.mxu0 %v2564
    %2670 = vmatpush1.bf16.msra.mxu0 %v2563
    %2671 = vmatprep.subr.bf16.mxu0 %v2560
    %2672 = vmatpush1.bf16.msra.mxu0 %v2559
    %2673 = vmatprep.subr.bf16.mxu0 %v2556
    %2674 = vmatpush1.bf16.msra.mxu0 %v2555
    %2675 = vmatprep.subr.bf16.mxu0 %v2552
    %2676 = vmatpush1.bf16.msra.mxu0 %v2551
    %2677 = vmatprep.subr.bf16.mxu0 %v2548
    %2678 = vmatpush1.bf16.msra.mxu0 %v2547
    %2679 = vmatprep.subr.bf16.mxu0 %v2544
    %2680 = vmatpush1.bf16.msra.mxu0 %v2543
    %2681 = vmatprep.subr.bf16.mxu0 %v2540
    %2682 = vmatpush1.bf16.msra.mxu0 %v2539
    %2683 = vmatprep.subr.bf16.mxu0 %v2600
    %2684 = vmatpush2.bf16.msra.mxu0 %v2599
    %2685 = vmatprep.subr.bf16.mxu0 %v2596
    %2686 = vmatpush2.bf16.msra.mxu0 %v2595
    %2687 = vmatprep.subr.bf16.mxu0 %v2592
    %2688 = vmatpush2.bf16.msra.mxu0 %v2591
    %2689 = vmatprep.subr.bf16.mxu0 %v2588
    %2690 = vmatpush2.bf16.msra.mxu0 %v2587
    %2691 = vmatprep.subr.bf16.mxu0 %v2584
    %2692 = vmatpush2.bf16.msra.mxu0 %v2583
    %2693 = vmatprep.subr.bf16.mxu0 %v2580
    %2694 = vmatpush2.bf16.msra.mxu0 %v2579
    %2695 = vmatprep.subr.bf16.mxu0 %v2576
    %2696 = vmatpush2.bf16.msra.mxu0 %v2575
    %2697 = vmatprep.subr.bf16.mxu0 %v2572
    %2698 = vmatpush2.bf16.msra.mxu0 %v2571
    %2699 = vmatprep.mubr.bf16.mxu0 %v938
    %2700 = vmatmul.mubr.bf16.gmra.mxu0 %v1765
    %v2701 = vpop.f32.mrf.mxu0
    %v2702 = vadd.f32 0.0, %v2701
    %v2703 = vpop.f32.mrf.mxu0
    %v2704 = vadd.f32 0.0, %v2703
    %v2705 = vpop.f32.mrf.mxu0
    %v2706 = vpop.f32.mrf.mxu0
    %2707 = vdwg.mxu0
    %2708 = vmatprep.subr.bf16.mxu0 %v2570
    %2709 = vmatpush1.bf16.msra.mxu0 %v2569
    %2710 = vmatprep.subr.bf16.mxu0 %v2566
    %2711 = vmatpush1.bf16.msra.mxu0 %v2565
    %2712 = vmatprep.subr.bf16.mxu0 %v2562
    %2713 = vmatpush1.bf16.msra.mxu0 %v2561
    %2714 = vmatprep.subr.bf16.mxu0 %v2558
    %2715 = vmatpush1.bf16.msra.mxu0 %v2557
    %2716 = vmatprep.subr.bf16.mxu0 %v2554
    %2717 = vmatpush1.bf16.msra.mxu0 %v2553
    %2718 = vmatprep.subr.bf16.mxu0 %v2550
    %2719 = vmatpush1.bf16.msra.mxu0 %v2549
    %2720 = vmatprep.subr.bf16.mxu0 %v2546
    %2721 = vmatpush1.bf16.msra.mxu0 %v2545
    %2722 = vmatprep.subr.bf16.mxu0 %v2542
    %2723 = vmatpush1.bf16.msra.mxu0 %v2541
    %2724 = vmatprep.subr.bf16.mxu0 %v2602
    %2725 = vmatpush2.bf16.msra.mxu0 %v2601
    %2726 = vmatprep.subr.bf16.mxu0 %v2598
    %2727 = vmatpush2.bf16.msra.mxu0 %v2597
    %2728 = vmatprep.subr.bf16.mxu0 %v2594
    %2729 = vmatpush2.bf16.msra.mxu0 %v2593
    %2730 = vmatprep.subr.bf16.mxu0 %v2590
    %2731 = vmatpush2.bf16.msra.mxu0 %v2589
    %2732 = vmatprep.subr.bf16.mxu0 %v2586
    %2733 = vmatpush2.bf16.msra.mxu0 %v2585
    %2734 = vmatprep.subr.bf16.mxu0 %v2582
    %2735 = vmatpush2.bf16.msra.mxu0 %v2581
    %2736 = vmatprep.subr.bf16.mxu0 %v2578
    %2737 = vmatpush2.bf16.msra.mxu0 %v2577
    %2738 = vmatprep.subr.bf16.mxu0 %v2574
    %2739 = vmatpush2.bf16.msra.mxu0 %v2573
    %2740 = vmatprep.mubr.bf16.mxu0 %v938
    %2741 = vmatmul.mubr.bf16.gmra.mxu0 %v1765
    %v2742 = vpop.f32.mrf.mxu0
    %v2743 = vadd.f32 0.0, %v2742
    %v2744 = vpop.f32.mrf.mxu0
    %v2745 = vadd.f32 0.0, %v2744
    %v2746 = vpop.f32.mrf.mxu0
    %v2747 = vpop.f32.mrf.mxu0
    %2748 = vdwg.mxu0
    %v2750 = vlaneseq
    %v2751 = vshrl.u32 %v2750, 7
    %v2752 = vsub.s32 0, %v2751
    %v2753 = vrot.slane %v2282, %v2752
    %v2754 = vlaneseq
    %v2755 = vshrl.u32 %v2754, 7
    %v2756 = vsub.s32 1, %v2755
    %v2757 = vrot.slane %v2282, %v2756
    %v2758 = vlaneseq
    %v2759 = vshrl.u32 %v2758, 7
    %v2760 = vsub.s32 2, %v2759
    %v2761 = vrot.slane %v2282, %v2760
    %v2762 = vlaneseq
    %v2763 = vshrl.u32 %v2762, 7
    %v2764 = vsub.s32 3, %v2763
    %v2765 = vrot.slane %v2282, %v2764
    %v2770 = vadd.f32 %v2753, %v2702
    %v2771 = vadd.f32 %v2757, %v2704
    %v2772 = vadd.f32 %v2761, %v2743
    %v2773 = vadd.f32 %v2765, %v2745
    %v2774 = vxor.u32 %v2770, 2147483648
    %v2775 = vmul.f32 %v2774, 1.442695
    %v2776 = vpow.pop %v2775
    %v2777 = vadd.f32 %v2776, 1.0
    %v2778 = vrcp.pop %v2777
    %v2779 = vmul.f32 1.0, %v2778
    %v2780 = vxor.u32 %v2771, 2147483648
    %v2781 = vmul.f32 %v2780, 1.442695
    %v2782 = vpow.pop %v2781
    %v2783 = vadd.f32 %v2782, 1.0
    %v2784 = vrcp.pop %v2783
    %v2785 = vmul.f32 1.0, %v2784
    %v2786 = vtanh.pop %v2772
    %v2787 = vxor.u32 %v2773, 2147483648
    %v2788 = vmul.f32 %v2787, 1.442695
    %v2789 = vpow.pop %v2788
    %v2790 = vadd.f32 %v2789, 1.0
    %v2791 = vrcp.pop %v2790
    %v2792 = vmul.f32 1.0, %v2791
    %v2793 = vmul.f32 %v2785, 0.0
    %v2794 = vmul.f32 %v2779, %v2786
    %v2795 = vadd.f32 %v2793, %v2794
    %v2796 = vtanh.pop %v2795
    %v2797 = vmul.f32 %v2792, %v2796
    %s2798 = scalar_lea.vmem [#allocation2], 96
    %v2799 = vld [vmem:[%s2798] sm:$0xff]
    %v2800 = vld [vmem:[%s2798 + $0x8] sm:$0xff]
    %v2801 = vld [vmem:[%s2798 + $0x10] sm:$0xff]
    %v2802 = vld [vmem:[%s2798 + $0x18] sm:$0xff]
    %v2803 = vpack.c.bf16 %v1764, %v1764
    %2804 = vmatprep.subr.bf16.mxu0 %v1620
    %2805 = vmatpush1.bf16.msra.mxu0 %v1619
    %2806 = vmatprep.subr.bf16.mxu0 %v1616
    %2807 = vmatpush1.bf16.msra.mxu0 %v1615
    %2808 = vmatprep.subr.bf16.mxu0 %v1612
    %2809 = vmatpush1.bf16.msra.mxu0 %v1611
    %2810 = vmatprep.subr.bf16.mxu0 %v1608
    %2811 = vmatpush1.bf16.msra.mxu0 %v1607
    %2812 = vmatprep.subr.bf16.mxu0 %v1604
    %2813 = vmatpush1.bf16.msra.mxu0 %v1603
    %2814 = vmatprep.subr.bf16.mxu0 %v1600
    %2815 = vmatpush1.bf16.msra.mxu0 %v1599
    %2816 = vmatprep.subr.bf16.mxu0 %v1596
    %2817 = vmatpush1.bf16.msra.mxu0 %v1595
    %2818 = vmatprep.subr.bf16.mxu0 %v1592
    %2819 = vmatpush1.bf16.msra.mxu0 %v1591
    %2820 = vmatprep.subr.bf16.mxu0 0
    %2821 = vmatpush2.bf16.msra.mxu0 0
    %2822 = vmatprep.subr.bf16.mxu0 0
    %2823 = vmatpush2.bf16.msra.mxu0 0
    %2824 = vmatprep.subr.bf16.mxu0 0
    %2825 = vmatpush2.bf16.msra.mxu0 0
    %2826 = vmatprep.subr.bf16.mxu0 0
    %2827 = vmatpush2.bf16.msra.mxu0 0
    %2828 = vmatprep.subr.bf16.mxu0 0
    %2829 = vmatpush2.bf16.msra.mxu0 0
    %2830 = vmatprep.subr.bf16.mxu0 0
    %2831 = vmatpush2.bf16.msra.mxu0 0
    %2832 = vmatprep.subr.bf16.mxu0 0
    %2833 = vmatpush2.bf16.msra.mxu0 0
    %2834 = vmatprep.subr.bf16.mxu0 0
    %2835 = vmatpush2.bf16.msra.mxu0 0
    %2836 = vmatprep.mubr.bf16.mxu0 0
    %2837 = vmatmul.mubr.bf16.gmra.mxu0 %v2803
    %v2838 = vpop.f32.mrf.mxu0
    %v2839 = vadd.f32 0.0, %v2838
    %v2840 = vpop.f32.mrf.mxu0
    %v2841 = vadd.f32 0.0, %v2840
    %v2842 = vpop.f32.mrf.mxu0
    %v2843 = vpop.f32.mrf.mxu0
    %2844 = vdwg.mxu0
    %2845 = vmatprep.subr.bf16.mxu0 %v1622
    %2846 = vmatpush1.bf16.msra.mxu0 %v1621
    %2847 = vmatprep.subr.bf16.mxu0 %v1618
    %2848 = vmatpush1.bf16.msra.mxu0 %v1617
    %2849 = vmatprep.subr.bf16.mxu0 %v1614
    %2850 = vmatpush1.bf16.msra.mxu0 %v1613
    %2851 = vmatprep.subr.bf16.mxu0 %v1610
    %2852 = vmatpush1.bf16.msra.mxu0 %v1609
    %2853 = vmatprep.subr.bf16.mxu0 %v1606
    %2854 = vmatpush1.bf16.msra.mxu0 %v1605
    %2855 = vmatprep.subr.bf16.mxu0 %v1602
    %2856 = vmatpush1.bf16.msra.mxu0 %v1601
    %2857 = vmatprep.subr.bf16.mxu0 %v1598
    %2858 = vmatpush1.bf16.msra.mxu0 %v1597
    %2859 = vmatprep.subr.bf16.mxu0 %v1594
    %2860 = vmatpush1.bf16.msra.mxu0 %v1593
    %2861 = vmatprep.subr.bf16.mxu0 0
    %2862 = vmatpush2.bf16.msra.mxu0 0
    %2863 = vmatprep.subr.bf16.mxu0 0
    %2864 = vmatpush2.bf16.msra.mxu0 0
    %2865 = vmatprep.subr.bf16.mxu0 0
    %2866 = vmatpush2.bf16.msra.mxu0 0
    %2867 = vmatprep.subr.bf16.mxu0 0
    %2868 = vmatpush2.bf16.msra.mxu0 0
    %2869 = vmatprep.subr.bf16.mxu0 0
    %2870 = vmatpush2.bf16.msra.mxu0 0
    %2871 = vmatprep.subr.bf16.mxu0 0
    %2872 = vmatpush2.bf16.msra.mxu0 0
    %2873 = vmatprep.subr.bf16.mxu0 0
    %2874 = vmatpush2.bf16.msra.mxu0 0
    %2875 = vmatprep.subr.bf16.mxu0 0
    %2876 = vmatpush2.bf16.msra.mxu0 0
    %2877 = vmatprep.mubr.bf16.mxu0 0
    %2878 = vmatmul.mubr.bf16.gmra.mxu0 %v2803
    %v2879 = vpop.f32.mrf.mxu0
    %v2880 = vadd.f32 0.0, %v2879
    %v2881 = vpop.f32.mrf.mxu0
    %v2882 = vadd.f32 0.0, %v2881
    %v2883 = vpop.f32.mrf.mxu0
    %v2884 = vpop.f32.mrf.mxu0
    %2885 = vdwg.mxu0
    %v2886 = vadd.f32 %v2799, %v2839
    %v2887 = vadd.f32 %v2800, %v2841
    %v2888 = vadd.f32 %v2801, %v2880
    %v2889 = vadd.f32 %v2802, %v2882
    %v2890 = vxor.u32 %v2886, 2147483648
    %v2891 = vmul.f32 %v2890, 1.442695
    %v2892 = vpow.pop %v2891
    %v2893 = vadd.f32 %v2892, 1.0
    %v2894 = vrcp.pop %v2893
    %v2895 = vmul.f32 1.0, %v2894
    %v2896 = vxor.u32 %v2887, 2147483648
    %v2897 = vmul.f32 %v2896, 1.442695
    %v2898 = vpow.pop %v2897
    %v2899 = vadd.f32 %v2898, 1.0
    %v2900 = vrcp.pop %v2899
    %v2901 = vmul.f32 1.0, %v2900
    %v2902 = vtanh.pop %v2888
    %v2903 = vxor.u32 %v2889, 2147483648
    %v2904 = vmul.f32 %v2903, 1.442695
    %v2905 = vpow.pop %v2904
    %v2906 = vadd.f32 %v2905, 1.0
    %v2907 = vrcp.pop %v2906
    %v2908 = vmul.f32 1.0, %v2907
    %v2909 = vmul.f32 %v2901, %v1762
    %v2910 = vmul.f32 %v2895, %v2902
    %v2911 = vadd.f32 %v2909, %v2910
    %v2912 = vtanh.pop %v2911
    %v2913 = vmul.f32 %v2908, %v2912
    %v2914 = vpack.c.bf16 %v2281, %v2281
    %2915 = vmatprep.subr.bf16.mxu0 %v2052
    %2916 = vmatpush1.bf16.msra.mxu0 %v2051
    %2917 = vmatprep.subr.bf16.mxu0 %v2048
    %2918 = vmatpush1.bf16.msra.mxu0 %v2047
    %2919 = vmatprep.subr.bf16.mxu0 %v2044
    %2920 = vmatpush1.bf16.msra.mxu0 %v2043
    %2921 = vmatprep.subr.bf16.mxu0 %v2040
    %2922 = vmatpush1.bf16.msra.mxu0 %v2039
    %2923 = vmatprep.subr.bf16.mxu0 %v2036
    %2924 = vmatpush1.bf16.msra.mxu0 %v2035
    %2925 = vmatprep.subr.bf16.mxu0 %v2032
    %2926 = vmatpush1.bf16.msra.mxu0 %v2031
    %2927 = vmatprep.subr.bf16.mxu0 %v2028
    %2928 = vmatpush1.bf16.msra.mxu0 %v2027
    %2929 = vmatprep.subr.bf16.mxu0 %v2024
    %2930 = vmatpush1.bf16.msra.mxu0 %v2023
    %2931 = vmatprep.subr.bf16.mxu0 %v2084
    %2932 = vmatpush2.bf16.msra.mxu0 %v2083
    %2933 = vmatprep.subr.bf16.mxu0 %v2080
    %2934 = vmatpush2.bf16.msra.mxu0 %v2079
    %2935 = vmatprep.subr.bf16.mxu0 %v2076
    %2936 = vmatpush2.bf16.msra.mxu0 %v2075
    %2937 = vmatprep.subr.bf16.mxu0 %v2072
    %2938 = vmatpush2.bf16.msra.mxu0 %v2071
    %2939 = vmatprep.subr.bf16.mxu0 %v2068
    %2940 = vmatpush2.bf16.msra.mxu0 %v2067
    %2941 = vmatprep.subr.bf16.mxu0 %v2064
    %2942 = vmatpush2.bf16.msra.mxu0 %v2063
    %2943 = vmatprep.subr.bf16.mxu0 %v2060
    %2944 = vmatpush2.bf16.msra.mxu0 %v2059
    %2945 = vmatprep.subr.bf16.mxu0 %v2056
    %2946 = vmatpush2.bf16.msra.mxu0 %v2055
    %2947 = vmatprep.mubr.bf16.mxu0 %v2914
    %2948 = vmatmul.mubr.bf16.gmra.mxu0 %v2803
    %v2949 = vpop.f32.mrf.mxu0
    %v2950 = vadd.f32 0.0, %v2949
    %v2951 = vpop.f32.mrf.mxu0
    %v2952 = vadd.f32 0.0, %v2951
    %v2953 = vpop.f32.mrf.mxu0
    %v2954 = vpop.f32.mrf.mxu0
    %2955 = vdwg.mxu0
    %2956 = vmatprep.subr.bf16.mxu0 %v2054
    %2957 = vmatpush1.bf16.msra.mxu0 %v2053
    %2958 = vmatprep.subr.bf16.mxu0 %v2050
    %2959 = vmatpush1.bf16.msra.mxu0 %v2049
    %2960 = vmatprep.subr.bf16.mxu0 %v2046
    %2961 = vmatpush1.bf16.msra.mxu0 %v2045
    %2962 = vmatprep.subr.bf16.mxu0 %v2042
    %2963 = vmatpush1.bf16.msra.mxu0 %v2041
    %2964 = vmatprep.subr.bf16.mxu0 %v2038
    %2965 = vmatpush1.bf16.msra.mxu0 %v2037
    %2966 = vmatprep.subr.bf16.mxu0 %v2034
    %2967 = vmatpush1.bf16.msra.mxu0 %v2033
    %2968 = vmatprep.subr.bf16.mxu0 %v2030
    %2969 = vmatpush1.bf16.msra.mxu0 %v2029
    %2970 = vmatprep.subr.bf16.mxu0 %v2026
    %2971 = vmatpush1.bf16.msra.mxu0 %v2025
    %2972 = vmatprep.subr.bf16.mxu0 %v2086
    %2973 = vmatpush2.bf16.msra.mxu0 %v2085
    %2974 = vmatprep.subr.bf16.mxu0 %v2082
    %2975 = vmatpush2.bf16.msra.mxu0 %v2081
    %2976 = vmatprep.subr.bf16.mxu0 %v2078
    %2977 = vmatpush2.bf16.msra.mxu0 %v2077
    %2978 = vmatprep.subr.bf16.mxu0 %v2074
    %2979 = vmatpush2.bf16.msra.mxu0 %v2073
    %2980 = vmatprep.subr.bf16.mxu0 %v2070
    %2981 = vmatpush2.bf16.msra.mxu0 %v2069
    %2982 = vmatprep.subr.bf16.mxu0 %v2066
    %2983 = vmatpush2.bf16.msra.mxu0 %v2065
    %2984 = vmatprep.subr.bf16.mxu0 %v2062
    %2985 = vmatpush2.bf16.msra.mxu0 %v2061
    %2986 = vmatprep.subr.bf16.mxu0 %v2058
    %2987 = vmatpush2.bf16.msra.mxu0 %v2057
    %2988 = vmatprep.mubr.bf16.mxu0 %v2914
    %2989 = vmatmul.mubr.bf16.gmra.mxu0 %v2803
    %v2990 = vpop.f32.mrf.mxu0
    %v2991 = vadd.f32 0.0, %v2990
    %v2992 = vpop.f32.mrf.mxu0
    %v2993 = vadd.f32 0.0, %v2992
    %v2994 = vpop.f32.mrf.mxu0
    %v2995 = vpop.f32.mrf.mxu0
    %2996 = vdwg.mxu0
    %v2997 = vadd.f32 %v2237, %v2950
    %v2998 = vadd.f32 %v2241, %v2952
    %v2999 = vadd.f32 %v2245, %v2991
    %v3000 = vadd.f32 %v2249, %v2993
    %v3001 = vxor.u32 %v2997, 2147483648
    %v3002 = vmul.f32 %v3001, 1.442695
    %v3003 = vpow.pop %v3002
    %v3004 = vadd.f32 %v3003, 1.0
    %v3005 = vrcp.pop %v3004
    %v3006 = vmul.f32 1.0, %v3005
    %v3007 = vxor.u32 %v2998, 2147483648
    %v3008 = vmul.f32 %v3007, 1.442695
    %v3009 = vpow.pop %v3008
    %v3010 = vadd.f32 %v3009, 1.0
    %v3011 = vrcp.pop %v3010
    %v3012 = vmul.f32 1.0, %v3011
    %v3013 = vtanh.pop %v2999
    %v3014 = vxor.u32 %v3000, 2147483648
    %v3015 = vmul.f32 %v3014, 1.442695
    %v3016 = vpow.pop %v3015
    %v3017 = vadd.f32 %v3016, 1.0
    %v3018 = vrcp.pop %v3017
    %v3019 = vmul.f32 1.0, %v3018
    %v3020 = vmul.f32 %v3012, %v2279
    %v3021 = vmul.f32 %v3006, %v3013
    %v3022 = vadd.f32 %v3020, %v3021
    %v3023 = vtanh.pop %v3022
    %v3024 = vmul.f32 %v3019, %v3023
    %v3025 = vpack.c.bf16 %v2797, %v2797
    %3026 = vmatprep.subr.bf16.mxu0 %v2568
    %3027 = vmatpush1.bf16.msra.mxu0 %v2567
    %3028 = vmatprep.subr.bf16.mxu0 %v2564
    %3029 = vmatpush1.bf16.msra.mxu0 %v2563
    %3030 = vmatprep.subr.bf16.mxu0 %v2560
    %3031 = vmatpush1.bf16.msra.mxu0 %v2559
    %3032 = vmatprep.subr.bf16.mxu0 %v2556
    %3033 = vmatpush1.bf16.msra.mxu0 %v2555
    %3034 = vmatprep.subr.bf16.mxu0 %v2552
    %3035 = vmatpush1.bf16.msra.mxu0 %v2551
    %3036 = vmatprep.subr.bf16.mxu0 %v2548
    %3037 = vmatpush1.bf16.msra.mxu0 %v2547
    %3038 = vmatprep.subr.bf16.mxu0 %v2544
    %3039 = vmatpush1.bf16.msra.mxu0 %v2543
    %3040 = vmatprep.subr.bf16.mxu0 %v2540
    %3041 = vmatpush1.bf16.msra.mxu0 %v2539
    %3042 = vmatprep.subr.bf16.mxu0 %v2600
    %3043 = vmatpush2.bf16.msra.mxu0 %v2599
    %3044 = vmatprep.subr.bf16.mxu0 %v2596
    %3045 = vmatpush2.bf16.msra.mxu0 %v2595
    %3046 = vmatprep.subr.bf16.mxu0 %v2592
    %3047 = vmatpush2.bf16.msra.mxu0 %v2591
    %3048 = vmatprep.subr.bf16.mxu0 %v2588
    %3049 = vmatpush2.bf16.msra.mxu0 %v2587
    %3050 = vmatprep.subr.bf16.mxu0 %v2584
    %3051 = vmatpush2.bf16.msra.mxu0 %v2583
    %3052 = vmatprep.subr.bf16.mxu0 %v2580
    %3053 = vmatpush2.bf16.msra.mxu0 %v2579
    %3054 = vmatprep.subr.bf16.mxu0 %v2576
    %3055 = vmatpush2.bf16.msra.mxu0 %v2575
    %3056 = vmatprep.subr.bf16.mxu0 %v2572
    %3057 = vmatpush2.bf16.msra.mxu0 %v2571
    %3058 = vmatprep.mubr.bf16.mxu0 %v3025
    %3059 = vmatmul.mubr.bf16.gmra.mxu0 %v2914
    %v3060 = vpop.f32.mrf.mxu0
    %v3061 = vadd.f32 0.0, %v3060
    %v3062 = vpop.f32.mrf.mxu0
    %v3063 = vadd.f32 0.0, %v3062
    %v3064 = vpop.f32.mrf.mxu0
    %v3065 = vpop.f32.mrf.mxu0
    %3066 = vdwg.mxu0
    %3067 = vmatprep.subr.bf16.mxu0 %v2570
    %3068 = vmatpush1.bf16.msra.mxu0 %v2569
    %3069 = vmatprep.subr.bf16.mxu0 %v2566
    %3070 = vmatpush1.bf16.msra.mxu0 %v2565
    %3071 = vmatprep.subr.bf16.mxu0 %v2562
    %3072 = vmatpush1.bf16.msra.mxu0 %v2561
    %3073 = vmatprep.subr.bf16.mxu0 %v2558
    %3074 = vmatpush1.bf16.msra.mxu0 %v2557
    %3075 = vmatprep.subr.bf16.mxu0 %v2554
    %3076 = vmatpush1.bf16.msra.mxu0 %v2553
    %3077 = vmatprep.subr.bf16.mxu0 %v2550
    %3078 = vmatpush1.bf16.msra.mxu0 %v2549
    %3079 = vmatprep.subr.bf16.mxu0 %v2546
    %3080 = vmatpush1.bf16.msra.mxu0 %v2545
    %3081 = vmatprep.subr.bf16.mxu0 %v2542
    %3082 = vmatpush1.bf16.msra.mxu0 %v2541
    %3083 = vmatprep.subr.bf16.mxu0 %v2602
    %3084 = vmatpush2.bf16.msra.mxu0 %v2601
    %3085 = vmatprep.subr.bf16.mxu0 %v2598
    %3086 = vmatpush2.bf16.msra.mxu0 %v2597
    %3087 = vmatprep.subr.bf16.mxu0 %v2594
    %3088 = vmatpush2.bf16.msra.mxu0 %v2593
    %3089 = vmatprep.subr.bf16.mxu0 %v2590
    %3090 = vmatpush2.bf16.msra.mxu0 %v2589
    %3091 = vmatprep.subr.bf16.mxu0 %v2586
    %3092 = vmatpush2.bf16.msra.mxu0 %v2585
    %3093 = vmatprep.subr.bf16.mxu0 %v2582
    %3094 = vmatpush2.bf16.msra.mxu0 %v2581
    %3095 = vmatprep.subr.bf16.mxu0 %v2578
    %3096 = vmatpush2.bf16.msra.mxu0 %v2577
    %3097 = vmatprep.subr.bf16.mxu0 %v2574
    %3098 = vmatpush2.bf16.msra.mxu0 %v2573
    %3099 = vmatprep.mubr.bf16.mxu0 %v3025
    %3100 = vmatmul.mubr.bf16.gmra.mxu0 %v2914
    %v3101 = vpop.f32.mrf.mxu0
    %v3102 = vadd.f32 0.0, %v3101
    %v3103 = vpop.f32.mrf.mxu0
    %v3104 = vadd.f32 0.0, %v3103
    %v3105 = vpop.f32.mrf.mxu0
    %v3106 = vpop.f32.mrf.mxu0
    %3107 = vdwg.mxu0
    %v3108 = vadd.f32 %v2753, %v3061
    %v3109 = vadd.f32 %v2757, %v3063
    %v3110 = vadd.f32 %v2761, %v3102
    %v3111 = vadd.f32 %v2765, %v3104
    %v3112 = vxor.u32 %v3108, 2147483648
    %v3113 = vmul.f32 %v3112, 1.442695
    %v3114 = vpow.pop %v3113
    %v3115 = vadd.f32 %v3114, 1.0
    %v3116 = vrcp.pop %v3115
    %v3117 = vmul.f32 1.0, %v3116
    %v3118 = vxor.u32 %v3109, 2147483648
    %v3119 = vmul.f32 %v3118, 1.442695
    %v3120 = vpow.pop %v3119
    %v3121 = vadd.f32 %v3120, 1.0
    %v3122 = vrcp.pop %v3121
    %v3123 = vmul.f32 1.0, %v3122
    %v3124 = vtanh.pop %v3110
    %v3125 = vxor.u32 %v3111, 2147483648
    %v3126 = vmul.f32 %v3125, 1.442695
    %v3127 = vpow.pop %v3126
    %v3128 = vadd.f32 %v3127, 1.0
    %v3129 = vrcp.pop %v3128
    %v3130 = vmul.f32 1.0, %v3129
    %v3131 = vmul.f32 %v3123, %v2795
    %v3132 = vmul.f32 %v3117, %v3124
    %v3133 = vadd.f32 %v3131, %v3132
    %v3134 = vtanh.pop %v3133
    %v3135 = vmul.f32 %v3130, %v3134
    %s3136 = scalar_lea.vmem [#allocation2], 128
    %v3137 = vld [vmem:[%s3136] sm:$0xff]
    %v3138 = vld [vmem:[%s3136 + $0x8] sm:$0xff]
    %v3139 = vld [vmem:[%s3136 + $0x10] sm:$0xff]
    %v3140 = vld [vmem:[%s3136 + $0x18] sm:$0xff]
    %v3141 = vpack.c.bf16 %v2913, %v2913
    %3142 = vmatprep.subr.bf16.mxu0 %v1620
    %3143 = vmatpush1.bf16.msra.mxu0 %v1619
    %3144 = vmatprep.subr.bf16.mxu0 %v1616
    %3145 = vmatpush1.bf16.msra.mxu0 %v1615
    %3146 = vmatprep.subr.bf16.mxu0 %v1612
    %3147 = vmatpush1.bf16.msra.mxu0 %v1611
    %3148 = vmatprep.subr.bf16.mxu0 %v1608
    %3149 = vmatpush1.bf16.msra.mxu0 %v1607
    %3150 = vmatprep.subr.bf16.mxu0 %v1604
    %3151 = vmatpush1.bf16.msra.mxu0 %v1603
    %3152 = vmatprep.subr.bf16.mxu0 %v1600
    %3153 = vmatpush1.bf16.msra.mxu0 %v1599
    %3154 = vmatprep.subr.bf16.mxu0 %v1596
    %3155 = vmatpush1.bf16.msra.mxu0 %v1595
    %3156 = vmatprep.subr.bf16.mxu0 %v1592
    %3157 = vmatpush1.bf16.msra.mxu0 %v1591
    %3158 = vmatprep.subr.bf16.mxu0 0
    %3159 = vmatpush2.bf16.msra.mxu0 0
    %3160 = vmatprep.subr.bf16.mxu0 0
    %3161 = vmatpush2.bf16.msra.mxu0 0
    %3162 = vmatprep.subr.bf16.mxu0 0
    %3163 = vmatpush2.bf16.msra.mxu0 0
    %3164 = vmatprep.subr.bf16.mxu0 0
    %3165 = vmatpush2.bf16.msra.mxu0 0
    %3166 = vmatprep.subr.bf16.mxu0 0
    %3167 = vmatpush2.bf16.msra.mxu0 0
    %3168 = vmatprep.subr.bf16.mxu0 0
    %3169 = vmatpush2.bf16.msra.mxu0 0
    %3170 = vmatprep.subr.bf16.mxu0 0
    %3171 = vmatpush2.bf16.msra.mxu0 0
    %3172 = vmatprep.subr.bf16.mxu0 0
    %3173 = vmatpush2.bf16.msra.mxu0 0
    %3174 = vmatprep.mubr.bf16.mxu0 0
    %3175 = vmatmul.mubr.bf16.gmra.mxu0 %v3141
    %v3176 = vpop.f32.mrf.mxu0
    %v3177 = vadd.f32 0.0, %v3176
    %v3178 = vpop.f32.mrf.mxu0
    %v3179 = vadd.f32 0.0, %v3178
    %v3180 = vpop.f32.mrf.mxu0
    %v3181 = vpop.f32.mrf.mxu0
    %3182 = vdwg.mxu0
    %3183 = vmatprep.subr.bf16.mxu0 %v1622
    %3184 = vmatpush1.bf16.msra.mxu0 %v1621
    %3185 = vmatprep.subr.bf16.mxu0 %v1618
    %3186 = vmatpush1.bf16.msra.mxu0 %v1617
    %3187 = vmatprep.subr.bf16.mxu0 %v1614
    %3188 = vmatpush1.bf16.msra.mxu0 %v1613
    %3189 = vmatprep.subr.bf16.mxu0 %v1610
    %3190 = vmatpush1.bf16.msra.mxu0 %v1609
    %3191 = vmatprep.subr.bf16.mxu0 %v1606
    %3192 = vmatpush1.bf16.msra.mxu0 %v1605
    %3193 = vmatprep.subr.bf16.mxu0 %v1602
    %3194 = vmatpush1.bf16.msra.mxu0 %v1601
    %3195 = vmatprep.subr.bf16.mxu0 %v1598
    %3196 = vmatpush1.bf16.msra.mxu0 %v1597
    %3197 = vmatprep.subr.bf16.mxu0 %v1594
    %3198 = vmatpush1.bf16.msra.mxu0 %v1593
    %3199 = vmatprep.subr.bf16.mxu0 0
    %3200 = vmatpush2.bf16.msra.mxu0 0
    %3201 = vmatprep.subr.bf16.mxu0 0
    %3202 = vmatpush2.bf16.msra.mxu0 0
    %3203 = vmatprep.subr.bf16.mxu0 0
    %3204 = vmatpush2.bf16.msra.mxu0 0
    %3205 = vmatprep.subr.bf16.mxu0 0
    %3206 = vmatpush2.bf16.msra.mxu0 0
    %3207 = vmatprep.subr.bf16.mxu0 0
    %3208 = vmatpush2.bf16.msra.mxu0 0
    %3209 = vmatprep.subr.bf16.mxu0 0
    %3210 = vmatpush2.bf16.msra.mxu0 0
    %3211 = vmatprep.subr.bf16.mxu0 0
    %3212 = vmatpush2.bf16.msra.mxu0 0
    %3213 = vmatprep.subr.bf16.mxu0 0
    %3214 = vmatpush2.bf16.msra.mxu0 0
    %3215 = vmatprep.mubr.bf16.mxu0 0
    %3216 = vmatmul.mubr.bf16.gmra.mxu0 %v3141
    %v3217 = vpop.f32.mrf.mxu0
    %v3218 = vadd.f32 0.0, %v3217
    %v3219 = vpop.f32.mrf.mxu0
    %v3220 = vadd.f32 0.0, %v3219
    %v3221 = vpop.f32.mrf.mxu0
    %v3222 = vpop.f32.mrf.mxu0
    %3223 = vdwg.mxu0
    %v3224 = vadd.f32 %v3137, %v3177
    %v3225 = vadd.f32 %v3138, %v3179
    %v3226 = vadd.f32 %v3139, %v3218
    %v3227 = vadd.f32 %v3140, %v3220
    %v3228 = vxor.u32 %v3224, 2147483648
    %v3229 = vmul.f32 %v3228, 1.442695
    %v3230 = vpow.pop %v3229
    %v3231 = vadd.f32 %v3230, 1.0
    %v3232 = vrcp.pop %v3231
    %v3233 = vmul.f32 1.0, %v3232
    %v3234 = vxor.u32 %v3225, 2147483648
    %v3235 = vmul.f32 %v3234, 1.442695
    %v3236 = vpow.pop %v3235
    %v3237 = vadd.f32 %v3236, 1.0
    %v3238 = vrcp.pop %v3237
    %v3239 = vmul.f32 1.0, %v3238
    %v3240 = vtanh.pop %v3226
    %v3241 = vxor.u32 %v3227, 2147483648
    %v3242 = vmul.f32 %v3241, 1.442695
    %v3243 = vpow.pop %v3242
    %v3244 = vadd.f32 %v3243, 1.0
    %v3245 = vrcp.pop %v3244
    %v3246 = vmul.f32 1.0, %v3245
    %v3247 = vmul.f32 %v3239, %v2911
    %v3248 = vmul.f32 %v3233, %v3240
    %v3249 = vadd.f32 %v3247, %v3248
    %v3250 = vtanh.pop %v3249
    %v3251 = vmul.f32 %v3246, %v3250
    %v3252 = vpack.c.bf16 %v3024, %v3024
    %3253 = vmatprep.subr.bf16.mxu0 %v2052
    %3254 = vmatpush1.bf16.msra.mxu0 %v2051
    %3255 = vmatprep.subr.bf16.mxu0 %v2048
    %3256 = vmatpush1.bf16.msra.mxu0 %v2047
    %3257 = vmatprep.subr.bf16.mxu0 %v2044
    %3258 = vmatpush1.bf16.msra.mxu0 %v2043
    %3259 = vmatprep.subr.bf16.mxu0 %v2040
    %3260 = vmatpush1.bf16.msra.mxu0 %v2039
    %3261 = vmatprep.subr.bf16.mxu0 %v2036
    %3262 = vmatpush1.bf16.msra.mxu0 %v2035
    %3263 = vmatprep.subr.bf16.mxu0 %v2032
    %3264 = vmatpush1.bf16.msra.mxu0 %v2031
    %3265 = vmatprep.subr.bf16.mxu0 %v2028
    %3266 = vmatpush1.bf16.msra.mxu0 %v2027
    %3267 = vmatprep.subr.bf16.mxu0 %v2024
    %3268 = vmatpush1.bf16.msra.mxu0 %v2023
    %3269 = vmatprep.subr.bf16.mxu0 %v2084
    %3270 = vmatpush2.bf16.msra.mxu0 %v2083
    %3271 = vmatprep.subr.bf16.mxu0 %v2080
    %3272 = vmatpush2.bf16.msra.mxu0 %v2079
    %3273 = vmatprep.subr.bf16.mxu0 %v2076
    %3274 = vmatpush2.bf16.msra.mxu0 %v2075
    %3275 = vmatprep.subr.bf16.mxu0 %v2072
    %3276 = vmatpush2.bf16.msra.mxu0 %v2071
    %3277 = vmatprep.subr.bf16.mxu0 %v2068
    %3278 = vmatpush2.bf16.msra.mxu0 %v2067
    %3279 = vmatprep.subr.bf16.mxu0 %v2064
    %3280 = vmatpush2.bf16.msra.mxu0 %v2063
    %3281 = vmatprep.subr.bf16.mxu0 %v2060
    %3282 = vmatpush2.bf16.msra.mxu0 %v2059
    %3283 = vmatprep.subr.bf16.mxu0 %v2056
    %3284 = vmatpush2.bf16.msra.mxu0 %v2055
    %3285 = vmatprep.mubr.bf16.mxu0 %v3252
    %3286 = vmatmul.mubr.bf16.gmra.mxu0 %v3141
    %v3287 = vpop.f32.mrf.mxu0
    %v3288 = vadd.f32 0.0, %v3287
    %v3289 = vpop.f32.mrf.mxu0
    %v3290 = vadd.f32 0.0, %v3289
    %v3291 = vpop.f32.mrf.mxu0
    %v3292 = vpop.f32.mrf.mxu0
    %3293 = vdwg.mxu0
    %3294 = vmatprep.subr.bf16.mxu0 %v2054
    %3295 = vmatpush1.bf16.msra.mxu0 %v2053
    %3296 = vmatprep.subr.bf16.mxu0 %v2050
    %3297 = vmatpush1.bf16.msra.mxu0 %v2049
    %3298 = vmatprep.subr.bf16.mxu0 %v2046
    %3299 = vmatpush1.bf16.msra.mxu0 %v2045
    %3300 = vmatprep.subr.bf16.mxu0 %v2042
    %3301 = vmatpush1.bf16.msra.mxu0 %v2041
    %3302 = vmatprep.subr.bf16.mxu0 %v2038
    %3303 = vmatpush1.bf16.msra.mxu0 %v2037
    %3304 = vmatprep.subr.bf16.mxu0 %v2034
    %3305 = vmatpush1.bf16.msra.mxu0 %v2033
    %3306 = vmatprep.subr.bf16.mxu0 %v2030
    %3307 = vmatpush1.bf16.msra.mxu0 %v2029
    %3308 = vmatprep.subr.bf16.mxu0 %v2026
    %3309 = vmatpush1.bf16.msra.mxu0 %v2025
    %3310 = vmatprep.subr.bf16.mxu0 %v2086
    %3311 = vmatpush2.bf16.msra.mxu0 %v2085
    %3312 = vmatprep.subr.bf16.mxu0 %v2082
    %3313 = vmatpush2.bf16.msra.mxu0 %v2081
    %3314 = vmatprep.subr.bf16.mxu0 %v2078
    %3315 = vmatpush2.bf16.msra.mxu0 %v2077
    %3316 = vmatprep.subr.bf16.mxu0 %v2074
    %3317 = vmatpush2.bf16.msra.mxu0 %v2073
    %3318 = vmatprep.subr.bf16.mxu0 %v2070
    %3319 = vmatpush2.bf16.msra.mxu0 %v2069
    %3320 = vmatprep.subr.bf16.mxu0 %v2066
    %3321 = vmatpush2.bf16.msra.mxu0 %v2065
    %3322 = vmatprep.subr.bf16.mxu0 %v2062
    %3323 = vmatpush2.bf16.msra.mxu0 %v2061
    %3324 = vmatprep.subr.bf16.mxu0 %v2058
    %3325 = vmatpush2.bf16.msra.mxu0 %v2057
    %3326 = vmatprep.mubr.bf16.mxu0 %v3252
    %3327 = vmatmul.mubr.bf16.gmra.mxu0 %v3141
    %v3328 = vpop.f32.mrf.mxu0
    %v3329 = vadd.f32 0.0, %v3328
    %v3330 = vpop.f32.mrf.mxu0
    %v3331 = vadd.f32 0.0, %v3330
    %v3332 = vpop.f32.mrf.mxu0
    %v3333 = vpop.f32.mrf.mxu0
    %3334 = vdwg.mxu0
    %v3335 = vadd.f32 %v2237, %v3288
    %v3336 = vadd.f32 %v2241, %v3290
    %v3337 = vadd.f32 %v2245, %v3329
    %v3338 = vadd.f32 %v2249, %v3331
    %v3339 = vxor.u32 %v3335, 2147483648
    %v3340 = vmul.f32 %v3339, 1.442695
    %v3341 = vpow.pop %v3340
    %v3342 = vadd.f32 %v3341, 1.0
    %v3343 = vrcp.pop %v3342
    %v3344 = vmul.f32 1.0, %v3343
    %v3345 = vxor.u32 %v3336, 2147483648
    %v3346 = vmul.f32 %v3345, 1.442695
    %v3347 = vpow.pop %v3346
    %v3348 = vadd.f32 %v3347, 1.0
    %v3349 = vrcp.pop %v3348
    %v3350 = vmul.f32 1.0, %v3349
    %v3351 = vtanh.pop %v3337
    %v3352 = vxor.u32 %v3338, 2147483648
    %v3353 = vmul.f32 %v3352, 1.442695
    %v3354 = vpow.pop %v3353
    %v3355 = vadd.f32 %v3354, 1.0
    %v3356 = vrcp.pop %v3355
    %v3357 = vmul.f32 1.0, %v3356
    %v3358 = vmul.f32 %v3350, %v3022
    %v3359 = vmul.f32 %v3344, %v3351
    %v3360 = vadd.f32 %v3358, %v3359
    %v3361 = vtanh.pop %v3360
    %v3362 = vmul.f32 %v3357, %v3361
    %v3363 = vpack.c.bf16 %v3135, %v3135
    %3364 = vmatprep.subr.bf16.mxu0 %v2568
    %3365 = vmatpush1.bf16.msra.mxu0 %v2567
    %3366 = vmatprep.subr.bf16.mxu0 %v2564
    %3367 = vmatpush1.bf16.msra.mxu0 %v2563
    %3368 = vmatprep.subr.bf16.mxu0 %v2560
    %3369 = vmatpush1.bf16.msra.mxu0 %v2559
    %3370 = vmatprep.subr.bf16.mxu0 %v2556
    %3371 = vmatpush1.bf16.msra.mxu0 %v2555
    %3372 = vmatprep.subr.bf16.mxu0 %v2552
    %3373 = vmatpush1.bf16.msra.mxu0 %v2551
    %3374 = vmatprep.subr.bf16.mxu0 %v2548
    %3375 = vmatpush1.bf16.msra.mxu0 %v2547
    %3376 = vmatprep.subr.bf16.mxu0 %v2544
    %3377 = vmatpush1.bf16.msra.mxu0 %v2543
    %3378 = vmatprep.subr.bf16.mxu0 %v2540
    %3379 = vmatpush1.bf16.msra.mxu0 %v2539
    %3380 = vmatprep.subr.bf16.mxu0 %v2600
    %3381 = vmatpush2.bf16.msra.mxu0 %v2599
    %3382 = vmatprep.subr.bf16.mxu0 %v2596
    %3383 = vmatpush2.bf16.msra.mxu0 %v2595
    %3384 = vmatprep.subr.bf16.mxu0 %v2592
    %3385 = vmatpush2.bf16.msra.mxu0 %v2591
    %3386 = vmatprep.subr.bf16.mxu0 %v2588
    %3387 = vmatpush2.bf16.msra.mxu0 %v2587
    %3388 = vmatprep.subr.bf16.mxu0 %v2584
    %3389 = vmatpush2.bf16.msra.mxu0 %v2583
    %3390 = vmatprep.subr.bf16.mxu0 %v2580
    %3391 = vmatpush2.bf16.msra.mxu0 %v2579
    %3392 = vmatprep.subr.bf16.mxu0 %v2576
    %3393 = vmatpush2.bf16.msra.mxu0 %v2575
    %3394 = vmatprep.subr.bf16.mxu0 %v2572
    %3395 = vmatpush2.bf16.msra.mxu0 %v2571
    %3396 = vmatprep.mubr.bf16.mxu0 %v3363
    %3397 = vmatmul.mubr.bf16.gmra.mxu0 %v3252
    %v3398 = vpop.f32.mrf.mxu0
    %v3399 = vadd.f32 0.0, %v3398
    %v3400 = vpop.f32.mrf.mxu0
    %v3401 = vadd.f32 0.0, %v3400
    %v3402 = vpop.f32.mrf.mxu0
    %v3403 = vpop.f32.mrf.mxu0
    %3404 = vdwg.mxu0
    %3405 = vmatprep.subr.bf16.mxu0 %v2570
    %3406 = vmatpush1.bf16.msra.mxu0 %v2569
    %3407 = vmatprep.subr.bf16.mxu0 %v2566
    %3408 = vmatpush1.bf16.msra.mxu0 %v2565
    %3409 = vmatprep.subr.bf16.mxu0 %v2562
    %3410 = vmatpush1.bf16.msra.mxu0 %v2561
    %3411 = vmatprep.subr.bf16.mxu0 %v2558
    %3412 = vmatpush1.bf16.msra.mxu0 %v2557
    %3413 = vmatprep.subr.bf16.mxu0 %v2554
    %3414 = vmatpush1.bf16.msra.mxu0 %v2553
    %3415 = vmatprep.subr.bf16.mxu0 %v2550
    %3416 = vmatpush1.bf16.msra.mxu0 %v2549
    %3417 = vmatprep.subr.bf16.mxu0 %v2546
    %3418 = vmatpush1.bf16.msra.mxu0 %v2545
    %3419 = vmatprep.subr.bf16.mxu0 %v2542
    %3420 = vmatpush1.bf16.msra.mxu0 %v2541
    %3421 = vmatprep.subr.bf16.mxu0 %v2602
    %3422 = vmatpush2.bf16.msra.mxu0 %v2601
    %3423 = vmatprep.subr.bf16.mxu0 %v2598
    %3424 = vmatpush2.bf16.msra.mxu0 %v2597
    %3425 = vmatprep.subr.bf16.mxu0 %v2594
    %3426 = vmatpush2.bf16.msra.mxu0 %v2593
    %3427 = vmatprep.subr.bf16.mxu0 %v2590
    %3428 = vmatpush2.bf16.msra.mxu0 %v2589
    %3429 = vmatprep.subr.bf16.mxu0 %v2586
    %3430 = vmatpush2.bf16.msra.mxu0 %v2585
    %3431 = vmatprep.subr.bf16.mxu0 %v2582
    %3432 = vmatpush2.bf16.msra.mxu0 %v2581
    %3433 = vmatprep.subr.bf16.mxu0 %v2578
    %3434 = vmatpush2.bf16.msra.mxu0 %v2577
    %3435 = vmatprep.subr.bf16.mxu0 %v2574
    %3436 = vmatpush2.bf16.msra.mxu0 %v2573
    %3437 = vmatprep.mubr.bf16.mxu0 %v3363
    %3438 = vmatmul.mubr.bf16.gmra.mxu0 %v3252
    %v3439 = vpop.f32.mrf.mxu0
    %v3440 = vadd.f32 0.0, %v3439
    %v3441 = vpop.f32.mrf.mxu0
    %v3442 = vadd.f32 0.0, %v3441
    %v3443 = vpop.f32.mrf.mxu0
    %v3444 = vpop.f32.mrf.mxu0
    %3445 = vdwg.mxu0
    %v3446 = vadd.f32 %v2753, %v3399
    %v3447 = vadd.f32 %v2757, %v3401
    %v3448 = vadd.f32 %v2761, %v3440
    %v3449 = vadd.f32 %v2765, %v3442
    %v3450 = vxor.u32 %v3446, 2147483648
    %v3451 = vmul.f32 %v3450, 1.442695
    %v3452 = vpow.pop %v3451
    %v3453 = vadd.f32 %v3452, 1.0
    %v3454 = vrcp.pop %v3453
    %v3455 = vmul.f32 1.0, %v3454
    %v3456 = vxor.u32 %v3447, 2147483648
    %v3457 = vmul.f32 %v3456, 1.442695
    %v3458 = vpow.pop %v3457
    %v3459 = vadd.f32 %v3458, 1.0
    %v3460 = vrcp.pop %v3459
    %v3461 = vmul.f32 1.0, %v3460
    %v3462 = vtanh.pop %v3448
    %v3463 = vxor.u32 %v3449, 2147483648
    %v3464 = vmul.f32 %v3463, 1.442695
    %v3465 = vpow.pop %v3464
    %v3466 = vadd.f32 %v3465, 1.0
    %v3467 = vrcp.pop %v3466
    %v3468 = vmul.f32 1.0, %v3467
    %v3469 = vmul.f32 %v3461, %v3133
    %v3470 = vmul.f32 %v3455, %v3462
    %v3471 = vadd.f32 %v3469, %v3470
    %v3472 = vtanh.pop %v3471
    %v3473 = vmul.f32 %v3468, %v3472
    %s3474 = scalar_lea.vmem [#allocation2], 160
    %v3475 = vld [vmem:[%s3474] sm:$0xff]
    %v3476 = vld [vmem:[%s3474 + $0x8] sm:$0xff]
    %v3477 = vld [vmem:[%s3474 + $0x10] sm:$0xff]
    %v3478 = vld [vmem:[%s3474 + $0x18] sm:$0xff]
    %v3479 = vpack.c.bf16 %v3251, %v3251
    %3480 = vmatprep.subr.bf16.mxu0 %v1620
    %3481 = vmatpush1.bf16.msra.mxu0 %v1619
    %3482 = vmatprep.subr.bf16.mxu0 %v1616
    %3483 = vmatpush1.bf16.msra.mxu0 %v1615
    %3484 = vmatprep.subr.bf16.mxu0 %v1612
    %3485 = vmatpush1.bf16.msra.mxu0 %v1611
    %3486 = vmatprep.subr.bf16.mxu0 %v1608
    %3487 = vmatpush1.bf16.msra.mxu0 %v1607
    %3488 = vmatprep.subr.bf16.mxu0 %v1604
    %3489 = vmatpush1.bf16.msra.mxu0 %v1603
    %3490 = vmatprep.subr.bf16.mxu0 %v1600
    %3491 = vmatpush1.bf16.msra.mxu0 %v1599
    %3492 = vmatprep.subr.bf16.mxu0 %v1596
    %3493 = vmatpush1.bf16.msra.mxu0 %v1595
    %3494 = vmatprep.subr.bf16.mxu0 %v1592
    %3495 = vmatpush1.bf16.msra.mxu0 %v1591
    %3496 = vmatprep.subr.bf16.mxu0 0
    %3497 = vmatpush2.bf16.msra.mxu0 0
    %3498 = vmatprep.subr.bf16.mxu0 0
    %3499 = vmatpush2.bf16.msra.mxu0 0
    %3500 = vmatprep.subr.bf16.mxu0 0
    %3501 = vmatpush2.bf16.msra.mxu0 0
    %3502 = vmatprep.subr.bf16.mxu0 0
    %3503 = vmatpush2.bf16.msra.mxu0 0
    %3504 = vmatprep.subr.bf16.mxu0 0
    %3505 = vmatpush2.bf16.msra.mxu0 0
    %3506 = vmatprep.subr.bf16.mxu0 0
    %3507 = vmatpush2.bf16.msra.mxu0 0
    %3508 = vmatprep.subr.bf16.mxu0 0
    %3509 = vmatpush2.bf16.msra.mxu0 0
    %3510 = vmatprep.subr.bf16.mxu0 0
    %3511 = vmatpush2.bf16.msra.mxu0 0
    %3512 = vmatprep.mubr.bf16.mxu0 0
    %3513 = vmatmul.mubr.bf16.gmra.mxu0 %v3479
    %v3514 = vpop.f32.mrf.mxu0
    %v3515 = vadd.f32 0.0, %v3514
    %v3516 = vpop.f32.mrf.mxu0
    %v3517 = vadd.f32 0.0, %v3516
    %v3518 = vpop.f32.mrf.mxu0
    %v3519 = vpop.f32.mrf.mxu0
    %3520 = vdwg.mxu0
    %3521 = vmatprep.subr.bf16.mxu0 %v1622
    %3522 = vmatpush1.bf16.msra.mxu0 %v1621
    %3523 = vmatprep.subr.bf16.mxu0 %v1618
    %3524 = vmatpush1.bf16.msra.mxu0 %v1617
    %3525 = vmatprep.subr.bf16.mxu0 %v1614
    %3526 = vmatpush1.bf16.msra.mxu0 %v1613
    %3527 = vmatprep.subr.bf16.mxu0 %v1610
    %3528 = vmatpush1.bf16.msra.mxu0 %v1609
    %3529 = vmatprep.subr.bf16.mxu0 %v1606
    %3530 = vmatpush1.bf16.msra.mxu0 %v1605
    %3531 = vmatprep.subr.bf16.mxu0 %v1602
    %3532 = vmatpush1.bf16.msra.mxu0 %v1601
    %3533 = vmatprep.subr.bf16.mxu0 %v1598
    %3534 = vmatpush1.bf16.msra.mxu0 %v1597
    %3535 = vmatprep.subr.bf16.mxu0 %v1594
    %3536 = vmatpush1.bf16.msra.mxu0 %v1593
    %3537 = vmatprep.subr.bf16.mxu0 0
    %3538 = vmatpush2.bf16.msra.mxu0 0
    %3539 = vmatprep.subr.bf16.mxu0 0
    %3540 = vmatpush2.bf16.msra.mxu0 0
    %3541 = vmatprep.subr.bf16.mxu0 0
    %3542 = vmatpush2.bf16.msra.mxu0 0
    %3543 = vmatprep.subr.bf16.mxu0 0
    %3544 = vmatpush2.bf16.msra.mxu0 0
    %3545 = vmatprep.subr.bf16.mxu0 0
    %3546 = vmatpush2.bf16.msra.mxu0 0
    %3547 = vmatprep.subr.bf16.mxu0 0
    %3548 = vmatpush2.bf16.msra.mxu0 0
    %3549 = vmatprep.subr.bf16.mxu0 0
    %3550 = vmatpush2.bf16.msra.mxu0 0
    %3551 = vmatprep.subr.bf16.mxu0 0
    %3552 = vmatpush2.bf16.msra.mxu0 0
    %3553 = vmatprep.mubr.bf16.mxu0 0
    %3554 = vmatmul.mubr.bf16.gmra.mxu0 %v3479
    %v3555 = vpop.f32.mrf.mxu0
    %v3556 = vadd.f32 0.0, %v3555
    %v3557 = vpop.f32.mrf.mxu0
    %v3558 = vadd.f32 0.0, %v3557
    %v3559 = vpop.f32.mrf.mxu0
    %v3560 = vpop.f32.mrf.mxu0
    %3561 = vdwg.mxu0
    %v3562 = vadd.f32 %v3475, %v3515
    %v3563 = vadd.f32 %v3476, %v3517
    %v3564 = vadd.f32 %v3477, %v3556
    %v3565 = vadd.f32 %v3478, %v3558
    %v3566 = vxor.u32 %v3562, 2147483648
    %v3567 = vmul.f32 %v3566, 1.442695
    %v3568 = vpow.pop %v3567
    %v3569 = vadd.f32 %v3568, 1.0
    %v3570 = vrcp.pop %v3569
    %v3571 = vmul.f32 1.0, %v3570
    %v3572 = vxor.u32 %v3563, 2147483648
    %v3573 = vmul.f32 %v3572, 1.442695
    %v3574 = vpow.pop %v3573
    %v3575 = vadd.f32 %v3574, 1.0
    %v3576 = vrcp.pop %v3575
    %v3577 = vmul.f32 1.0, %v3576
    %v3578 = vtanh.pop %v3564
    %v3579 = vxor.u32 %v3565, 2147483648
    %v3580 = vmul.f32 %v3579, 1.442695
    %v3581 = vpow.pop %v3580
    %v3582 = vadd.f32 %v3581, 1.0
    %v3583 = vrcp.pop %v3582
    %v3584 = vmul.f32 1.0, %v3583
    %v3585 = vmul.f32 %v3577, %v3249
    %v3586 = vmul.f32 %v3571, %v3578
    %v3587 = vadd.f32 %v3585, %v3586
    %v3588 = vtanh.pop %v3587
    %v3589 = vmul.f32 %v3584, %v3588
    %v3590 = vpack.c.bf16 %v3362, %v3362
    %3591 = vmatprep.subr.bf16.mxu0 %v2052
    %3592 = vmatpush1.bf16.msra.mxu0 %v2051
    %3593 = vmatprep.subr.bf16.mxu0 %v2048
    %3594 = vmatpush1.bf16.msra.mxu0 %v2047
    %3595 = vmatprep.subr.bf16.mxu0 %v2044
    %3596 = vmatpush1.bf16.msra.mxu0 %v2043
    %3597 = vmatprep.subr.bf16.mxu0 %v2040
    %3598 = vmatpush1.bf16.msra.mxu0 %v2039
    %3599 = vmatprep.subr.bf16.mxu0 %v2036
    %3600 = vmatpush1.bf16.msra.mxu0 %v2035
    %3601 = vmatprep.subr.bf16.mxu0 %v2032
    %3602 = vmatpush1.bf16.msra.mxu0 %v2031
    %3603 = vmatprep.subr.bf16.mxu0 %v2028
    %3604 = vmatpush1.bf16.msra.mxu0 %v2027
    %3605 = vmatprep.subr.bf16.mxu0 %v2024
    %3606 = vmatpush1.bf16.msra.mxu0 %v2023
    %3607 = vmatprep.subr.bf16.mxu0 %v2084
    %3608 = vmatpush2.bf16.msra.mxu0 %v2083
    %3609 = vmatprep.subr.bf16.mxu0 %v2080
    %3610 = vmatpush2.bf16.msra.mxu0 %v2079
    %3611 = vmatprep.subr.bf16.mxu0 %v2076
    %3612 = vmatpush2.bf16.msra.mxu0 %v2075
    %3613 = vmatprep.subr.bf16.mxu0 %v2072
    %3614 = vmatpush2.bf16.msra.mxu0 %v2071
    %3615 = vmatprep.subr.bf16.mxu0 %v2068
    %3616 = vmatpush2.bf16.msra.mxu0 %v2067
    %3617 = vmatprep.subr.bf16.mxu0 %v2064
    %3618 = vmatpush2.bf16.msra.mxu0 %v2063
    %3619 = vmatprep.subr.bf16.mxu0 %v2060
    %3620 = vmatpush2.bf16.msra.mxu0 %v2059
    %3621 = vmatprep.subr.bf16.mxu0 %v2056
    %3622 = vmatpush2.bf16.msra.mxu0 %v2055
    %3623 = vmatprep.mubr.bf16.mxu0 %v3590
    %3624 = vmatmul.mubr.bf16.gmra.mxu0 %v3479
    %v3625 = vpop.f32.mrf.mxu0
    %v3626 = vadd.f32 0.0, %v3625
    %v3627 = vpop.f32.mrf.mxu0
    %v3628 = vadd.f32 0.0, %v3627
    %v3629 = vpop.f32.mrf.mxu0
    %v3630 = vpop.f32.mrf.mxu0
    %3631 = vdwg.mxu0
    %3632 = vmatprep.subr.bf16.mxu0 %v2054
    %3633 = vmatpush1.bf16.msra.mxu0 %v2053
    %3634 = vmatprep.subr.bf16.mxu0 %v2050
    %3635 = vmatpush1.bf16.msra.mxu0 %v2049
    %3636 = vmatprep.subr.bf16.mxu0 %v2046
    %3637 = vmatpush1.bf16.msra.mxu0 %v2045
    %3638 = vmatprep.subr.bf16.mxu0 %v2042
    %3639 = vmatpush1.bf16.msra.mxu0 %v2041
    %3640 = vmatprep.subr.bf16.mxu0 %v2038
    %3641 = vmatpush1.bf16.msra.mxu0 %v2037
    %3642 = vmatprep.subr.bf16.mxu0 %v2034
    %3643 = vmatpush1.bf16.msra.mxu0 %v2033
    %3644 = vmatprep.subr.bf16.mxu0 %v2030
    %3645 = vmatpush1.bf16.msra.mxu0 %v2029
    %3646 = vmatprep.subr.bf16.mxu0 %v2026
    %3647 = vmatpush1.bf16.msra.mxu0 %v2025
    %3648 = vmatprep.subr.bf16.mxu0 %v2086
    %3649 = vmatpush2.bf16.msra.mxu0 %v2085
    %3650 = vmatprep.subr.bf16.mxu0 %v2082
    %3651 = vmatpush2.bf16.msra.mxu0 %v2081
    %3652 = vmatprep.subr.bf16.mxu0 %v2078
    %3653 = vmatpush2.bf16.msra.mxu0 %v2077
    %3654 = vmatprep.subr.bf16.mxu0 %v2074
    %3655 = vmatpush2.bf16.msra.mxu0 %v2073
    %3656 = vmatprep.subr.bf16.mxu0 %v2070
    %3657 = vmatpush2.bf16.msra.mxu0 %v2069
    %3658 = vmatprep.subr.bf16.mxu0 %v2066
    %3659 = vmatpush2.bf16.msra.mxu0 %v2065
    %3660 = vmatprep.subr.bf16.mxu0 %v2062
    %3661 = vmatpush2.bf16.msra.mxu0 %v2061
    %3662 = vmatprep.subr.bf16.mxu0 %v2058
    %3663 = vmatpush2.bf16.msra.mxu0 %v2057
    %3664 = vmatprep.mubr.bf16.mxu0 %v3590
    %3665 = vmatmul.mubr.bf16.gmra.mxu0 %v3479
    %v3666 = vpop.f32.mrf.mxu0
    %v3667 = vadd.f32 0.0, %v3666
    %v3668 = vpop.f32.mrf.mxu0
    %v3669 = vadd.f32 0.0, %v3668
    %v3670 = vpop.f32.mrf.mxu0
    %v3671 = vpop.f32.mrf.mxu0
    %3672 = vdwg.mxu0
    %v3673 = vadd.f32 %v2237, %v3626
    %v3674 = vadd.f32 %v2241, %v3628
    %v3675 = vadd.f32 %v2245, %v3667
    %v3676 = vadd.f32 %v2249, %v3669
    %v3677 = vxor.u32 %v3673, 2147483648
    %v3678 = vmul.f32 %v3677, 1.442695
    %v3679 = vpow.pop %v3678
    %v3680 = vadd.f32 %v3679, 1.0
    %v3681 = vrcp.pop %v3680
    %v3682 = vmul.f32 1.0, %v3681
    %v3683 = vxor.u32 %v3674, 2147483648
    %v3684 = vmul.f32 %v3683, 1.442695
    %v3685 = vpow.pop %v3684
    %v3686 = vadd.f32 %v3685, 1.0
    %v3687 = vrcp.pop %v3686
    %v3688 = vmul.f32 1.0, %v3687
    %v3689 = vtanh.pop %v3675
    %v3690 = vxor.u32 %v3676, 2147483648
    %v3691 = vmul.f32 %v3690, 1.442695
    %v3692 = vpow.pop %v3691
    %v3693 = vadd.f32 %v3692, 1.0
    %v3694 = vrcp.pop %v3693
    %v3695 = vmul.f32 1.0, %v3694
    %v3696 = vmul.f32 %v3688, %v3360
    %v3697 = vmul.f32 %v3682, %v3689
    %v3698 = vadd.f32 %v3696, %v3697
    %v3699 = vtanh.pop %v3698
    %v3700 = vmul.f32 %v3695, %v3699
    %v3701 = vpack.c.bf16 %v3473, %v3473
    %3702 = vmatprep.subr.bf16.mxu0 %v2568
    %3703 = vmatpush1.bf16.msra.mxu0 %v2567
    %3704 = vmatprep.subr.bf16.mxu0 %v2564
    %3705 = vmatpush1.bf16.msra.mxu0 %v2563
    %3706 = vmatprep.subr.bf16.mxu0 %v2560
    %3707 = vmatpush1.bf16.msra.mxu0 %v2559
    %3708 = vmatprep.subr.bf16.mxu0 %v2556
    %3709 = vmatpush1.bf16.msra.mxu0 %v2555
    %3710 = vmatprep.subr.bf16.mxu0 %v2552
    %3711 = vmatpush1.bf16.msra.mxu0 %v2551
    %3712 = vmatprep.subr.bf16.mxu0 %v2548
    %3713 = vmatpush1.bf16.msra.mxu0 %v2547
    %3714 = vmatprep.subr.bf16.mxu0 %v2544
    %3715 = vmatpush1.bf16.msra.mxu0 %v2543
    %3716 = vmatprep.subr.bf16.mxu0 %v2540
    %3717 = vmatpush1.bf16.msra.mxu0 %v2539
    %3718 = vmatprep.subr.bf16.mxu0 %v2600
    %3719 = vmatpush2.bf16.msra.mxu0 %v2599
    %3720 = vmatprep.subr.bf16.mxu0 %v2596
    %3721 = vmatpush2.bf16.msra.mxu0 %v2595
    %3722 = vmatprep.subr.bf16.mxu0 %v2592
    %3723 = vmatpush2.bf16.msra.mxu0 %v2591
    %3724 = vmatprep.subr.bf16.mxu0 %v2588
    %3725 = vmatpush2.bf16.msra.mxu0 %v2587
    %3726 = vmatprep.subr.bf16.mxu0 %v2584
    %3727 = vmatpush2.bf16.msra.mxu0 %v2583
    %3728 = vmatprep.subr.bf16.mxu0 %v2580
    %3729 = vmatpush2.bf16.msra.mxu0 %v2579
    %3730 = vmatprep.subr.bf16.mxu0 %v2576
    %3731 = vmatpush2.bf16.msra.mxu0 %v2575
    %3732 = vmatprep.subr.bf16.mxu0 %v2572
    %3733 = vmatpush2.bf16.msra.mxu0 %v2571
    %3734 = vmatprep.mubr.bf16.mxu0 %v3701
    %3735 = vmatmul.mubr.bf16.gmra.mxu0 %v3590
    %v3736 = vpop.f32.mrf.mxu0
    %v3737 = vadd.f32 0.0, %v3736
    %v3738 = vpop.f32.mrf.mxu0
    %v3739 = vadd.f32 0.0, %v3738
    %v3740 = vpop.f32.mrf.mxu0
    %v3741 = vpop.f32.mrf.mxu0
    %3742 = vdwg.mxu0
    %3743 = vmatprep.subr.bf16.mxu0 %v2570
    %3744 = vmatpush1.bf16.msra.mxu0 %v2569
    %3745 = vmatprep.subr.bf16.mxu0 %v2566
    %3746 = vmatpush1.bf16.msra.mxu0 %v2565
    %3747 = vmatprep.subr.bf16.mxu0 %v2562
    %3748 = vmatpush1.bf16.msra.mxu0 %v2561
    %3749 = vmatprep.subr.bf16.mxu0 %v2558
    %3750 = vmatpush1.bf16.msra.mxu0 %v2557
    %3751 = vmatprep.subr.bf16.mxu0 %v2554
    %3752 = vmatpush1.bf16.msra.mxu0 %v2553
    %3753 = vmatprep.subr.bf16.mxu0 %v2550
    %3754 = vmatpush1.bf16.msra.mxu0 %v2549
    %3755 = vmatprep.subr.bf16.mxu0 %v2546
    %3756 = vmatpush1.bf16.msra.mxu0 %v2545
    %3757 = vmatprep.subr.bf16.mxu0 %v2542
    %3758 = vmatpush1.bf16.msra.mxu0 %v2541
    %3759 = vmatprep.subr.bf16.mxu0 %v2602
    %3760 = vmatpush2.bf16.msra.mxu0 %v2601
    %3761 = vmatprep.subr.bf16.mxu0 %v2598
    %3762 = vmatpush2.bf16.msra.mxu0 %v2597
    %3763 = vmatprep.subr.bf16.mxu0 %v2594
    %3764 = vmatpush2.bf16.msra.mxu0 %v2593
    %3765 = vmatprep.subr.bf16.mxu0 %v2590
    %3766 = vmatpush2.bf16.msra.mxu0 %v2589
    %3767 = vmatprep.subr.bf16.mxu0 %v2586
    %3768 = vmatpush2.bf16.msra.mxu0 %v2585
    %3769 = vmatprep.subr.bf16.mxu0 %v2582
    %3770 = vmatpush2.bf16.msra.mxu0 %v2581
    %3771 = vmatprep.subr.bf16.mxu0 %v2578
    %3772 = vmatpush2.bf16.msra.mxu0 %v2577
    %3773 = vmatprep.subr.bf16.mxu0 %v2574
    %3774 = vmatpush2.bf16.msra.mxu0 %v2573
    %3775 = vmatprep.mubr.bf16.mxu0 %v3701
    %3776 = vmatmul.mubr.bf16.gmra.mxu0 %v3590
    %v3777 = vpop.f32.mrf.mxu0
    %v3778 = vadd.f32 0.0, %v3777
    %v3779 = vpop.f32.mrf.mxu0
    %v3780 = vadd.f32 0.0, %v3779
    %v3781 = vpop.f32.mrf.mxu0
    %v3782 = vpop.f32.mrf.mxu0
    %3783 = vdwg.mxu0
    %v3784 = vadd.f32 %v2753, %v3737
    %v3785 = vadd.f32 %v2757, %v3739
    %v3786 = vadd.f32 %v2761, %v3778
    %v3787 = vadd.f32 %v2765, %v3780
    %v3788 = vxor.u32 %v3784, 2147483648
    %v3789 = vmul.f32 %v3788, 1.442695
    %v3790 = vpow.pop %v3789
    %v3791 = vadd.f32 %v3790, 1.0
    %v3792 = vrcp.pop %v3791
    %v3793 = vmul.f32 1.0, %v3792
    %v3794 = vxor.u32 %v3785, 2147483648
    %v3795 = vmul.f32 %v3794, 1.442695
    %v3796 = vpow.pop %v3795
    %v3797 = vadd.f32 %v3796, 1.0
    %v3798 = vrcp.pop %v3797
    %v3799 = vmul.f32 1.0, %v3798
    %v3800 = vtanh.pop %v3786
    %v3801 = vxor.u32 %v3787, 2147483648
    %v3802 = vmul.f32 %v3801, 1.442695
    %v3803 = vpow.pop %v3802
    %v3804 = vadd.f32 %v3803, 1.0
    %v3805 = vrcp.pop %v3804
    %v3806 = vmul.f32 1.0, %v3805
    %v3807 = vmul.f32 %v3799, %v3471
    %v3808 = vmul.f32 %v3793, %v3800
    %v3809 = vadd.f32 %v3807, %v3808
    %v3810 = vtanh.pop %v3809
    %v3811 = vmul.f32 %v3806, %v3810
    %s3812 = scalar_lea.vmem [#allocation2], 192
    %v3813 = vld [vmem:[%s3812] sm:$0xff]
    %v3814 = vld [vmem:[%s3812 + $0x8] sm:$0xff]
    %v3815 = vld [vmem:[%s3812 + $0x10] sm:$0xff]
    %v3816 = vld [vmem:[%s3812 + $0x18] sm:$0xff]
    %v3817 = vpack.c.bf16 %v3589, %v3589
    %3818 = vmatprep.subr.bf16.mxu0 %v1620
    %3819 = vmatpush1.bf16.msra.mxu0 %v1619
    %3820 = vmatprep.subr.bf16.mxu0 %v1616
    %3821 = vmatpush1.bf16.msra.mxu0 %v1615
    %3822 = vmatprep.subr.bf16.mxu0 %v1612
    %3823 = vmatpush1.bf16.msra.mxu0 %v1611
    %3824 = vmatprep.subr.bf16.mxu0 %v1608
    %3825 = vmatpush1.bf16.msra.mxu0 %v1607
    %3826 = vmatprep.subr.bf16.mxu0 %v1604
    %3827 = vmatpush1.bf16.msra.mxu0 %v1603
    %3828 = vmatprep.subr.bf16.mxu0 %v1600
    %3829 = vmatpush1.bf16.msra.mxu0 %v1599
    %3830 = vmatprep.subr.bf16.mxu0 %v1596
    %3831 = vmatpush1.bf16.msra.mxu0 %v1595
    %3832 = vmatprep.subr.bf16.mxu0 %v1592
    %3833 = vmatpush1.bf16.msra.mxu0 %v1591
    %3834 = vmatprep.subr.bf16.mxu0 0
    %3835 = vmatpush2.bf16.msra.mxu0 0
    %3836 = vmatprep.subr.bf16.mxu0 0
    %3837 = vmatpush2.bf16.msra.mxu0 0
    %3838 = vmatprep.subr.bf16.mxu0 0
    %3839 = vmatpush2.bf16.msra.mxu0 0
    %3840 = vmatprep.subr.bf16.mxu0 0
    %3841 = vmatpush2.bf16.msra.mxu0 0
    %3842 = vmatprep.subr.bf16.mxu0 0
    %3843 = vmatpush2.bf16.msra.mxu0 0
    %3844 = vmatprep.subr.bf16.mxu0 0
    %3845 = vmatpush2.bf16.msra.mxu0 0
    %3846 = vmatprep.subr.bf16.mxu0 0
    %3847 = vmatpush2.bf16.msra.mxu0 0
    %3848 = vmatprep.subr.bf16.mxu0 0
    %3849 = vmatpush2.bf16.msra.mxu0 0
    %3850 = vmatprep.mubr.bf16.mxu0 0
    %3851 = vmatmul.mubr.bf16.gmra.mxu0 %v3817
    %v3852 = vpop.f32.mrf.mxu0
    %v3853 = vadd.f32 0.0, %v3852
    %v3854 = vpop.f32.mrf.mxu0
    %v3855 = vadd.f32 0.0, %v3854
    %v3856 = vpop.f32.mrf.mxu0
    %v3857 = vpop.f32.mrf.mxu0
    %3858 = vdwg.mxu0
    %3859 = vmatprep.subr.bf16.mxu0 %v1622
    %3860 = vmatpush1.bf16.msra.mxu0 %v1621
    %3861 = vmatprep.subr.bf16.mxu0 %v1618
    %3862 = vmatpush1.bf16.msra.mxu0 %v1617
    %3863 = vmatprep.subr.bf16.mxu0 %v1614
    %3864 = vmatpush1.bf16.msra.mxu0 %v1613
    %3865 = vmatprep.subr.bf16.mxu0 %v1610
    %3866 = vmatpush1.bf16.msra.mxu0 %v1609
    %3867 = vmatprep.subr.bf16.mxu0 %v1606
    %3868 = vmatpush1.bf16.msra.mxu0 %v1605
    %3869 = vmatprep.subr.bf16.mxu0 %v1602
    %3870 = vmatpush1.bf16.msra.mxu0 %v1601
    %3871 = vmatprep.subr.bf16.mxu0 %v1598
    %3872 = vmatpush1.bf16.msra.mxu0 %v1597
    %3873 = vmatprep.subr.bf16.mxu0 %v1594
    %3874 = vmatpush1.bf16.msra.mxu0 %v1593
    %3875 = vmatprep.subr.bf16.mxu0 0
    %3876 = vmatpush2.bf16.msra.mxu0 0
    %3877 = vmatprep.subr.bf16.mxu0 0
    %3878 = vmatpush2.bf16.msra.mxu0 0
    %3879 = vmatprep.subr.bf16.mxu0 0
    %3880 = vmatpush2.bf16.msra.mxu0 0
    %3881 = vmatprep.subr.bf16.mxu0 0
    %3882 = vmatpush2.bf16.msra.mxu0 0
    %3883 = vmatprep.subr.bf16.mxu0 0
    %3884 = vmatpush2.bf16.msra.mxu0 0
    %3885 = vmatprep.subr.bf16.mxu0 0
    %3886 = vmatpush2.bf16.msra.mxu0 0
    %3887 = vmatprep.subr.bf16.mxu0 0
    %3888 = vmatpush2.bf16.msra.mxu0 0
    %3889 = vmatprep.subr.bf16.mxu0 0
    %3890 = vmatpush2.bf16.msra.mxu0 0
    %3891 = vmatprep.mubr.bf16.mxu0 0
    %3892 = vmatmul.mubr.bf16.gmra.mxu0 %v3817
    %v3893 = vpop.f32.mrf.mxu0
    %v3894 = vadd.f32 0.0, %v3893
    %v3895 = vpop.f32.mrf.mxu0
    %v3896 = vadd.f32 0.0, %v3895
    %v3897 = vpop.f32.mrf.mxu0
    %v3898 = vpop.f32.mrf.mxu0
    %3899 = vdwg.mxu0
    %v3900 = vadd.f32 %v3813, %v3853
    %v3901 = vadd.f32 %v3814, %v3855
    %v3902 = vadd.f32 %v3815, %v3894
    %v3903 = vadd.f32 %v3816, %v3896
    %v3904 = vxor.u32 %v3900, 2147483648
    %v3905 = vmul.f32 %v3904, 1.442695
    %v3906 = vpow.pop %v3905
    %v3907 = vadd.f32 %v3906, 1.0
    %v3908 = vrcp.pop %v3907
    %v3909 = vmul.f32 1.0, %v3908
    %v3910 = vxor.u32 %v3901, 2147483648
    %v3911 = vmul.f32 %v3910, 1.442695
    %v3912 = vpow.pop %v3911
    %v3913 = vadd.f32 %v3912, 1.0
    %v3914 = vrcp.pop %v3913
    %v3915 = vmul.f32 1.0, %v3914
    %v3916 = vtanh.pop %v3902
    %v3917 = vxor.u32 %v3903, 2147483648
    %v3918 = vmul.f32 %v3917, 1.442695
    %v3919 = vpow.pop %v3918
    %v3920 = vadd.f32 %v3919, 1.0
    %v3921 = vrcp.pop %v3920
    %v3922 = vmul.f32 1.0, %v3921
    %v3923 = vmul.f32 %v3915, %v3587
    %v3924 = vmul.f32 %v3909, %v3916
    %v3925 = vadd.f32 %v3923, %v3924
    %v3926 = vtanh.pop %v3925
    %v3927 = vmul.f32 %v3922, %v3926
    %v3928 = vpack.c.bf16 %v3700, %v3700
    %3929 = vmatprep.subr.bf16.mxu0 %v2052
    %3930 = vmatpush1.bf16.msra.mxu0 %v2051
    %3931 = vmatprep.subr.bf16.mxu0 %v2048
    %3932 = vmatpush1.bf16.msra.mxu0 %v2047
    %3933 = vmatprep.subr.bf16.mxu0 %v2044
    %3934 = vmatpush1.bf16.msra.mxu0 %v2043
    %3935 = vmatprep.subr.bf16.mxu0 %v2040
    %3936 = vmatpush1.bf16.msra.mxu0 %v2039
    %3937 = vmatprep.subr.bf16.mxu0 %v2036
    %3938 = vmatpush1.bf16.msra.mxu0 %v2035
    %3939 = vmatprep.subr.bf16.mxu0 %v2032
    %3940 = vmatpush1.bf16.msra.mxu0 %v2031
    %3941 = vmatprep.subr.bf16.mxu0 %v2028
    %3942 = vmatpush1.bf16.msra.mxu0 %v2027
    %3943 = vmatprep.subr.bf16.mxu0 %v2024
    %3944 = vmatpush1.bf16.msra.mxu0 %v2023
    %3945 = vmatprep.subr.bf16.mxu0 %v2084
    %3946 = vmatpush2.bf16.msra.mxu0 %v2083
    %3947 = vmatprep.subr.bf16.mxu0 %v2080
    %3948 = vmatpush2.bf16.msra.mxu0 %v2079
    %3949 = vmatprep.subr.bf16.mxu0 %v2076
    %3950 = vmatpush2.bf16.msra.mxu0 %v2075
    %3951 = vmatprep.subr.bf16.mxu0 %v2072
    %3952 = vmatpush2.bf16.msra.mxu0 %v2071
    %3953 = vmatprep.subr.bf16.mxu0 %v2068
    %3954 = vmatpush2.bf16.msra.mxu0 %v2067
    %3955 = vmatprep.subr.bf16.mxu0 %v2064
    %3956 = vmatpush2.bf16.msra.mxu0 %v2063
    %3957 = vmatprep.subr.bf16.mxu0 %v2060
    %3958 = vmatpush2.bf16.msra.mxu0 %v2059
    %3959 = vmatprep.subr.bf16.mxu0 %v2056
    %3960 = vmatpush2.bf16.msra.mxu0 %v2055
    %3961 = vmatprep.mubr.bf16.mxu0 %v3928
    %3962 = vmatmul.mubr.bf16.gmra.mxu0 %v3817
    %v3963 = vpop.f32.mrf.mxu0
    %v3964 = vadd.f32 0.0, %v3963
    %v3965 = vpop.f32.mrf.mxu0
    %v3966 = vadd.f32 0.0, %v3965
    %v3967 = vpop.f32.mrf.mxu0
    %v3968 = vpop.f32.mrf.mxu0
    %3969 = vdwg.mxu0
    %3970 = vmatprep.subr.bf16.mxu0 %v2054
    %3971 = vmatpush1.bf16.msra.mxu0 %v2053
    %3972 = vmatprep.subr.bf16.mxu0 %v2050
    %3973 = vmatpush1.bf16.msra.mxu0 %v2049
    %3974 = vmatprep.subr.bf16.mxu0 %v2046
    %3975 = vmatpush1.bf16.msra.mxu0 %v2045
    %3976 = vmatprep.subr.bf16.mxu0 %v2042
    %3977 = vmatpush1.bf16.msra.mxu0 %v2041
    %3978 = vmatprep.subr.bf16.mxu0 %v2038
    %3979 = vmatpush1.bf16.msra.mxu0 %v2037
    %3980 = vmatprep.subr.bf16.mxu0 %v2034
    %3981 = vmatpush1.bf16.msra.mxu0 %v2033
    %3982 = vmatprep.subr.bf16.mxu0 %v2030
    %3983 = vmatpush1.bf16.msra.mxu0 %v2029
    %3984 = vmatprep.subr.bf16.mxu0 %v2026
    %3985 = vmatpush1.bf16.msra.mxu0 %v2025
    %3986 = vmatprep.subr.bf16.mxu0 %v2086
    %3987 = vmatpush2.bf16.msra.mxu0 %v2085
    %3988 = vmatprep.subr.bf16.mxu0 %v2082
    %3989 = vmatpush2.bf16.msra.mxu0 %v2081
    %3990 = vmatprep.subr.bf16.mxu0 %v2078
    %3991 = vmatpush2.bf16.msra.mxu0 %v2077
    %3992 = vmatprep.subr.bf16.mxu0 %v2074
    %3993 = vmatpush2.bf16.msra.mxu0 %v2073
    %3994 = vmatprep.subr.bf16.mxu0 %v2070
    %3995 = vmatpush2.bf16.msra.mxu0 %v2069
    %3996 = vmatprep.subr.bf16.mxu0 %v2066
    %3997 = vmatpush2.bf16.msra.mxu0 %v2065
    %3998 = vmatprep.subr.bf16.mxu0 %v2062
    %3999 = vmatpush2.bf16.msra.mxu0 %v2061
    %4000 = vmatprep.subr.bf16.mxu0 %v2058
    %4001 = vmatpush2.bf16.msra.mxu0 %v2057
    %4002 = vmatprep.mubr.bf16.mxu0 %v3928
    %4003 = vmatmul.mubr.bf16.gmra.mxu0 %v3817
    %v4004 = vpop.f32.mrf.mxu0
    %v4005 = vadd.f32 0.0, %v4004
    %v4006 = vpop.f32.mrf.mxu0
    %v4007 = vadd.f32 0.0, %v4006
    %v4008 = vpop.f32.mrf.mxu0
    %v4009 = vpop.f32.mrf.mxu0
    %4010 = vdwg.mxu0
    %v4011 = vadd.f32 %v2237, %v3964
    %v4012 = vadd.f32 %v2241, %v3966
    %v4013 = vadd.f32 %v2245, %v4005
    %v4014 = vadd.f32 %v2249, %v4007
    %v4015 = vxor.u32 %v4011, 2147483648
    %v4016 = vmul.f32 %v4015, 1.442695
    %v4017 = vpow.pop %v4016
    %v4018 = vadd.f32 %v4017, 1.0
    %v4019 = vrcp.pop %v4018
    %v4020 = vmul.f32 1.0, %v4019
    %v4021 = vxor.u32 %v4012, 2147483648
    %v4022 = vmul.f32 %v4021, 1.442695
    %v4023 = vpow.pop %v4022
    %v4024 = vadd.f32 %v4023, 1.0
    %v4025 = vrcp.pop %v4024
    %v4026 = vmul.f32 1.0, %v4025
    %v4027 = vtanh.pop %v4013
    %v4028 = vxor.u32 %v4014, 2147483648
    %v4029 = vmul.f32 %v4028, 1.442695
    %v4030 = vpow.pop %v4029
    %v4031 = vadd.f32 %v4030, 1.0
    %v4032 = vrcp.pop %v4031
    %v4033 = vmul.f32 1.0, %v4032
    %v4034 = vmul.f32 %v4026, %v3698
    %v4035 = vmul.f32 %v4020, %v4027
    %v4036 = vadd.f32 %v4034, %v4035
    %v4037 = vtanh.pop %v4036
    %v4038 = vmul.f32 %v4033, %v4037
    %v4039 = vpack.c.bf16 %v3811, %v3811
    %4040 = vmatprep.subr.bf16.mxu0 %v2568
    %4041 = vmatpush1.bf16.msra.mxu0 %v2567
    %4042 = vmatprep.subr.bf16.mxu0 %v2564
    %4043 = vmatpush1.bf16.msra.mxu0 %v2563
    %4044 = vmatprep.subr.bf16.mxu0 %v2560
    %4045 = vmatpush1.bf16.msra.mxu0 %v2559
    %4046 = vmatprep.subr.bf16.mxu0 %v2556
    %4047 = vmatpush1.bf16.msra.mxu0 %v2555
    %4048 = vmatprep.subr.bf16.mxu0 %v2552
    %4049 = vmatpush1.bf16.msra.mxu0 %v2551
    %4050 = vmatprep.subr.bf16.mxu0 %v2548
    %4051 = vmatpush1.bf16.msra.mxu0 %v2547
    %4052 = vmatprep.subr.bf16.mxu0 %v2544
    %4053 = vmatpush1.bf16.msra.mxu0 %v2543
    %4054 = vmatprep.subr.bf16.mxu0 %v2540
    %4055 = vmatpush1.bf16.msra.mxu0 %v2539
    %4056 = vmatprep.subr.bf16.mxu0 %v2600
    %4057 = vmatpush2.bf16.msra.mxu0 %v2599
    %4058 = vmatprep.subr.bf16.mxu0 %v2596
    %4059 = vmatpush2.bf16.msra.mxu0 %v2595
    %4060 = vmatprep.subr.bf16.mxu0 %v2592
    %4061 = vmatpush2.bf16.msra.mxu0 %v2591
    %4062 = vmatprep.subr.bf16.mxu0 %v2588
    %4063 = vmatpush2.bf16.msra.mxu0 %v2587
    %4064 = vmatprep.subr.bf16.mxu0 %v2584
    %4065 = vmatpush2.bf16.msra.mxu0 %v2583
    %4066 = vmatprep.subr.bf16.mxu0 %v2580
    %4067 = vmatpush2.bf16.msra.mxu0 %v2579
    %4068 = vmatprep.subr.bf16.mxu0 %v2576
    %4069 = vmatpush2.bf16.msra.mxu0 %v2575
    %4070 = vmatprep.subr.bf16.mxu0 %v2572
    %4071 = vmatpush2.bf16.msra.mxu0 %v2571
    %4072 = vmatprep.mubr.bf16.mxu0 %v4039
    %4073 = vmatmul.mubr.bf16.gmra.mxu0 %v3928
    %v4074 = vpop.f32.mrf.mxu0
    %v4075 = vadd.f32 0.0, %v4074
    %v4076 = vpop.f32.mrf.mxu0
    %v4077 = vadd.f32 0.0, %v4076
    %v4078 = vpop.f32.mrf.mxu0
    %v4079 = vpop.f32.mrf.mxu0
    %4080 = vdwg.mxu0
    %4081 = vmatprep.subr.bf16.mxu0 %v2570
    %4082 = vmatpush1.bf16.msra.mxu0 %v2569
    %4083 = vmatprep.subr.bf16.mxu0 %v2566
    %4084 = vmatpush1.bf16.msra.mxu0 %v2565
    %4085 = vmatprep.subr.bf16.mxu0 %v2562
    %4086 = vmatpush1.bf16.msra.mxu0 %v2561
    %4087 = vmatprep.subr.bf16.mxu0 %v2558
    %4088 = vmatpush1.bf16.msra.mxu0 %v2557
    %4089 = vmatprep.subr.bf16.mxu0 %v2554
    %4090 = vmatpush1.bf16.msra.mxu0 %v2553
    %4091 = vmatprep.subr.bf16.mxu0 %v2550
    %4092 = vmatpush1.bf16.msra.mxu0 %v2549
    %4093 = vmatprep.subr.bf16.mxu0 %v2546
    %4094 = vmatpush1.bf16.msra.mxu0 %v2545
    %4095 = vmatprep.subr.bf16.mxu0 %v2542
    %4096 = vmatpush1.bf16.msra.mxu0 %v2541
    %4097 = vmatprep.subr.bf16.mxu0 %v2602
    %4098 = vmatpush2.bf16.msra.mxu0 %v2601
    %4099 = vmatprep.subr.bf16.mxu0 %v2598
    %4100 = vmatpush2.bf16.msra.mxu0 %v2597
    %4101 = vmatprep.subr.bf16.mxu0 %v2594
    %4102 = vmatpush2.bf16.msra.mxu0 %v2593
    %4103 = vmatprep.subr.bf16.mxu0 %v2590
    %4104 = vmatpush2.bf16.msra.mxu0 %v2589
    %4105 = vmatprep.subr.bf16.mxu0 %v2586
    %4106 = vmatpush2.bf16.msra.mxu0 %v2585
    %4107 = vmatprep.subr.bf16.mxu0 %v2582
    %4108 = vmatpush2.bf16.msra.mxu0 %v2581
    %4109 = vmatprep.subr.bf16.mxu0 %v2578
    %4110 = vmatpush2.bf16.msra.mxu0 %v2577
    %4111 = vmatprep.subr.bf16.mxu0 %v2574
    %4112 = vmatpush2.bf16.msra.mxu0 %v2573
    %4113 = vmatprep.mubr.bf16.mxu0 %v4039
    %4114 = vmatmul.mubr.bf16.gmra.mxu0 %v3928
    %v4115 = vpop.f32.mrf.mxu0
    %v4116 = vadd.f32 0.0, %v4115
    %v4117 = vpop.f32.mrf.mxu0
    %v4118 = vadd.f32 0.0, %v4117
    %v4119 = vpop.f32.mrf.mxu0
    %v4120 = vpop.f32.mrf.mxu0
    %4121 = vdwg.mxu0
    %v4122 = vadd.f32 %v2753, %v4075
    %v4123 = vadd.f32 %v2757, %v4077
    %v4124 = vadd.f32 %v2761, %v4116
    %v4125 = vadd.f32 %v2765, %v4118
    %v4126 = vxor.u32 %v4122, 2147483648
    %v4127 = vmul.f32 %v4126, 1.442695
    %v4128 = vpow.pop %v4127
    %v4129 = vadd.f32 %v4128, 1.0
    %v4130 = vrcp.pop %v4129
    %v4131 = vmul.f32 1.0, %v4130
    %v4132 = vxor.u32 %v4123, 2147483648
    %v4133 = vmul.f32 %v4132, 1.442695
    %v4134 = vpow.pop %v4133
    %v4135 = vadd.f32 %v4134, 1.0
    %v4136 = vrcp.pop %v4135
    %v4137 = vmul.f32 1.0, %v4136
    %v4138 = vtanh.pop %v4124
    %v4139 = vxor.u32 %v4125, 2147483648
    %v4140 = vmul.f32 %v4139, 1.442695
    %v4141 = vpow.pop %v4140
    %v4142 = vadd.f32 %v4141, 1.0
    %v4143 = vrcp.pop %v4142
    %v4144 = vmul.f32 1.0, %v4143
    %v4145 = vmul.f32 %v4137, %v3809
    %v4146 = vmul.f32 %v4131, %v4138
    %v4147 = vadd.f32 %v4145, %v4146
    %v4148 = vtanh.pop %v4147
    %v4149 = vmul.f32 %v4144, %v4148
    %s4150 = scalar_lea.vmem [#allocation2], 224
    %v4151 = vld [vmem:[%s4150] sm:$0xff]
    %v4152 = vld [vmem:[%s4150 + $0x8] sm:$0xff]
    %v4153 = vld [vmem:[%s4150 + $0x10] sm:$0xff]
    %v4154 = vld [vmem:[%s4150 + $0x18] sm:$0xff]
    %v4155 = vpack.c.bf16 %v3927, %v3927
    %4156 = vmatprep.subr.bf16.mxu0 %v1620
    %4157 = vmatpush1.bf16.msra.mxu0 %v1619
    %4158 = vmatprep.subr.bf16.mxu0 %v1616
    %4159 = vmatpush1.bf16.msra.mxu0 %v1615
    %4160 = vmatprep.subr.bf16.mxu0 %v1612
    %4161 = vmatpush1.bf16.msra.mxu0 %v1611
    %4162 = vmatprep.subr.bf16.mxu0 %v1608
    %4163 = vmatpush1.bf16.msra.mxu0 %v1607
    %4164 = vmatprep.subr.bf16.mxu0 %v1604
    %4165 = vmatpush1.bf16.msra.mxu0 %v1603
    %4166 = vmatprep.subr.bf16.mxu0 %v1600
    %4167 = vmatpush1.bf16.msra.mxu0 %v1599
    %4168 = vmatprep.subr.bf16.mxu0 %v1596
    %4169 = vmatpush1.bf16.msra.mxu0 %v1595
    %4170 = vmatprep.subr.bf16.mxu0 %v1592
    %4171 = vmatpush1.bf16.msra.mxu0 %v1591
    %4172 = vmatprep.subr.bf16.mxu0 0
    %4173 = vmatpush2.bf16.msra.mxu0 0
    %4174 = vmatprep.subr.bf16.mxu0 0
    %4175 = vmatpush2.bf16.msra.mxu0 0
    %4176 = vmatprep.subr.bf16.mxu0 0
    %4177 = vmatpush2.bf16.msra.mxu0 0
    %4178 = vmatprep.subr.bf16.mxu0 0
    %4179 = vmatpush2.bf16.msra.mxu0 0
    %4180 = vmatprep.subr.bf16.mxu0 0
    %4181 = vmatpush2.bf16.msra.mxu0 0
    %4182 = vmatprep.subr.bf16.mxu0 0
    %4183 = vmatpush2.bf16.msra.mxu0 0
    %4184 = vmatprep.subr.bf16.mxu0 0
    %4185 = vmatpush2.bf16.msra.mxu0 0
    %4186 = vmatprep.subr.bf16.mxu0 0
    %4187 = vmatpush2.bf16.msra.mxu0 0
    %4188 = vmatprep.mubr.bf16.mxu0 0
    %4189 = vmatmul.mubr.bf16.gmra.mxu0 %v4155
    %v4190 = vpop.f32.mrf.mxu0
    %v4191 = vadd.f32 0.0, %v4190
    %v4192 = vpop.f32.mrf.mxu0
    %v4193 = vadd.f32 0.0, %v4192
    %v4194 = vpop.f32.mrf.mxu0
    %v4195 = vpop.f32.mrf.mxu0
    %4196 = vdwg.mxu0
    %4197 = vmatprep.subr.bf16.mxu0 %v1622
    %4198 = vmatpush1.bf16.msra.mxu0 %v1621
    %4199 = vmatprep.subr.bf16.mxu0 %v1618
    %4200 = vmatpush1.bf16.msra.mxu0 %v1617
    %4201 = vmatprep.subr.bf16.mxu0 %v1614
    %4202 = vmatpush1.bf16.msra.mxu0 %v1613
    %4203 = vmatprep.subr.bf16.mxu0 %v1610
    %4204 = vmatpush1.bf16.msra.mxu0 %v1609
    %4205 = vmatprep.subr.bf16.mxu0 %v1606
    %4206 = vmatpush1.bf16.msra.mxu0 %v1605
    %4207 = vmatprep.subr.bf16.mxu0 %v1602
    %4208 = vmatpush1.bf16.msra.mxu0 %v1601
    %4209 = vmatprep.subr.bf16.mxu0 %v1598
    %4210 = vmatpush1.bf16.msra.mxu0 %v1597
    %4211 = vmatprep.subr.bf16.mxu0 %v1594
    %4212 = vmatpush1.bf16.msra.mxu0 %v1593
    %4213 = vmatprep.subr.bf16.mxu0 0
    %4214 = vmatpush2.bf16.msra.mxu0 0
    %4215 = vmatprep.subr.bf16.mxu0 0
    %4216 = vmatpush2.bf16.msra.mxu0 0
    %4217 = vmatprep.subr.bf16.mxu0 0
    %4218 = vmatpush2.bf16.msra.mxu0 0
    %4219 = vmatprep.subr.bf16.mxu0 0
    %4220 = vmatpush2.bf16.msra.mxu0 0
    %4221 = vmatprep.subr.bf16.mxu0 0
    %4222 = vmatpush2.bf16.msra.mxu0 0
    %4223 = vmatprep.subr.bf16.mxu0 0
    %4224 = vmatpush2.bf16.msra.mxu0 0
    %4225 = vmatprep.subr.bf16.mxu0 0
    %4226 = vmatpush2.bf16.msra.mxu0 0
    %4227 = vmatprep.subr.bf16.mxu0 0
    %4228 = vmatpush2.bf16.msra.mxu0 0
    %4229 = vmatprep.mubr.bf16.mxu0 0
    %4230 = vmatmul.mubr.bf16.gmra.mxu0 %v4155
    %v4231 = vpop.f32.mrf.mxu0
    %v4232 = vadd.f32 0.0, %v4231
    %v4233 = vpop.f32.mrf.mxu0
    %v4234 = vadd.f32 0.0, %v4233
    %v4235 = vpop.f32.mrf.mxu0
    %v4236 = vpop.f32.mrf.mxu0
    %4237 = vdwg.mxu0
    %v4238 = vadd.f32 %v4151, %v4191
    %v4239 = vadd.f32 %v4152, %v4193
    %v4240 = vadd.f32 %v4153, %v4232
    %v4241 = vadd.f32 %v4154, %v4234
    %v4242 = vxor.u32 %v4238, 2147483648
    %v4243 = vmul.f32 %v4242, 1.442695
    %v4244 = vpow.pop %v4243
    %v4245 = vadd.f32 %v4244, 1.0
    %v4246 = vrcp.pop %v4245
    %v4247 = vmul.f32 1.0, %v4246
    %v4248 = vxor.u32 %v4239, 2147483648
    %v4249 = vmul.f32 %v4248, 1.442695
    %v4250 = vpow.pop %v4249
    %v4251 = vadd.f32 %v4250, 1.0
    %v4252 = vrcp.pop %v4251
    %v4253 = vmul.f32 1.0, %v4252
    %v4254 = vtanh.pop %v4240
    %v4255 = vxor.u32 %v4241, 2147483648
    %v4256 = vmul.f32 %v4255, 1.442695
    %v4257 = vpow.pop %v4256
    %v4258 = vadd.f32 %v4257, 1.0
    %v4259 = vrcp.pop %v4258
    %v4260 = vmul.f32 1.0, %v4259
    %v4261 = vmul.f32 %v4253, %v3925
    %v4262 = vmul.f32 %v4247, %v4254
    %v4263 = vadd.f32 %v4261, %v4262
    %v4264 = vtanh.pop %v4263
    %v4265 = vmul.f32 %v4260, %v4264
    %v4266 = vpack.c.bf16 %v4038, %v4038
    %4267 = vmatprep.subr.bf16.mxu0 %v2052
    %4268 = vmatpush1.bf16.msra.mxu0 %v2051
    %4269 = vmatprep.subr.bf16.mxu0 %v2048
    %4270 = vmatpush1.bf16.msra.mxu0 %v2047
    %4271 = vmatprep.subr.bf16.mxu0 %v2044
    %4272 = vmatpush1.bf16.msra.mxu0 %v2043
    %4273 = vmatprep.subr.bf16.mxu0 %v2040
    %4274 = vmatpush1.bf16.msra.mxu0 %v2039
    %4275 = vmatprep.subr.bf16.mxu0 %v2036
    %4276 = vmatpush1.bf16.msra.mxu0 %v2035
    %4277 = vmatprep.subr.bf16.mxu0 %v2032
    %4278 = vmatpush1.bf16.msra.mxu0 %v2031
    %4279 = vmatprep.subr.bf16.mxu0 %v2028
    %4280 = vmatpush1.bf16.msra.mxu0 %v2027
    %4281 = vmatprep.subr.bf16.mxu0 %v2024
    %4282 = vmatpush1.bf16.msra.mxu0 %v2023
    %4283 = vmatprep.subr.bf16.mxu0 %v2084
    %4284 = vmatpush2.bf16.msra.mxu0 %v2083
    %4285 = vmatprep.subr.bf16.mxu0 %v2080
    %4286 = vmatpush2.bf16.msra.mxu0 %v2079
    %4287 = vmatprep.subr.bf16.mxu0 %v2076
    %4288 = vmatpush2.bf16.msra.mxu0 %v2075
    %4289 = vmatprep.subr.bf16.mxu0 %v2072
    %4290 = vmatpush2.bf16.msra.mxu0 %v2071
    %4291 = vmatprep.subr.bf16.mxu0 %v2068
    %4292 = vmatpush2.bf16.msra.mxu0 %v2067
    %4293 = vmatprep.subr.bf16.mxu0 %v2064
    %4294 = vmatpush2.bf16.msra.mxu0 %v2063
    %4295 = vmatprep.subr.bf16.mxu0 %v2060
    %4296 = vmatpush2.bf16.msra.mxu0 %v2059
    %4297 = vmatprep.subr.bf16.mxu0 %v2056
    %4298 = vmatpush2.bf16.msra.mxu0 %v2055
    %4299 = vmatprep.mubr.bf16.mxu0 %v4266
    %4300 = vmatmul.mubr.bf16.gmra.mxu0 %v4155
    %v4301 = vpop.f32.mrf.mxu0
    %v4302 = vadd.f32 0.0, %v4301
    %v4303 = vpop.f32.mrf.mxu0
    %v4304 = vadd.f32 0.0, %v4303
    %v4305 = vpop.f32.mrf.mxu0
    %v4306 = vpop.f32.mrf.mxu0
    %4307 = vdwg.mxu0
    %4308 = vmatprep.subr.bf16.mxu0 %v2054
    %4309 = vmatpush1.bf16.msra.mxu0 %v2053
    %4310 = vmatprep.subr.bf16.mxu0 %v2050
    %4311 = vmatpush1.bf16.msra.mxu0 %v2049
    %4312 = vmatprep.subr.bf16.mxu0 %v2046
    %4313 = vmatpush1.bf16.msra.mxu0 %v2045
    %4314 = vmatprep.subr.bf16.mxu0 %v2042
    %4315 = vmatpush1.bf16.msra.mxu0 %v2041
    %4316 = vmatprep.subr.bf16.mxu0 %v2038
    %4317 = vmatpush1.bf16.msra.mxu0 %v2037
    %4318 = vmatprep.subr.bf16.mxu0 %v2034
    %4319 = vmatpush1.bf16.msra.mxu0 %v2033
    %4320 = vmatprep.subr.bf16.mxu0 %v2030
    %4321 = vmatpush1.bf16.msra.mxu0 %v2029
    %4322 = vmatprep.subr.bf16.mxu0 %v2026
    %4323 = vmatpush1.bf16.msra.mxu0 %v2025
    %4324 = vmatprep.subr.bf16.mxu0 %v2086
    %4325 = vmatpush2.bf16.msra.mxu0 %v2085
    %4326 = vmatprep.subr.bf16.mxu0 %v2082
    %4327 = vmatpush2.bf16.msra.mxu0 %v2081
    %4328 = vmatprep.subr.bf16.mxu0 %v2078
    %4329 = vmatpush2.bf16.msra.mxu0 %v2077
    %4330 = vmatprep.subr.bf16.mxu0 %v2074
    %4331 = vmatpush2.bf16.msra.mxu0 %v2073
    %4332 = vmatprep.subr.bf16.mxu0 %v2070
    %4333 = vmatpush2.bf16.msra.mxu0 %v2069
    %4334 = vmatprep.subr.bf16.mxu0 %v2066
    %4335 = vmatpush2.bf16.msra.mxu0 %v2065
    %4336 = vmatprep.subr.bf16.mxu0 %v2062
    %4337 = vmatpush2.bf16.msra.mxu0 %v2061
    %4338 = vmatprep.subr.bf16.mxu0 %v2058
    %4339 = vmatpush2.bf16.msra.mxu0 %v2057
    %4340 = vmatprep.mubr.bf16.mxu0 %v4266
    %4341 = vmatmul.mubr.bf16.gmra.mxu0 %v4155
    %v4342 = vpop.f32.mrf.mxu0
    %v4343 = vadd.f32 0.0, %v4342
    %v4344 = vpop.f32.mrf.mxu0
    %v4345 = vadd.f32 0.0, %v4344
    %v4346 = vpop.f32.mrf.mxu0
    %v4347 = vpop.f32.mrf.mxu0
    %4348 = vdwg.mxu0
    %v4349 = vadd.f32 %v2237, %v4302
    %v4350 = vadd.f32 %v2241, %v4304
    %v4351 = vadd.f32 %v2245, %v4343
    %v4352 = vadd.f32 %v2249, %v4345
    %v4353 = vxor.u32 %v4349, 2147483648
    %v4354 = vmul.f32 %v4353, 1.442695
    %v4355 = vpow.pop %v4354
    %v4356 = vadd.f32 %v4355, 1.0
    %v4357 = vrcp.pop %v4356
    %v4358 = vmul.f32 1.0, %v4357
    %v4359 = vxor.u32 %v4350, 2147483648
    %v4360 = vmul.f32 %v4359, 1.442695
    %v4361 = vpow.pop %v4360
    %v4362 = vadd.f32 %v4361, 1.0
    %v4363 = vrcp.pop %v4362
    %v4364 = vmul.f32 1.0, %v4363
    %v4365 = vtanh.pop %v4351
    %v4366 = vxor.u32 %v4352, 2147483648
    %v4367 = vmul.f32 %v4366, 1.442695
    %v4368 = vpow.pop %v4367
    %v4369 = vadd.f32 %v4368, 1.0
    %v4370 = vrcp.pop %v4369
    %v4371 = vmul.f32 1.0, %v4370
    %v4372 = vmul.f32 %v4364, %v4036
    %v4373 = vmul.f32 %v4358, %v4365
    %v4374 = vadd.f32 %v4372, %v4373
    %v4375 = vtanh.pop %v4374
    %v4376 = vmul.f32 %v4371, %v4375
    %v4377 = vpack.c.bf16 %v4149, %v4149
    %4378 = vmatprep.subr.bf16.mxu0 %v2568
    %4379 = vmatpush1.bf16.msra.mxu0 %v2567
    %4380 = vmatprep.subr.bf16.mxu0 %v2564
    %4381 = vmatpush1.bf16.msra.mxu0 %v2563
    %4382 = vmatprep.subr.bf16.mxu0 %v2560
    %4383 = vmatpush1.bf16.msra.mxu0 %v2559
    %4384 = vmatprep.subr.bf16.mxu0 %v2556
    %4385 = vmatpush1.bf16.msra.mxu0 %v2555
    %4386 = vmatprep.subr.bf16.mxu0 %v2552
    %4387 = vmatpush1.bf16.msra.mxu0 %v2551
    %4388 = vmatprep.subr.bf16.mxu0 %v2548
    %4389 = vmatpush1.bf16.msra.mxu0 %v2547
    %4390 = vmatprep.subr.bf16.mxu0 %v2544
    %4391 = vmatpush1.bf16.msra.mxu0 %v2543
    %4392 = vmatprep.subr.bf16.mxu0 %v2540
    %4393 = vmatpush1.bf16.msra.mxu0 %v2539
    %4394 = vmatprep.subr.bf16.mxu0 %v2600
    %4395 = vmatpush2.bf16.msra.mxu0 %v2599
    %4396 = vmatprep.subr.bf16.mxu0 %v2596
    %4397 = vmatpush2.bf16.msra.mxu0 %v2595
    %4398 = vmatprep.subr.bf16.mxu0 %v2592
    %4399 = vmatpush2.bf16.msra.mxu0 %v2591
    %4400 = vmatprep.subr.bf16.mxu0 %v2588
    %4401 = vmatpush2.bf16.msra.mxu0 %v2587
    %4402 = vmatprep.subr.bf16.mxu0 %v2584
    %4403 = vmatpush2.bf16.msra.mxu0 %v2583
    %4404 = vmatprep.subr.bf16.mxu0 %v2580
    %4405 = vmatpush2.bf16.msra.mxu0 %v2579
    %4406 = vmatprep.subr.bf16.mxu0 %v2576
    %4407 = vmatpush2.bf16.msra.mxu0 %v2575
    %4408 = vmatprep.subr.bf16.mxu0 %v2572
    %4409 = vmatpush2.bf16.msra.mxu0 %v2571
    %4410 = vmatprep.mubr.bf16.mxu0 %v4377
    %4411 = vmatmul.mubr.bf16.gmra.mxu0 %v4266
    %v4412 = vpop.f32.mrf.mxu0
    %v4413 = vadd.f32 0.0, %v4412
    %v4414 = vpop.f32.mrf.mxu0
    %v4415 = vadd.f32 0.0, %v4414
    %v4416 = vpop.f32.mrf.mxu0
    %v4417 = vpop.f32.mrf.mxu0
    %4418 = vdwg.mxu0
    %4419 = vmatprep.subr.bf16.mxu0 %v2570
    %4420 = vmatpush1.bf16.msra.mxu0 %v2569
    %4421 = vmatprep.subr.bf16.mxu0 %v2566
    %4422 = vmatpush1.bf16.msra.mxu0 %v2565
    %4423 = vmatprep.subr.bf16.mxu0 %v2562
    %4424 = vmatpush1.bf16.msra.mxu0 %v2561
    %4425 = vmatprep.subr.bf16.mxu0 %v2558
    %4426 = vmatpush1.bf16.msra.mxu0 %v2557
    %4427 = vmatprep.subr.bf16.mxu0 %v2554
    %4428 = vmatpush1.bf16.msra.mxu0 %v2553
    %4429 = vmatprep.subr.bf16.mxu0 %v2550
    %4430 = vmatpush1.bf16.msra.mxu0 %v2549
    %4431 = vmatprep.subr.bf16.mxu0 %v2546
    %4432 = vmatpush1.bf16.msra.mxu0 %v2545
    %4433 = vmatprep.subr.bf16.mxu0 %v2542
    %4434 = vmatpush1.bf16.msra.mxu0 %v2541
    %4435 = vmatprep.subr.bf16.mxu0 %v2602
    %4436 = vmatpush2.bf16.msra.mxu0 %v2601
    %4437 = vmatprep.subr.bf16.mxu0 %v2598
    %4438 = vmatpush2.bf16.msra.mxu0 %v2597
    %4439 = vmatprep.subr.bf16.mxu0 %v2594
    %4440 = vmatpush2.bf16.msra.mxu0 %v2593
    %4441 = vmatprep.subr.bf16.mxu0 %v2590
    %4442 = vmatpush2.bf16.msra.mxu0 %v2589
    %4443 = vmatprep.subr.bf16.mxu0 %v2586
    %4444 = vmatpush2.bf16.msra.mxu0 %v2585
    %4445 = vmatprep.subr.bf16.mxu0 %v2582
    %4446 = vmatpush2.bf16.msra.mxu0 %v2581
    %4447 = vmatprep.subr.bf16.mxu0 %v2578
    %4448 = vmatpush2.bf16.msra.mxu0 %v2577
    %4449 = vmatprep.subr.bf16.mxu0 %v2574
    %4450 = vmatpush2.bf16.msra.mxu0 %v2573
    %4451 = vmatprep.mubr.bf16.mxu0 %v4377
    %4452 = vmatmul.mubr.bf16.gmra.mxu0 %v4266
    %v4453 = vpop.f32.mrf.mxu0
    %v4454 = vadd.f32 0.0, %v4453
    %v4455 = vpop.f32.mrf.mxu0
    %v4456 = vadd.f32 0.0, %v4455
    %v4457 = vpop.f32.mrf.mxu0
    %v4458 = vpop.f32.mrf.mxu0
    %4459 = vdwg.mxu0
    %v4460 = vadd.f32 %v2753, %v4413
    %v4461 = vadd.f32 %v2757, %v4415
    %v4462 = vadd.f32 %v2761, %v4454
    %v4463 = vadd.f32 %v2765, %v4456
    %v4464 = vxor.u32 %v4460, 2147483648
    %v4465 = vmul.f32 %v4464, 1.442695
    %v4466 = vpow.pop %v4465
    %v4467 = vadd.f32 %v4466, 1.0
    %v4468 = vrcp.pop %v4467
    %v4469 = vmul.f32 1.0, %v4468
    %v4470 = vxor.u32 %v4461, 2147483648
    %v4471 = vmul.f32 %v4470, 1.442695
    %v4472 = vpow.pop %v4471
    %v4473 = vadd.f32 %v4472, 1.0
    %v4474 = vrcp.pop %v4473
    %v4475 = vmul.f32 1.0, %v4474
    %v4476 = vtanh.pop %v4462
    %v4477 = vxor.u32 %v4463, 2147483648
    %v4478 = vmul.f32 %v4477, 1.442695
    %v4479 = vpow.pop %v4478
    %v4480 = vadd.f32 %v4479, 1.0
    %v4481 = vrcp.pop %v4480
    %v4482 = vmul.f32 1.0, %v4481
    %v4483 = vmul.f32 %v4475, %v4147
    %v4484 = vmul.f32 %v4469, %v4476
    %v4485 = vadd.f32 %v4483, %v4484
    %v4486 = vtanh.pop %v4485
    %v4487 = vmul.f32 %v4482, %v4486
    %v4488 = vpack.c.bf16 %v4265, %v4265
    %v4489 = vpack.c.bf16 %v4376, %v4376
    %4490 = vmatprep.subr.bf16.mxu0 %v2052
    %4491 = vmatpush1.bf16.msra.mxu0 %v2051
    %4492 = vmatprep.subr.bf16.mxu0 %v2048
    %4493 = vmatpush1.bf16.msra.mxu0 %v2047
    %4494 = vmatprep.subr.bf16.mxu0 %v2044
    %4495 = vmatpush1.bf16.msra.mxu0 %v2043
    %4496 = vmatprep.subr.bf16.mxu0 %v2040
    %4497 = vmatpush1.bf16.msra.mxu0 %v2039
    %4498 = vmatprep.subr.bf16.mxu0 %v2036
    %4499 = vmatpush1.bf16.msra.mxu0 %v2035
    %4500 = vmatprep.subr.bf16.mxu0 %v2032
    %4501 = vmatpush1.bf16.msra.mxu0 %v2031
    %4502 = vmatprep.subr.bf16.mxu0 %v2028
    %4503 = vmatpush1.bf16.msra.mxu0 %v2027
    %4504 = vmatprep.subr.bf16.mxu0 %v2024
    %4505 = vmatpush1.bf16.msra.mxu0 %v2023
    %4506 = vmatprep.subr.bf16.mxu0 %v2084
    %4507 = vmatpush2.bf16.msra.mxu0 %v2083
    %4508 = vmatprep.subr.bf16.mxu0 %v2080
    %4509 = vmatpush2.bf16.msra.mxu0 %v2079
    %4510 = vmatprep.subr.bf16.mxu0 %v2076
    %4511 = vmatpush2.bf16.msra.mxu0 %v2075
    %4512 = vmatprep.subr.bf16.mxu0 %v2072
    %4513 = vmatpush2.bf16.msra.mxu0 %v2071
    %4514 = vmatprep.subr.bf16.mxu0 %v2068
    %4515 = vmatpush2.bf16.msra.mxu0 %v2067
    %4516 = vmatprep.subr.bf16.mxu0 %v2064
    %4517 = vmatpush2.bf16.msra.mxu0 %v2063
    %4518 = vmatprep.subr.bf16.mxu0 %v2060
    %4519 = vmatpush2.bf16.msra.mxu0 %v2059
    %4520 = vmatprep.subr.bf16.mxu0 %v2056
    %4521 = vmatpush2.bf16.msra.mxu0 %v2055
    %4522 = vmatprep.mubr.bf16.mxu0 %v4489
    %4523 = vmatmul.mubr.bf16.gmra.mxu0 %v4488
    %v4524 = vpop.f32.mrf.mxu0
    %v4525 = vadd.f32 0.0, %v4524
    %v4526 = vpop.f32.mrf.mxu0
    %v4527 = vadd.f32 0.0, %v4526
    %v4528 = vpop.f32.mrf.mxu0
    %v4529 = vpop.f32.mrf.mxu0
    %4530 = vdwg.mxu0
    %4531 = vmatprep.subr.bf16.mxu0 %v2054
    %4532 = vmatpush1.bf16.msra.mxu0 %v2053
    %4533 = vmatprep.subr.bf16.mxu0 %v2050
    %4534 = vmatpush1.bf16.msra.mxu0 %v2049
    %4535 = vmatprep.subr.bf16.mxu0 %v2046
    %4536 = vmatpush1.bf16.msra.mxu0 %v2045
    %4537 = vmatprep.subr.bf16.mxu0 %v2042
    %4538 = vmatpush1.bf16.msra.mxu0 %v2041
    %4539 = vmatprep.subr.bf16.mxu0 %v2038
    %4540 = vmatpush1.bf16.msra.mxu0 %v2037
    %4541 = vmatprep.subr.bf16.mxu0 %v2034
    %4542 = vmatpush1.bf16.msra.mxu0 %v2033
    %4543 = vmatprep.subr.bf16.mxu0 %v2030
    %4544 = vmatpush1.bf16.msra.mxu0 %v2029
    %4545 = vmatprep.subr.bf16.mxu0 %v2026
    %4546 = vmatpush1.bf16.msra.mxu0 %v2025
    %4547 = vmatprep.subr.bf16.mxu0 %v2086
    %4548 = vmatpush2.bf16.msra.mxu0 %v2085
    %4549 = vmatprep.subr.bf16.mxu0 %v2082
    %4550 = vmatpush2.bf16.msra.mxu0 %v2081
    %4551 = vmatprep.subr.bf16.mxu0 %v2078
    %4552 = vmatpush2.bf16.msra.mxu0 %v2077
    %4553 = vmatprep.subr.bf16.mxu0 %v2074
    %4554 = vmatpush2.bf16.msra.mxu0 %v2073
    %4555 = vmatprep.subr.bf16.mxu0 %v2070
    %4556 = vmatpush2.bf16.msra.mxu0 %v2069
    %4557 = vmatprep.subr.bf16.mxu0 %v2066
    %4558 = vmatpush2.bf16.msra.mxu0 %v2065
    %4559 = vmatprep.subr.bf16.mxu0 %v2062
    %4560 = vmatpush2.bf16.msra.mxu0 %v2061
    %4561 = vmatprep.subr.bf16.mxu0 %v2058
    %4562 = vmatpush2.bf16.msra.mxu0 %v2057
    %4563 = vmatprep.mubr.bf16.mxu0 %v4489
    %4564 = vmatmul.mubr.bf16.gmra.mxu0 %v4488
    %v4565 = vpop.f32.mrf.mxu0
    %v4566 = vadd.f32 0.0, %v4565
    %v4567 = vpop.f32.mrf.mxu0
    %v4568 = vadd.f32 0.0, %v4567
    %v4569 = vpop.f32.mrf.mxu0
    %v4570 = vpop.f32.mrf.mxu0
    %4571 = vdwg.mxu0
    %v4572 = vadd.f32 %v2237, %v4525
    %v4573 = vadd.f32 %v2241, %v4527
    %v4574 = vadd.f32 %v2245, %v4566
    %v4575 = vadd.f32 %v2249, %v4568
    %v4576 = vxor.u32 %v4572, 2147483648
    %v4577 = vmul.f32 %v4576, 1.442695
    %v4578 = vpow.pop %v4577
    %v4579 = vadd.f32 %v4578, 1.0
    %v4580 = vrcp.pop %v4579
    %v4581 = vmul.f32 1.0, %v4580
    %v4582 = vxor.u32 %v4573, 2147483648
    %v4583 = vmul.f32 %v4582, 1.442695
    %v4584 = vpow.pop %v4583
    %v4585 = vadd.f32 %v4584, 1.0
    %v4586 = vrcp.pop %v4585
    %v4587 = vmul.f32 1.0, %v4586
    %v4588 = vtanh.pop %v4574
    %v4589 = vxor.u32 %v4575, 2147483648
    %v4590 = vmul.f32 %v4589, 1.442695
    %v4591 = vpow.pop %v4590
    %v4592 = vadd.f32 %v4591, 1.0
    %v4593 = vrcp.pop %v4592
    %v4594 = vmul.f32 1.0, %v4593
    %v4595 = vmul.f32 %v4587, %v4374
    %v4596 = vmul.f32 %v4581, %v4588
    %v4597 = vadd.f32 %v4595, %v4596
    %v4598 = vtanh.pop %v4597
    %v4599 = vmul.f32 %v4594, %v4598
    %v4600 = vpack.c.bf16 %v4487, %v4487
    %4601 = vmatprep.subr.bf16.mxu0 %v2568
    %4602 = vmatpush1.bf16.msra.mxu0 %v2567
    %4603 = vmatprep.subr.bf16.mxu0 %v2564
    %4604 = vmatpush1.bf16.msra.mxu0 %v2563
    %4605 = vmatprep.subr.bf16.mxu0 %v2560
    %4606 = vmatpush1.bf16.msra.mxu0 %v2559
    %4607 = vmatprep.subr.bf16.mxu0 %v2556
    %4608 = vmatpush1.bf16.msra.mxu0 %v2555
    %4609 = vmatprep.subr.bf16.mxu0 %v2552
    %4610 = vmatpush1.bf16.msra.mxu0 %v2551
    %4611 = vmatprep.subr.bf16.mxu0 %v2548
    %4612 = vmatpush1.bf16.msra.mxu0 %v2547
    %4613 = vmatprep.subr.bf16.mxu0 %v2544
    %4614 = vmatpush1.bf16.msra.mxu0 %v2543
    %4615 = vmatprep.subr.bf16.mxu0 %v2540
    %4616 = vmatpush1.bf16.msra.mxu0 %v2539
    %4617 = vmatprep.subr.bf16.mxu0 %v2600
    %4618 = vmatpush2.bf16.msra.mxu0 %v2599
    %4619 = vmatprep.subr.bf16.mxu0 %v2596
    %4620 = vmatpush2.bf16.msra.mxu0 %v2595
    %4621 = vmatprep.subr.bf16.mxu0 %v2592
    %4622 = vmatpush2.bf16.msra.mxu0 %v2591
    %4623 = vmatprep.subr.bf16.mxu0 %v2588
    %4624 = vmatpush2.bf16.msra.mxu0 %v2587
    %4625 = vmatprep.subr.bf16.mxu0 %v2584
    %4626 = vmatpush2.bf16.msra.mxu0 %v2583
    %4627 = vmatprep.subr.bf16.mxu0 %v2580
    %4628 = vmatpush2.bf16.msra.mxu0 %v2579
    %4629 = vmatprep.subr.bf16.mxu0 %v2576
    %4630 = vmatpush2.bf16.msra.mxu0 %v2575
    %4631 = vmatprep.subr.bf16.mxu0 %v2572
    %4632 = vmatpush2.bf16.msra.mxu0 %v2571
    %4633 = vmatprep.mubr.bf16.mxu0 %v4600
    %4634 = vmatmul.mubr.bf16.gmra.mxu0 %v4489
    %v4635 = vpop.f32.mrf.mxu0
    %v4636 = vadd.f32 0.0, %v4635
    %v4637 = vpop.f32.mrf.mxu0
    %v4638 = vadd.f32 0.0, %v4637
    %v4639 = vpop.f32.mrf.mxu0
    %v4640 = vpop.f32.mrf.mxu0
    %4641 = vdwg.mxu0
    %4642 = vmatprep.subr.bf16.mxu0 %v2570
    %4643 = vmatpush1.bf16.msra.mxu0 %v2569
    %4644 = vmatprep.subr.bf16.mxu0 %v2566
    %4645 = vmatpush1.bf16.msra.mxu0 %v2565
    %4646 = vmatprep.subr.bf16.mxu0 %v2562
    %4647 = vmatpush1.bf16.msra.mxu0 %v2561
    %4648 = vmatprep.subr.bf16.mxu0 %v2558
    %4649 = vmatpush1.bf16.msra.mxu0 %v2557
    %4650 = vmatprep.subr.bf16.mxu0 %v2554
    %4651 = vmatpush1.bf16.msra.mxu0 %v2553
    %4652 = vmatprep.subr.bf16.mxu0 %v2550
    %4653 = vmatpush1.bf16.msra.mxu0 %v2549
    %4654 = vmatprep.subr.bf16.mxu0 %v2546
    %4655 = vmatpush1.bf16.msra.mxu0 %v2545
    %4656 = vmatprep.subr.bf16.mxu0 %v2542
    %4657 = vmatpush1.bf16.msra.mxu0 %v2541
    %4658 = vmatprep.subr.bf16.mxu0 %v2602
    %4659 = vmatpush2.bf16.msra.mxu0 %v2601
    %4660 = vmatprep.subr.bf16.mxu0 %v2598
    %4661 = vmatpush2.bf16.msra.mxu0 %v2597
    %4662 = vmatprep.subr.bf16.mxu0 %v2594
    %4663 = vmatpush2.bf16.msra.mxu0 %v2593
    %4664 = vmatprep.subr.bf16.mxu0 %v2590
    %4665 = vmatpush2.bf16.msra.mxu0 %v2589
    %4666 = vmatprep.subr.bf16.mxu0 %v2586
    %4667 = vmatpush2.bf16.msra.mxu0 %v2585
    %4668 = vmatprep.subr.bf16.mxu0 %v2582
    %4669 = vmatpush2.bf16.msra.mxu0 %v2581
    %4670 = vmatprep.subr.bf16.mxu0 %v2578
    %4671 = vmatpush2.bf16.msra.mxu0 %v2577
    %4672 = vmatprep.subr.bf16.mxu0 %v2574
    %4673 = vmatpush2.bf16.msra.mxu0 %v2573
    %4674 = vmatprep.mubr.bf16.mxu0 %v4600
    %4675 = vmatmul.mubr.bf16.gmra.mxu0 %v4489
    %v4676 = vpop.f32.mrf.mxu0
    %v4677 = vadd.f32 0.0, %v4676
    %v4678 = vpop.f32.mrf.mxu0
    %v4679 = vadd.f32 0.0, %v4678
    %v4680 = vpop.f32.mrf.mxu0
    %v4681 = vpop.f32.mrf.mxu0
    %4682 = vdwg.mxu0
    %v4683 = vadd.f32 %v2753, %v4636
    %v4684 = vadd.f32 %v2757, %v4638
    %v4685 = vadd.f32 %v2761, %v4677
    %v4686 = vadd.f32 %v2765, %v4679
    %v4687 = vxor.u32 %v4683, 2147483648
    %v4688 = vmul.f32 %v4687, 1.442695
    %v4689 = vpow.pop %v4688
    %v4690 = vadd.f32 %v4689, 1.0
    %v4691 = vrcp.pop %v4690
    %v4692 = vmul.f32 1.0, %v4691
    %v4693 = vxor.u32 %v4684, 2147483648
    %v4694 = vmul.f32 %v4693, 1.442695
    %v4695 = vpow.pop %v4694
    %v4696 = vadd.f32 %v4695, 1.0
    %v4697 = vrcp.pop %v4696
    %v4698 = vmul.f32 1.0, %v4697
    %v4699 = vtanh.pop %v4685
    %v4700 = vxor.u32 %v4686, 2147483648
    %v4701 = vmul.f32 %v4700, 1.442695
    %v4702 = vpow.pop %v4701
    %v4703 = vadd.f32 %v4702, 1.0
    %v4704 = vrcp.pop %v4703
    %v4705 = vmul.f32 1.0, %v4704
    %v4706 = vmul.f32 %v4698, %v4485
    %v4707 = vmul.f32 %v4692, %v4699
    %v4708 = vadd.f32 %v4706, %v4707
    %v4709 = vtanh.pop %v4708
    %v4710 = vmul.f32 %v4705, %v4709
    %v4711 = vpack.c.bf16 %v4599, %v4599
    %v4712 = vpack.c.bf16 %v4710, %v4710
    %4713 = vmatprep.subr.bf16.mxu0 %v2568
    %4714 = vmatpush1.bf16.msra.mxu0 %v2567
    %4715 = vmatprep.subr.bf16.mxu0 %v2564
    %4716 = vmatpush1.bf16.msra.mxu0 %v2563
    %4717 = vmatprep.subr.bf16.mxu0 %v2560
    %4718 = vmatpush1.bf16.msra.mxu0 %v2559
    %4719 = vmatprep.subr.bf16.mxu0 %v2556
    %4720 = vmatpush1.bf16.msra.mxu0 %v2555
    %4721 = vmatprep.subr.bf16.mxu0 %v2552
    %4722 = vmatpush1.bf16.msra.mxu0 %v2551
    %4723 = vmatprep.subr.bf16.mxu0 %v2548
    %4724 = vmatpush1.bf16.msra.mxu0 %v2547
    %4725 = vmatprep.subr.bf16.mxu0 %v2544
    %4726 = vmatpush1.bf16.msra.mxu0 %v2543
    %4727 = vmatprep.subr.bf16.mxu0 %v2540
    %4728 = vmatpush1.bf16.msra.mxu0 %v2539
    %4729 = vmatprep.subr.bf16.mxu0 %v2600
    %4730 = vmatpush2.bf16.msra.mxu0 %v2599
    %4731 = vmatprep.subr.bf16.mxu0 %v2596
    %4732 = vmatpush2.bf16.msra.mxu0 %v2595
    %4733 = vmatprep.subr.bf16.mxu0 %v2592
    %4734 = vmatpush2.bf16.msra.mxu0 %v2591
    %4735 = vmatprep.subr.bf16.mxu0 %v2588
    %4736 = vmatpush2.bf16.msra.mxu0 %v2587
    %4737 = vmatprep.subr.bf16.mxu0 %v2584
    %4738 = vmatpush2.bf16.msra.mxu0 %v2583
    %4739 = vmatprep.subr.bf16.mxu0 %v2580
    %4740 = vmatpush2.bf16.msra.mxu0 %v2579
    %4741 = vmatprep.subr.bf16.mxu0 %v2576
    %4742 = vmatpush2.bf16.msra.mxu0 %v2575
    %4743 = vmatprep.subr.bf16.mxu0 %v2572
    %4744 = vmatpush2.bf16.msra.mxu0 %v2571
    %4745 = vmatprep.mubr.bf16.mxu0 %v4712
    %4746 = vmatmul.mubr.bf16.gmra.mxu0 %v4711
    %v4747 = vpop.f32.mrf.mxu0
    %v4748 = vadd.f32 0.0, %v4747
    %v4749 = vpop.f32.mrf.mxu0
    %v4750 = vadd.f32 0.0, %v4749
    %v4751 = vpop.f32.mrf.mxu0
    %v4752 = vpop.f32.mrf.mxu0
    %4753 = vdwg.mxu0
    %4754 = vmatprep.subr.bf16.mxu0 %v2570
    %4755 = vmatpush1.bf16.msra.mxu0 %v2569
    %4756 = vmatprep.subr.bf16.mxu0 %v2566
    %4757 = vmatpush1.bf16.msra.mxu0 %v2565
    %4758 = vmatprep.subr.bf16.mxu0 %v2562
    %4759 = vmatpush1.bf16.msra.mxu0 %v2561
    %4760 = vmatprep.subr.bf16.mxu0 %v2558
    %4761 = vmatpush1.bf16.msra.mxu0 %v2557
    %4762 = vmatprep.subr.bf16.mxu0 %v2554
    %4763 = vmatpush1.bf16.msra.mxu0 %v2553
    %4764 = vmatprep.subr.bf16.mxu0 %v2550
    %4765 = vmatpush1.bf16.msra.mxu0 %v2549
    %4766 = vmatprep.subr.bf16.mxu0 %v2546
    %4767 = vmatpush1.bf16.msra.mxu0 %v2545
    %4768 = vmatprep.subr.bf16.mxu0 %v2542
    %4769 = vmatpush1.bf16.msra.mxu0 %v2541
    %4770 = vmatprep.subr.bf16.mxu0 %v2602
    %4771 = vmatpush2.bf16.msra.mxu0 %v2601
    %4772 = vmatprep.subr.bf16.mxu0 %v2598
    %4773 = vmatpush2.bf16.msra.mxu0 %v2597
    %4774 = vmatprep.subr.bf16.mxu0 %v2594
    %4775 = vmatpush2.bf16.msra.mxu0 %v2593
    %4776 = vmatprep.subr.bf16.mxu0 %v2590
    %4777 = vmatpush2.bf16.msra.mxu0 %v2589
    %4778 = vmatprep.subr.bf16.mxu0 %v2586
    %4779 = vmatpush2.bf16.msra.mxu0 %v2585
    %4780 = vmatprep.subr.bf16.mxu0 %v2582
    %4781 = vmatpush2.bf16.msra.mxu0 %v2581
    %4782 = vmatprep.subr.bf16.mxu0 %v2578
    %4783 = vmatpush2.bf16.msra.mxu0 %v2577
    %4784 = vmatprep.subr.bf16.mxu0 %v2574
    %4785 = vmatpush2.bf16.msra.mxu0 %v2573
    %4786 = vmatprep.mubr.bf16.mxu0 %v4712
    %4787 = vmatmul.mubr.bf16.gmra.mxu0 %v4711
    %v4788 = vpop.f32.mrf.mxu0
    %v4789 = vadd.f32 0.0, %v4788
    %v4790 = vpop.f32.mrf.mxu0
    %v4791 = vadd.f32 0.0, %v4790
    %v4792 = vpop.f32.mrf.mxu0
    %v4793 = vpop.f32.mrf.mxu0
    %4794 = vdwg.mxu0
    %v4795 = vadd.f32 %v2753, %v4748
    %v4796 = vadd.f32 %v2757, %v4750
    %v4797 = vadd.f32 %v2761, %v4789
    %v4798 = vadd.f32 %v2765, %v4791
    %v4799 = vxor.u32 %v4795, 2147483648
    %v4800 = vmul.f32 %v4799, 1.442695
    %v4801 = vpow.pop %v4800
    %v4802 = vadd.f32 %v4801, 1.0
    %v4803 = vrcp.pop %v4802
    %v4804 = vmul.f32 1.0, %v4803
    %v4805 = vxor.u32 %v4796, 2147483648
    %v4806 = vmul.f32 %v4805, 1.442695
    %v4807 = vpow.pop %v4806
    %v4808 = vadd.f32 %v4807, 1.0
    %v4809 = vrcp.pop %v4808
    %v4810 = vmul.f32 1.0, %v4809
    %v4811 = vtanh.pop %v4797
    %v4812 = vxor.u32 %v4798, 2147483648
    %v4813 = vmul.f32 %v4812, 1.442695
    %v4814 = vpow.pop %v4813
    %v4815 = vadd.f32 %v4814, 1.0
    %v4816 = vrcp.pop %v4815
    %v4817 = vmul.f32 1.0, %v4816
    %v4818 = vmul.f32 %v4810, %v4708
    %v4819 = vmul.f32 %v4804, %v4811
    %v4820 = vadd.f32 %v4818, %v4819
    %v4821 = vtanh.pop %v4820
    %v4822 = vmul.f32 %v4817, %v4821
    %v4823 = vld [vmem:[%s8] sm:$0xff]
    %v4824 = vld [vmem:[%s8 + $0x8] sm:$0xff]
    %v4825 = vld [vmem:[%s8 + $0x10] sm:$0xff]
    %v4826 = vld [vmem:[%s8 + $0x18] sm:$0xff]
    %v4827 = vld [vmem:[%s8 + $0x20] sm:$0xff]
    %v4828 = vld [vmem:[%s8 + $0x28] sm:$0xff]
    %v4829 = vld [vmem:[%s8 + $0x30] sm:$0xff]
    %v4830 = vld [vmem:[%s8 + $0x38] sm:$0xff]
    %v4831 = vld [vmem:[%s8 + $0x40] sm:$0xff]
    %v4832 = vld [vmem:[%s8 + $0x48] sm:$0xff]
    %v4833 = vld [vmem:[%s8 + $0x50] sm:$0xff]
    %v4834 = vld [vmem:[%s8 + $0x58] sm:$0xff]
    %v4835 = vld [vmem:[%s8 + $0x60] sm:$0xff]
    %v4836 = vld [vmem:[%s8 + $0x68] sm:$0xff]
    %v4837 = vld [vmem:[%s8 + $0x70] sm:$0xff]
    %v4838 = vld [vmem:[%s8 + $0x78] sm:$0xff]
    %v4839 = vld [vmem:[#allocation6] sm:$0x1]
    %v4841 = vlaneseq
    %v4842 = vshrl.u32 %v4841, 7
    %v4843 = vsub.s32 0, %v4842
    %v4844 = vrot.slane %v4839, %v4843
    %4846 = vmatprep.subr.mxu0 0.0
    %4847 = vmatpush1.msra.mxu0 %v4838
    %4848 = vmatprep.subr.mxu0 0.0
    %4849 = vmatpush1.msra.mxu0 %v4837
    %4850 = vmatprep.subr.mxu0 0.0
    %4851 = vmatpush1.msra.mxu0 %v4836
    %4852 = vmatprep.subr.mxu0 0.0
    %4853 = vmatpush1.msra.mxu0 %v4835
    %4854 = vmatprep.subr.mxu0 0.0
    %4855 = vmatpush1.msra.mxu0 %v4834
    %4856 = vmatprep.subr.mxu0 0.0
    %4857 = vmatpush1.msra.mxu0 %v4833
    %4858 = vmatprep.subr.mxu0 0.0
    %4859 = vmatpush1.msra.mxu0 %v4832
    %4860 = vmatprep.subr.mxu0 0.0
    %4861 = vmatpush1.msra.mxu0 %v4831
    %4862 = vmatprep.subr.mxu0 0.0
    %4863 = vmatpush1.msra.mxu0 %v4830
    %4864 = vmatprep.subr.mxu0 0.0
    %4865 = vmatpush1.msra.mxu0 %v4829
    %4866 = vmatprep.subr.mxu0 0.0
    %4867 = vmatpush1.msra.mxu0 %v4828
    %4868 = vmatprep.subr.mxu0 0.0
    %4869 = vmatpush1.msra.mxu0 %v4827
    %4870 = vmatprep.subr.mxu0 0.0
    %4871 = vmatpush1.msra.mxu0 %v4826
    %4872 = vmatprep.subr.mxu0 0.0
    %4873 = vmatpush1.msra.mxu0 %v4825
    %4874 = vmatprep.subr.mxu0 0.0
    %4875 = vmatpush1.msra.mxu0 %v4824
    %4876 = vmatprep.subr.mxu0 0.0
    %4877 = vmatpush1.msra.mxu0 %v4823
    %4878 = vmatprep.subr.mxu0 0.0
    %4879 = vmatpush2.msra.mxu0 0.0
    %4880 = vmatprep.subr.mxu0 0.0
    %4881 = vmatpush2.msra.mxu0 0.0
    %4882 = vmatprep.subr.mxu0 0.0
    %4883 = vmatpush2.msra.mxu0 0.0
    %4884 = vmatprep.subr.mxu0 0.0
    %4885 = vmatpush2.msra.mxu0 0.0
    %4886 = vmatprep.subr.mxu0 0.0
    %4887 = vmatpush2.msra.mxu0 0.0
    %4888 = vmatprep.subr.mxu0 0.0
    %4889 = vmatpush2.msra.mxu0 0.0
    %4890 = vmatprep.subr.mxu0 0.0
    %4891 = vmatpush2.msra.mxu0 0.0
    %4892 = vmatprep.subr.mxu0 0.0
    %4893 = vmatpush2.msra.mxu0 0.0
    %4894 = vmatprep.subr.mxu0 0.0
    %4895 = vmatpush2.msra.mxu0 0.0
    %4896 = vmatprep.subr.mxu0 0.0
    %4897 = vmatpush2.msra.mxu0 0.0
    %4898 = vmatprep.subr.mxu0 0.0
    %4899 = vmatpush2.msra.mxu0 0.0
    %4900 = vmatprep.subr.mxu0 0.0
    %4901 = vmatpush2.msra.mxu0 0.0
    %4902 = vmatprep.subr.mxu0 0.0
    %4903 = vmatpush2.msra.mxu0 0.0
    %4904 = vmatprep.subr.mxu0 0.0
    %4905 = vmatpush2.msra.mxu0 0.0
    %4906 = vmatprep.subr.mxu0 0.0
    %4907 = vmatpush2.msra.mxu0 0.0
    %4908 = vmatprep.subr.mxu0 0.0
    %4909 = vmatpush2.msra.mxu0 0.0
    %4910 = vmatprep.mubr.f32.mxu0 0.0
    %4911 = vmatmul.mubr.f32.gmra.mxu0 %v4822
    %v4912 = vpop.f32.mrf.mxu0
    %v4913 = vadd.f32 %v4844, %v4912
    %v4914 = vpop.f32.mrf.mxu0
    %4915 = vdwg.mxu0
    %vm4916 = vcmask 7168
    %4917 = vst.msk [vmem:[%s10] sm:$0xff] %vm4916, %v4913
    // Predicated region
    $region46: #{lstm_model_forward.1} parent=1 // pred_check
      _
    $region47: #{lstm_model_forward.1} parent=1 // pred_check_branch
      %4919 = sbr.rel (0) target = $region49
    $region48: #{lstm_model_forward.1} parent=1 // pred_region
      _
    $region49: #{lstm_model_forward.1} parent=1 // pred_fallthru
      _
    // Predicated region
    $region50: #{lstm_model_forward.1} parent=1 // pred_check
      _
    $region51: #{lstm_model_forward.1} parent=1 // pred_check_branch
      %4921 = sbr.rel (0) target = $region53
    $region52: #{lstm_model_forward.1} parent=1 // pred_region
      _
    $region53: #{lstm_model_forward.1} parent=1 // pred_fallthru
      _
    %4922 = vsyncpa [#allocation8], 1
  %4923 = vsyncmov [#allocation5]
  %s4924 = vpop.sfrf %4923
  %p4925 = scmp.eq.s32.totalorder %s4924, 0
  %p4926 = pneg %p4925
  %4928 = shalt.err (%p4926)
  %s4929 = scalar_lea.sflag [#allocation5], 1
  %4930 = vsyncmov %s4929
  %s4931 = vpop.sfrf %4930
  %p4932 = scmp.eq.s32.totalorder %s4931, 0
  %p4933 = pneg %p4932
  %4935 = shalt.err (%p4933)

</llo_original>
